<compile_context>
chip_gen: v7x
topology: tpu7x:2x2x1
jax: 0.10.0
libtpu: 0.0.40
codegen_flags: <defaults>
</compile_context>

<pallas_src>
import functools

import jax
import jax.numpy as jnp
from jax.experimental import pallas as pl
from jax.experimental.pallas import tpu as pltpu

SOS_token = 0
MAX_LENGTH = 8


def _round_up(x, m):
    return ((x + m - 1) // m) * m


def _log_softmax(logits):
    m = jnp.max(logits, axis=-1, keepdims=True)
    shifted = logits - m
    return shifted - jnp.log(jnp.sum(jnp.exp(shifted), axis=-1, keepdims=True))


def _gru_step(gi, gh, h, b_hn, hp):
    # Gate slices are 128-lane aligned (each gate lives in its own Hp=128 block).
    r = jax.nn.sigmoid(gi[:, 0:hp] + gh[:, 0:hp])
    z = jax.nn.sigmoid(gi[:, hp:2 * hp] + gh[:, hp:2 * hp])
    n = jnp.tanh(gi[:, 2 * hp:3 * hp] + r * (gh[:, 2 * hp:3 * hp] + b_hn))
    return (1.0 - z) * n + z * h


# ----------------------------------------------------------------------------
# Greedy-decoding kernel: whole loop unrolled in one kernel invocation.
#   table = relu(emb) @ W_ih + b_i  (pre-fused, one row per vocab token)
# ----------------------------------------------------------------------------
def greedy_decoder_kernel(table_ref, w_hh_ref, b_hn_ref, w_out_ref, b_out_ref,
                          h0_ref, logp_ref, hfinal_ref,
                          *, seq_len: int, sos_token: int, hp: int):
    h = h0_ref[...]                    # (Bp, Hp)
    table = table_ref[...]             # (Vp, 3*Hp)
    w_hh = w_hh_ref[...]               # (Hp, 3*Hp)
    b_hn = b_hn_ref[...]               # (1, Hp)
    w_out = w_out_ref[...]             # (Hp, Vp)
    b_out = b_out_ref[...]             # (1, Vp), padded lanes -1e30

    ids = jax.lax.broadcasted_iota(jnp.int32, (h.shape[0], b_out.shape[1]), 1)
    onehot = (ids == sos_token).astype(jnp.float32)           # (Bp, Vp)

    for t in range(seq_len):
        # fused embedding-gather + input projection + bias: one MXU push
        gi = jnp.dot(onehot, table, preferred_element_type=jnp.float32)
        gh = jnp.dot(h, w_hh, preferred_element_type=jnp.float32)
        h = _gru_step(gi, gh, h, b_hn, hp)
        logits = jnp.dot(h, w_out, preferred_element_type=jnp.float32) + b_out

        # Greedy argmax from the *logits* (shift-invariant): keeps the log-softmax
        # off the serial feedback path.  First-max-index tie-break (== torch.max).
        is_max = logits == jnp.max(logits, axis=-1, keepdims=True)
        masked_ids = jnp.where(is_max, ids, jnp.int32(logits.shape[1]))
        amax = jnp.min(masked_ids, axis=-1, keepdims=True)
        onehot = (ids == amax).astype(jnp.float32)

        # log-softmax is now free filler overlapped with the next step's matmuls
        logp_ref[t] = _log_softmax(logits)

    hfinal_ref[...] = h


# ----------------------------------------------------------------------------
# Teacher-forcing kernel: only h @ W_hh stays serial; the output projection and
# log-softmax run as one batched epilogue over all (seq_len * Bp) rows.
# ----------------------------------------------------------------------------
def tf_decoder_kernel(gi_all_ref, w_hh_ref, b_hn_ref, w_out_ref, b_out_ref,
                      h0_ref, logp_ref, hfinal_ref,
                      *, seq_len: int, hp: int):
    h = h0_ref[...]                    # (Bp, Hp)
    w_hh = w_hh_ref[...]
    b_hn = b_hn_ref[...]
    bp = h.shape[0]

    hs = []
    for t in range(seq_len):
        gi = gi_all_ref[t]             # (Bp, 3*Hp) — precomputed relu(emb)@W_ih + b_i
        gh = jnp.dot(h, w_hh, preferred_element_type=jnp.float32)
        h = _gru_step(gi, gh, h, b_hn, hp)
        hs.append(h)

    hfinal_ref[...] = h

    # Epilogue: one (S*Bp, Hp) @ (Hp, Vp) matmul + vectorized log-softmax.
    h_all = jnp.concatenate(hs, axis=0)                              # (S*Bp, Hp)
    logits = jnp.dot(h_all, w_out_ref[...],
                     preferred_element_type=jnp.float32) + b_out_ref[...]
    logp = _log_softmax(logits)                                      # (S*Bp, Vp)
    for t in range(seq_len):
        logp_ref[t] = logp[t * bp:(t + 1) * bp, :]                   # static, 8-row slices


# ----------------------------------------------------------------------------
# Parameter padding to vreg / MXU granularity (done once per forward, in XLA).
# ----------------------------------------------------------------------------
def _pad_params(params):
    V, E = params["embedding"].shape
    H = params["w_hh"].shape[0]
    Vp, Ep, Hp = _round_up(V, 128), _round_up(E, 128), _round_up(H, 128)
    f32 = jnp.float32

    emb = jnp.zeros((Vp, Ep), f32).at[:V, :E].set(params["embedding"])

    def place_gates(w, rows, rows_p):
        out = jnp.zeros((rows_p, 3 * Hp), f32)
        for g in range(3):
            out = out.at[:rows, g * Hp:g * Hp + H].set(w[:, g * H:(g + 1) * H])
        return out

    w_ih = place_gates(params["w_ih"], E, Ep)
    w_hh = place_gates(params["w_hh"], H, Hp)

    b_ih, b_hh = params["b_ih"], params["b_hh"]            # (1, 3H) each
    b_i = jnp.zeros((1, 3 * Hp), f32)
    b_i = b_i.at[:, 0 * Hp:0 * Hp + H].set(b_ih[:, 0:H] + b_hh[:, 0:H])          # r (folded)
    b_i = b_i.at[:, 1 * Hp:1 * Hp + H].set(b_ih[:, H:2 * H] + b_hh[:, H:2 * H])  # z (folded)
    b_i = b_i.at[:, 2 * Hp:2 * Hp + H].set(b_ih[:, 2 * H:3 * H])                 # n (input part)
    b_hn = jnp.zeros((1, Hp), f32).at[:, :H].set(b_hh[:, 2 * H:3 * H])           # n (hidden part)

    w_out = jnp.zeros((Hp, Vp), f32).at[:H, :V].set(params["w_out"])
    b_out = jnp.full((1, Vp), -1e30, f32).at[:, :V].set(params["b_out"])

    return dict(emb=emb, w_ih=w_ih, w_hh=w_hh, b_i=b_i, b_hn=b_hn,
                w_out=w_out, b_out=b_out, Vp=Vp, Ep=Ep, Hp=Hp,
                V=V, E=E, H=H)


# ----------------------------------------------------------------------------
# Decoder forward (mirrors the PyTorch module's forward) — ONE pallas_call.
# ----------------------------------------------------------------------------
def decoder_forward(params, hidden, pad_tgt_seqs=None, teacher_forcing=False):
    if pad_tgt_seqs is None:
        assert not teacher_forcing, "Cannot use teacher forcing without a target sequence."
        seq_len = MAX_LENGTH
    else:
        seq_len = pad_tgt_seqs.shape[0]

    B = hidden.shape[1]
    pp = _pad_params(params)
    V, E, H = pp["V"], pp["E"], pp["H"]
    Vp, Ep, Hp = pp["Vp"], pp["Ep"], pp["Hp"]
    Bp = _round_up(B, 8)

    h0 = jnp.zeros((Bp, Hp), jnp.float32).at[:B, :H].set(hidden[0])

    def resident(shape):
        nd = len(shape)
        if nd == 2:
            return pl.BlockSpec(shape, lambda i: (0, 0))
        assert nd == 3
        return pl.BlockSpec(shape, lambda i: (0, 0, 0))

    common_specs = [
        resident((Hp, 3 * Hp)),    # w_hh
        resident((1, Hp)),         # b_hh (n gate)
        resident((Hp, Vp)),        # w_out
        resident((1, Vp)),         # b_out (pad lanes -1e30)
        resident((Bp, Hp)),        # h0
    ]
    out_shape = (
        jax.ShapeDtypeStruct((seq_len, Bp, Vp), jnp.float32),
        jax.ShapeDtypeStruct((Bp, Hp), jnp.float32),
    )
    out_specs = (
        resident((seq_len, Bp, Vp)),   # resident logp slab, written per-step in-kernel
        resident((Bp, Hp)),            # final hidden
    )
    cparams = pltpu.CompilerParams(
        dimension_semantics=("arbitrary",),
        vmem_limit_bytes=32 * 1024 * 1024)

    if teacher_forcing:
        # Hoist input-to-hidden projection out of the recurrence: one big matmul.
        in_tok = jnp.concatenate(
            [jnp.full((1, B), SOS_token, jnp.int32),
             pad_tgt_seqs[:-1].astype(jnp.int32)], axis=0)                 # (S, B)
        x = jax.nn.relu(jnp.take(pp["emb"], in_tok, axis=0))               # (S, B, Ep)
        x = jnp.zeros((seq_len, Bp, Ep), jnp.float32).at[:, :B, :].set(x)
        gi_all = jnp.einsum("sbe,eg->sbg", x, pp["w_ih"]) + pp["b_i"][None]  # (S, Bp, 3Hp)

        kernel = functools.partial(tf_decoder_kernel, seq_len=seq_len, hp=Hp)
        logp_seq, h_final = pl.pallas_call(
            kernel,
            grid=(1,),
            out_shape=out_shape,
            in_specs=[resident((seq_len, Bp, 3 * Hp))] + common_specs,
            out_specs=out_specs,
            compiler_params=cparams,
        )(gi_all, pp["w_hh"], pp["b_hn"], pp["w_out"], pp["b_out"], h0)
    else:
        # Fused greedy table: T = relu(emb) @ W_ih + b_i  (one row per vocab token),
        # so each serial step is a single onehot @ T matmul.
        table = jax.nn.relu(pp["emb"]) @ pp["w_ih"] + pp["b_i"]            # (Vp, 3Hp)

        kernel = functools.partial(greedy_decoder_kernel, seq_len=seq_len,
                                   sos_token=SOS_token, hp=Hp)
        logp_seq, h_final = pl.pallas_call(
            kernel,
            grid=(1,),
            out_shape=out_shape,
            in_specs=[resident((Vp, 3 * Hp))] + common_specs,
            out_specs=out_specs,
            compiler_params=cparams,
        )(table, pp["w_hh"], pp["b_hn"], pp["w_out"], pp["b_out"], h0)

    outputs = logp_seq[:, :B, :V]                   # (seq_len, B, V)
    hidden_out = h_final[None, :B, :H]              # (1, B, H)
    return outputs, hidden_out


# ----------------------------------------------------------------------------
# Pure-JAX reference (for correctness check)
# ----------------------------------------------------------------------------
def decoder_forward_ref(params, hidden, pad_tgt_seqs=None, teacher_forcing=False):
    if pad_tgt_seqs is None:
        seq_len = MAX_LENGTH
    else:
        seq_len = pad_tgt_seqs.shape[0]
    B = hidden.shape[1]
    H = hidden.shape[2]
    h = hidden[0]
    input_word = jnp.full((B,), SOS_token, dtype=jnp.int32)
    outputs = []
    for i in range(seq_len):
        x = jax.nn.relu(params["embedding"][input_word])
        gi = x @ params["w_ih"] + params["b_ih"]
        gh = h @ params["w_hh"] + params["b_hh"]
        r = jax.nn.sigmoid(gi[:, 0:H] + gh[:, 0:H])
        z = jax.nn.sigmoid(gi[:, H:2 * H] + gh[:, H:2 * H])
        n = jnp.tanh(gi[:, 2 * H:3 * H] + r * gh[:, 2 * H:3 * H])
        h = (1.0 - z) * n + z * h
        logits = h @ params["w_out"] + params["b_out"]
        logp = jax.nn.log_softmax(logits, axis=-1)
        outputs.append(logp[None])
        if teacher_forcing:
            input_word = pad_tgt_seqs[i].astype(jnp.int32)
        else:
            input_word = jnp.argmax(logp, axis=-1).astype(jnp.int32)
    return jnp.concatenate(outputs, axis=0), h[None]


# ----------------------------------------------------------------------------
# Deterministic parameter init (shapes from the PyTorch __init__)
# ----------------------------------------------------------------------------
def init_params(key, tgt_dictionary_size, embed_size, hidden_size):
    ks = jax.random.split(key, 7)
    bound = 1.0 / jnp.sqrt(hidden_size)
    return {
        "embedding": jax.random.normal(ks[0], (tgt_dictionary_size, embed_size), jnp.float32),
        "w_ih": jax.random.uniform(ks[1], (embed_size, 3 * hidden_size), jnp.float32, -bound, bound),
        "w_hh": jax.random.uniform(ks[2], (hidden_size, 3 * hidden_size), jnp.float32, -bound, bound),
        "b_ih": jax.random.uniform(ks[3], (1, 3 * hidden_size), jnp.float32, -bound, bound),
        "b_hh": jax.random.uniform(ks[4], (1, 3 * hidden_size), jnp.float32, -bound, bound),
        "w_out": jax.random.uniform(ks[5], (hidden_size, tgt_dictionary_size), jnp.float32, -bound, bound),
        "b_out": jax.random.uniform(ks[6], (1, tgt_dictionary_size), jnp.float32, -bound, bound),
    }


if __name__ == "__main__":
    tgt_dictionary_size = 16
    embed_size = 8
    hidden_size = 32
    batch = 2
    seq_len = 8

    key = jax.random.PRNGKey(0)
    kp, kh, kt = jax.random.split(key, 3)
    params = init_params(kp, tgt_dictionary_size, embed_size, hidden_size)

    hidden0 = jax.random.normal(kh, (1, batch, hidden_size), jnp.float32)
    pad_tgt_seqs = jax.random.randint(kt, (seq_len, batch), 0, tgt_dictionary_size, jnp.int32)

    # Greedy decode (teacher_forcing=False; pad_tgt_seqs only sets seq_len)
    outputs, hidden_final = decoder_forward(params, hidden0, pad_tgt_seqs, teacher_forcing=False)
    outputs = jax.block_until_ready(outputs)
    hidden_final = jax.block_until_ready(hidden_final)

    # Teacher-forcing branch (hoisted input projection + batched output projection)
    outputs_tf, hidden_tf = decoder_forward(params, hidden0, pad_tgt_seqs, teacher_forcing=True)
    outputs_tf = jax.block_until_ready(outputs_tf)

    # pad_tgt_seqs=None branch (greedy, MAX_LENGTH steps)
    outputs_none, _ = decoder_forward(params, hidden0, None, teacher_forcing=False)
    outputs_none = jax.block_until_ready(outputs_none)

    # Correctness checks vs. pure-JAX reference
    ref_out, ref_h = decoder_forward_ref(params, hidden0, pad_tgt_seqs, teacher_forcing=False)
    ref_out_tf, ref_h_tf = decoder_forward_ref(params, hidden0, pad_tgt_seqs, teacher_forcing=True)

    assert outputs.shape == (seq_len, batch, tgt_dictionary_size)
    assert hidden_final.shape == (1, batch, hidden_size)
    assert jnp.allclose(outputs, ref_out, atol=1e-5, rtol=1e-5)
    assert jnp.allclose(hidden_final, ref_h, atol=1e-5, rtol=1e-5)
    assert jnp.allclose(outputs_tf, ref_out_tf, atol=1e-5, rtol=1e-5)
    assert jnp.allclose(hidden_tf, ref_h_tf, atol=1e-5, rtol=1e-5)
    assert jnp.allclose(outputs_none, outputs, atol=1e-5, rtol=1e-5)  # same greedy trajectory

    print("KERNEL_OK")
</pallas_src>

<mosaic_0001>
module attributes {stable_mosaic.version = 11 : i64} {
  func.func @greedy_decoder_kernel(%arg0: i32, %arg1: memref<128x384xf32, #tpu.memory_space<vmem>>, %arg2: memref<128x384xf32, #tpu.memory_space<vmem>>, %arg3: memref<1x128xf32, #tpu.memory_space<vmem>>, %arg4: memref<128x128xf32, #tpu.memory_space<vmem>>, %arg5: memref<1x128xf32, #tpu.memory_space<vmem>>, %arg6: memref<8x128xf32, #tpu.memory_space<vmem>>, %arg7: memref<8x8x128xf32, #tpu.memory_space<vmem>>, %arg8: memref<8x128xf32, #tpu.memory_space<vmem>>) attributes {dimension_semantics = [#tpu.dimension_semantics<arbitrary>], iteration_bounds = array<i64: 1>, scalar_prefetch = 0 : i64, scratch_operands = 0 : i64, tpu.core_type = #tpu.core_type<tc>, window_params = [{pipeline_mode = #tpu.pipeline_mode<synchronous>, transform_indices = @transform_0, window_bounds = array<i64: 128, 384>}, {pipeline_mode = #tpu.pipeline_mode<synchronous>, transform_indices = @transform_1, window_bounds = array<i64: 128, 384>}, {pipeline_mode = #tpu.pipeline_mode<synchronous>, transform_indices = @transform_2, window_bounds = array<i64: 1, 128>}, {pipeline_mode = #tpu.pipeline_mode<synchronous>, transform_indices = @transform_3, window_bounds = array<i64: 128, 128>}, {pipeline_mode = #tpu.pipeline_mode<synchronous>, transform_indices = @transform_4, window_bounds = array<i64: 1, 128>}, {pipeline_mode = #tpu.pipeline_mode<synchronous>, transform_indices = @transform_5, window_bounds = array<i64: 8, 128>}, {pipeline_mode = #tpu.pipeline_mode<synchronous>, transform_indices = @transform_6, window_bounds = array<i64: 8, 8, 128>}, {pipeline_mode = #tpu.pipeline_mode<synchronous>, transform_indices = @transform_7, window_bounds = array<i64: 8, 128>}]} {
    %c0 = arith.constant 0 : index
    %c0_0 = arith.constant 0 : index
    %0 = vector.load %arg6[%c0, %c0_0] : memref<8x128xf32, #tpu.memory_space<vmem>>, vector<8x128xf32>
    %c0_1 = arith.constant 0 : index
    %c0_2 = arith.constant 0 : index
    %1 = vector.load %arg1[%c0_1, %c0_2] : memref<128x384xf32, #tpu.memory_space<vmem>>, vector<128x384xf32>
    %c0_3 = arith.constant 0 : index
    %c0_4 = arith.constant 0 : index
    %2 = vector.load %arg2[%c0_3, %c0_4] : memref<128x384xf32, #tpu.memory_space<vmem>>, vector<128x384xf32>
    %c0_5 = arith.constant 0 : index
    %c0_6 = arith.constant 0 : index
    %3 = vector.load %arg3[%c0_5, %c0_6] : memref<1x128xf32, #tpu.memory_space<vmem>>, vector<1x128xf32>
    %c0_7 = arith.constant 0 : index
    %c0_8 = arith.constant 0 : index
    %4 = vector.load %arg4[%c0_7, %c0_8] : memref<128x128xf32, #tpu.memory_space<vmem>>, vector<128x128xf32>
    %c0_9 = arith.constant 0 : index
    %c0_10 = arith.constant 0 : index
    %5 = vector.load %arg5[%c0_9, %c0_10] : memref<1x128xf32, #tpu.memory_space<vmem>>, vector<1x128xf32>
    %6 = tpu.iota {dimensions = array<i32: 1>} : vector<8x128xi32>
    %c0_i32 = arith.constant 0 : i32
    %7 = vector.broadcast %c0_i32 : i32 to vector<8x128xi32>
    %8 = arith.cmpi eq, %6, %7 : vector<8x128xi32>
    %9 = arith.extui %8 : vector<8x128xi1> to vector<8x128xi32>
    %10 = arith.sitofp %9 : vector<8x128xi32> to vector<8x128xf32>
    %cst = arith.constant dense<0.000000e+00> : vector<8x384xf32>
    %11 = tpu.matmul %10, %1, %cst {dimension_numbers = #tpu.dot_dimension_numbers<[1], [0], [0], [1], [0, 0, 1, 1], [], []>} : vector<8x128xf32>, vector<128x384xf32>, vector<8x384xf32> -> vector<8x384xf32>
    %cst_11 = arith.constant dense<0.000000e+00> : vector<8x384xf32>
    %12 = tpu.matmul %0, %2, %cst_11 {dimension_numbers = #tpu.dot_dimension_numbers<[1], [0], [0], [1], [0, 0, 1, 1], [], []>} : vector<8x128xf32>, vector<128x384xf32>, vector<8x384xf32> -> vector<8x384xf32>
    %13 = vector.extract_strided_slice %11 {offsets = [0, 0], sizes = [8, 128], strides = [1, 1]} : vector<8x384xf32> to vector<8x128xf32>
    %14 = vector.extract_strided_slice %12 {offsets = [0, 0], sizes = [8, 128], strides = [1, 1]} : vector<8x384xf32> to vector<8x128xf32>
    %15 = arith.addf %13, %14 : vector<8x128xf32>
    %16 = arith.negf %15 : vector<8x128xf32>
    %17 = math.exp %16 : vector<8x128xf32>
    %cst_12 = arith.constant 1.000000e+00 : f32
    %18 = vector.broadcast %cst_12 : f32 to vector<8x128xf32>
    %19 = arith.addf %18, %17 : vector<8x128xf32>
    %20 = arith.divf %18, %19 : vector<8x128xf32>
    %21 = vector.extract_strided_slice %11 {offsets = [0, 128], sizes = [8, 128], strides = [1, 1]} : vector<8x384xf32> to vector<8x128xf32>
    %22 = vector.extract_strided_slice %12 {offsets = [0, 128], sizes = [8, 128], strides = [1, 1]} : vector<8x384xf32> to vector<8x128xf32>
    %23 = arith.addf %21, %22 : vector<8x128xf32>
    %24 = arith.negf %23 : vector<8x128xf32>
    %25 = math.exp %24 : vector<8x128xf32>
    %cst_13 = arith.constant 1.000000e+00 : f32
    %26 = vector.broadcast %cst_13 : f32 to vector<8x128xf32>
    %27 = arith.addf %26, %25 : vector<8x128xf32>
    %28 = arith.divf %26, %27 : vector<8x128xf32>
    %29 = vector.extract_strided_slice %11 {offsets = [0, 256], sizes = [8, 128], strides = [1, 1]} : vector<8x384xf32> to vector<8x128xf32>
    %30 = vector.extract_strided_slice %12 {offsets = [0, 256], sizes = [8, 128], strides = [1, 1]} : vector<8x384xf32> to vector<8x128xf32>
    %31 = vector.broadcast %3 : vector<1x128xf32> to vector<8x128xf32>
    %32 = arith.addf %30, %31 : vector<8x128xf32>
    %33 = arith.mulf %20, %32 : vector<8x128xf32>
    %34 = arith.addf %29, %33 : vector<8x128xf32>
    %35 = math.tanh %34 : vector<8x128xf32>
    %cst_14 = arith.constant 1.000000e+00 : f32
    %36 = vector.broadcast %cst_14 : f32 to vector<8x128xf32>
    %37 = arith.subf %36, %28 : vector<8x128xf32>
    %38 = arith.mulf %37, %35 : vector<8x128xf32>
    %39 = arith.mulf %28, %0 : vector<8x128xf32>
    %40 = arith.addf %38, %39 : vector<8x128xf32>
    %cst_15 = arith.constant dense<0.000000e+00> : vector<8x128xf32>
    %41 = tpu.matmul %40, %4, %cst_15 {dimension_numbers = #tpu.dot_dimension_numbers<[1], [0], [0], [1], [0, 0, 1, 1], [], []>} : vector<8x128xf32>, vector<128x128xf32>, vector<8x128xf32> -> vector<8x128xf32>
    %42 = vector.broadcast %5 : vector<1x128xf32> to vector<8x128xf32>
    %43 = arith.addf %41, %42 : vector<8x128xf32>
    %cst_16 = arith.constant dense<0xFF800000> : vector<8xf32>
    %44 = vector.multi_reduction <maximumf>, %43, %cst_16 [1] : vector<8x128xf32> to vector<8xf32>
    %45 = vector.shape_cast %44 : vector<8xf32> to vector<8x1xf32>
    %46 = vector.broadcast %45 : vector<8x1xf32> to vector<8x128xf32>
    %47 = arith.cmpf oeq, %43, %46 : vector<8x128xf32>
    %c128_i32 = arith.constant 128 : i32
    %48 = vector.broadcast %c128_i32 : i32 to vector<8x128xi32>
    %49 = arith.select %47, %6, %48 : vector<8x128xi1>, vector<8x128xi32>
    %cst_17 = arith.constant dense<2147483647> : vector<8xi32>
    %50 = vector.multi_reduction <minsi>, %49, %cst_17 [1] : vector<8x128xi32> to vector<8xi32>
    %51 = vector.shape_cast %50 : vector<8xi32> to vector<8x1xi32>
    %52 = vector.broadcast %51 : vector<8x1xi32> to vector<8x128xi32>
    %53 = arith.cmpi eq, %6, %52 : vector<8x128xi32>
    %54 = arith.extui %53 : vector<8x128xi1> to vector<8x128xi32>
    %55 = arith.sitofp %54 : vector<8x128xi32> to vector<8x128xf32>
    %cst_18 = arith.constant dense<0xFF800000> : vector<8xf32>
    %56 = vector.multi_reduction <maximumf>, %43, %cst_18 [1] : vector<8x128xf32> to vector<8xf32>
    %57 = vector.shape_cast %56 : vector<8xf32> to vector<8x1xf32>
    %58 = vector.broadcast %57 : vector<8x1xf32> to vector<8x128xf32>
    %59 = arith.subf %43, %58 : vector<8x128xf32>
    %60 = math.exp %59 : vector<8x128xf32>
    %cst_19 = arith.constant dense<0.000000e+00> : vector<8xf32>
    %61 = vector.multi_reduction <add>, %60, %cst_19 [1] : vector<8x128xf32> to vector<8xf32>
    %62 = vector.shape_cast %61 : vector<8xf32> to vector<8x1xf32>
    %63 = math.log %62 : vector<8x1xf32>
    %64 = vector.broadcast %63 : vector<8x1xf32> to vector<8x128xf32>
    %65 = arith.subf %59, %64 : vector<8x128xf32>
    %c0_20 = arith.constant 0 : index
    %c0_21 = arith.constant 0 : index
    %c0_22 = arith.constant 0 : index
    %66 = vector.load %arg7[%c0_20, %c0_21, %c0_22] : memref<8x8x128xf32, #tpu.memory_space<vmem>>, vector<1x8x128xf32>
    %67 = vector.shape_cast %66 : vector<1x8x128xf32> to vector<8x128xf32>
    %68 = vector.shape_cast %65 : vector<8x128xf32> to vector<1x8x128xf32>
    tpu.vector_store %arg7[%c0_20, %c0_21, %c0_22], %68 {strides = array<i32>} : memref<8x8x128xf32, #tpu.memory_space<vmem>>, vector<1x8x128xf32>,
    %cst_23 = arith.constant dense<0.000000e+00> : vector<8x384xf32>
    %69 = tpu.matmul %55, %1, %cst_23 {dimension_numbers = #tpu.dot_dimension_numbers<[1], [0], [0], [1], [0, 0, 1, 1], [], []>} : vector<8x128xf32>, vector<128x384xf32>, vector<8x384xf32> -> vector<8x384xf32>
    %cst_24 = arith.constant dense<0.000000e+00> : vector<8x384xf32>
    %70 = tpu.matmul %40, %2, %cst_24 {dimension_numbers = #tpu.dot_dimension_numbers<[1], [0], [0], [1], [0, 0, 1, 1], [], []>} : vector<8x128xf32>, vector<128x384xf32>, vector<8x384xf32> -> vector<8x384xf32>
    %71 = vector.extract_strided_slice %69 {offsets = [0, 0], sizes = [8, 128], strides = [1, 1]} : vector<8x384xf32> to vector<8x128xf32>
    %72 = vector.extract_strided_slice %70 {offsets = [0, 0], sizes = [8, 128], strides = [1, 1]} : vector<8x384xf32> to vector<8x128xf32>
    %73 = arith.addf %71, %72 : vector<8x128xf32>
    %74 = arith.negf %73 : vector<8x128xf32>
    %75 = math.exp %74 : vector<8x128xf32>
    %cst_25 = arith.constant 1.000000e+00 : f32
    %76 = vector.broadcast %cst_25 : f32 to vector<8x128xf32>
    %77 = arith.addf %76, %75 : vector<8x128xf32>
    %78 = arith.divf %76, %77 : vector<8x128xf32>
    %79 = vector.extract_strided_slice %69 {offsets = [0, 128], sizes = [8, 128], strides = [1, 1]} : vector<8x384xf32> to vector<8x128xf32>
    %80 = vector.extract_strided_slice %70 {offsets = [0, 128], sizes = [8, 128], strides = [1, 1]} : vector<8x384xf32> to vector<8x128xf32>
    %81 = arith.addf %79, %80 : vector<8x128xf32>
    %82 = arith.negf %81 : vector<8x128xf32>
    %83 = math.exp %82 : vector<8x128xf32>
    %cst_26 = arith.constant 1.000000e+00 : f32
    %84 = vector.broadcast %cst_26 : f32 to vector<8x128xf32>
    %85 = arith.addf %84, %83 : vector<8x128xf32>
    %86 = arith.divf %84, %85 : vector<8x128xf32>
    %87 = vector.extract_strided_slice %69 {offsets = [0, 256], sizes = [8, 128], strides = [1, 1]} : vector<8x384xf32> to vector<8x128xf32>
    %88 = vector.extract_strided_slice %70 {offsets = [0, 256], sizes = [8, 128], strides = [1, 1]} : vector<8x384xf32> to vector<8x128xf32>
    %89 = vector.broadcast %3 : vector<1x128xf32> to vector<8x128xf32>
    %90 = arith.addf %88, %89 : vector<8x128xf32>
    %91 = arith.mulf %78, %90 : vector<8x128xf32>
    %92 = arith.addf %87, %91 : vector<8x128xf32>
    %93 = math.tanh %92 : vector<8x128xf32>
    %cst_27 = arith.constant 1.000000e+00 : f32
    %94 = vector.broadcast %cst_27 : f32 to vector<8x128xf32>
    %95 = arith.subf %94, %86 : vector<8x128xf32>
    %96 = arith.mulf %95, %93 : vector<8x128xf32>
    %97 = arith.mulf %86, %40 : vector<8x128xf32>
    %98 = arith.addf %96, %97 : vector<8x128xf32>
    %cst_28 = arith.constant dense<0.000000e+00> : vector<8x128xf32>
    %99 = tpu.matmul %98, %4, %cst_28 {dimension_numbers = #tpu.dot_dimension_numbers<[1], [0], [0], [1], [0, 0, 1, 1], [], []>} : vector<8x128xf32>, vector<128x128xf32>, vector<8x128xf32> -> vector<8x128xf32>
    %100 = vector.broadcast %5 : vector<1x128xf32> to vector<8x128xf32>
    %101 = arith.addf %99, %100 : vector<8x128xf32>
    %cst_29 = arith.constant dense<0xFF800000> : vector<8xf32>
    %102 = vector.multi_reduction <maximumf>, %101, %cst_29 [1] : vector<8x128xf32> to vector<8xf32>
    %103 = vector.shape_cast %102 : vector<8xf32> to vector<8x1xf32>
    %104 = vector.broadcast %103 : vector<8x1xf32> to vector<8x128xf32>
    %105 = arith.cmpf oeq, %101, %104 : vector<8x128xf32>
    %c128_i32_30 = arith.constant 128 : i32
    %106 = vector.broadcast %c128_i32_30 : i32 to vector<8x128xi32>
    %107 = arith.select %105, %6, %106 : vector<8x128xi1>, vector<8x128xi32>
    %cst_31 = arith.constant dense<2147483647> : vector<8xi32>
    %108 = vector.multi_reduction <minsi>, %107, %cst_31 [1] : vector<8x128xi32> to vector<8xi32>
    %109 = vector.shape_cast %108 : vector<8xi32> to vector<8x1xi32>
    %110 = vector.broadcast %109 : vector<8x1xi32> to vector<8x128xi32>
    %111 = arith.cmpi eq, %6, %110 : vector<8x128xi32>
    %112 = arith.extui %111 : vector<8x128xi1> to vector<8x128xi32>
    %113 = arith.sitofp %112 : vector<8x128xi32> to vector<8x128xf32>
    %cst_32 = arith.constant dense<0xFF800000> : vector<8xf32>
    %114 = vector.multi_reduction <maximumf>, %101, %cst_32 [1] : vector<8x128xf32> to vector<8xf32>
    %115 = vector.shape_cast %114 : vector<8xf32> to vector<8x1xf32>
    %116 = vector.broadcast %115 : vector<8x1xf32> to vector<8x128xf32>
    %117 = arith.subf %101, %116 : vector<8x128xf32>
    %118 = math.exp %117 : vector<8x128xf32>
    %cst_33 = arith.constant dense<0.000000e+00> : vector<8xf32>
    %119 = vector.multi_reduction <add>, %118, %cst_33 [1] : vector<8x128xf32> to vector<8xf32>
    %120 = vector.shape_cast %119 : vector<8xf32> to vector<8x1xf32>
    %121 = math.log %120 : vector<8x1xf32>
    %122 = vector.broadcast %121 : vector<8x1xf32> to vector<8x128xf32>
    %123 = arith.subf %117, %122 : vector<8x128xf32>
    %c1 = arith.constant 1 : index
    %c0_34 = arith.constant 0 : index
    %c0_35 = arith.constant 0 : index
    %124 = vector.load %arg7[%c1, %c0_34, %c0_35] : memref<8x8x128xf32, #tpu.memory_space<vmem>>, vector<1x8x128xf32>
    %125 = vector.shape_cast %124 : vector<1x8x128xf32> to vector<8x128xf32>
    %126 = vector.shape_cast %123 : vector<8x128xf32> to vector<1x8x128xf32>
    tpu.vector_store %arg7[%c1, %c0_34, %c0_35], %126 {strides = array<i32>} : memref<8x8x128xf32, #tpu.memory_space<vmem>>, vector<1x8x128xf32>,
    %cst_36 = arith.constant dense<0.000000e+00> : vector<8x384xf32>
    %127 = tpu.matmul %113, %1, %cst_36 {dimension_numbers = #tpu.dot_dimension_numbers<[1], [0], [0], [1], [0, 0, 1, 1], [], []>} : vector<8x128xf32>, vector<128x384xf32>, vector<8x384xf32> -> vector<8x384xf32>
    %cst_37 = arith.constant dense<0.000000e+00> : vector<8x384xf32>
    %128 = tpu.matmul %98, %2, %cst_37 {dimension_numbers = #tpu.dot_dimension_numbers<[1], [0], [0], [1], [0, 0, 1, 1], [], []>} : vector<8x128xf32>, vector<128x384xf32>, vector<8x384xf32> -> vector<8x384xf32>
    %129 = vector.extract_strided_slice %127 {offsets = [0, 0], sizes = [8, 128], strides = [1, 1]} : vector<8x384xf32> to vector<8x128xf32>
    %130 = vector.extract_strided_slice %128 {offsets = [0, 0], sizes = [8, 128], strides = [1, 1]} : vector<8x384xf32> to vector<8x128xf32>
    %131 = arith.addf %129, %130 : vector<8x128xf32>
    %132 = arith.negf %131 : vector<8x128xf32>
    %133 = math.exp %132 : vector<8x128xf32>
    %cst_38 = arith.constant 1.000000e+00 : f32
    %134 = vector.broadcast %cst_38 : f32 to vector<8x128xf32>
    %135 = arith.addf %134, %133 : vector<8x128xf32>
    %136 = arith.divf %134, %135 : vector<8x128xf32>
    %137 = vector.extract_strided_slice %127 {offsets = [0, 128], sizes = [8, 128], strides = [1, 1]} : vector<8x384xf32> to vector<8x128xf32>
    %138 = vector.extract_strided_slice %128 {offsets = [0, 128], sizes = [8, 128], strides = [1, 1]} : vector<8x384xf32> to vector<8x128xf32>
    %139 = arith.addf %137, %138 : vector<8x128xf32>
    %140 = arith.negf %139 : vector<8x128xf32>
    %141 = math.exp %140 : vector<8x128xf32>
    %cst_39 = arith.constant 1.000000e+00 : f32
    %142 = vector.broadcast %cst_39 : f32 to vector<8x128xf32>
    %143 = arith.addf %142, %141 : vector<8x128xf32>
    %144 = arith.divf %142, %143 : vector<8x128xf32>
    %145 = vector.extract_strided_slice %127 {offsets = [0, 256], sizes = [8, 128], strides = [1, 1]} : vector<8x384xf32> to vector<8x128xf32>
    %146 = vector.extract_strided_slice %128 {offsets = [0, 256], sizes = [8, 128], strides = [1, 1]} : vector<8x384xf32> to vector<8x128xf32>
    %147 = vector.broadcast %3 : vector<1x128xf32> to vector<8x128xf32>
    %148 = arith.addf %146, %147 : vector<8x128xf32>
    %149 = arith.mulf %136, %148 : vector<8x128xf32>
    %150 = arith.addf %145, %149 : vector<8x128xf32>
    %151 = math.tanh %150 : vector<8x128xf32>
    %cst_40 = arith.constant 1.000000e+00 : f32
    %152 = vector.broadcast %cst_40 : f32 to vector<8x128xf32>
    %153 = arith.subf %152, %144 : vector<8x128xf32>
    %154 = arith.mulf %153, %151 : vector<8x128xf32>
    %155 = arith.mulf %144, %98 : vector<8x128xf32>
    %156 = arith.addf %154, %155 : vector<8x128xf32>
    %cst_41 = arith.constant dense<0.000000e+00> : vector<8x128xf32>
    %157 = tpu.matmul %156, %4, %cst_41 {dimension_numbers = #tpu.dot_dimension_numbers<[1], [0], [0], [1], [0, 0, 1, 1], [], []>} : vector<8x128xf32>, vector<128x128xf32>, vector<8x128xf32> -> vector<8x128xf32>
    %158 = vector.broadcast %5 : vector<1x128xf32> to vector<8x128xf32>
    %159 = arith.addf %157, %158 : vector<8x128xf32>
    %cst_42 = arith.constant dense<0xFF800000> : vector<8xf32>
    %160 = vector.multi_reduction <maximumf>, %159, %cst_42 [1] : vector<8x128xf32> to vector<8xf32>
    %161 = vector.shape_cast %160 : vector<8xf32> to vector<8x1xf32>
    %162 = vector.broadcast %161 : vector<8x1xf32> to vector<8x128xf32>
    %163 = arith.cmpf oeq, %159, %162 : vector<8x128xf32>
    %c128_i32_43 = arith.constant 128 : i32
    %164 = vector.broadcast %c128_i32_43 : i32 to vector<8x128xi32>
    %165 = arith.select %163, %6, %164 : vector<8x128xi1>, vector<8x128xi32>
    %cst_44 = arith.constant dense<2147483647> : vector<8xi32>
    %166 = vector.multi_reduction <minsi>, %165, %cst_44 [1] : vector<8x128xi32> to vector<8xi32>
    %167 = vector.shape_cast %166 : vector<8xi32> to vector<8x1xi32>
    %168 = vector.broadcast %167 : vector<8x1xi32> to vector<8x128xi32>
    %169 = arith.cmpi eq, %6, %168 : vector<8x128xi32>
    %170 = arith.extui %169 : vector<8x128xi1> to vector<8x128xi32>
    %171 = arith.sitofp %170 : vector<8x128xi32> to vector<8x128xf32>
    %cst_45 = arith.constant dense<0xFF800000> : vector<8xf32>
    %172 = vector.multi_reduction <maximumf>, %159, %cst_45 [1] : vector<8x128xf32> to vector<8xf32>
    %173 = vector.shape_cast %172 : vector<8xf32> to vector<8x1xf32>
    %174 = vector.broadcast %173 : vector<8x1xf32> to vector<8x128xf32>
    %175 = arith.subf %159, %174 : vector<8x128xf32>
    %176 = math.exp %175 : vector<8x128xf32>
    %cst_46 = arith.constant dense<0.000000e+00> : vector<8xf32>
    %177 = vector.multi_reduction <add>, %176, %cst_46 [1] : vector<8x128xf32> to vector<8xf32>
    %178 = vector.shape_cast %177 : vector<8xf32> to vector<8x1xf32>
    %179 = math.log %178 : vector<8x1xf32>
    %180 = vector.broadcast %179 : vector<8x1xf32> to vector<8x128xf32>
    %181 = arith.subf %175, %180 : vector<8x128xf32>
    %c2 = arith.constant 2 : index
    %c0_47 = arith.constant 0 : index
    %c0_48 = arith.constant 0 : index
    %182 = vector.load %arg7[%c2, %c0_47, %c0_48] : memref<8x8x128xf32, #tpu.memory_space<vmem>>, vector<1x8x128xf32>
    %183 = vector.shape_cast %182 : vector<1x8x128xf32> to vector<8x128xf32>
    %184 = vector.shape_cast %181 : vector<8x128xf32> to vector<1x8x128xf32>
    tpu.vector_store %arg7[%c2, %c0_47, %c0_48], %184 {strides = array<i32>} : memref<8x8x128xf32, #tpu.memory_space<vmem>>, vector<1x8x128xf32>,
    %cst_49 = arith.constant dense<0.000000e+00> : vector<8x384xf32>
    %185 = tpu.matmul %171, %1, %cst_49 {dimension_numbers = #tpu.dot_dimension_numbers<[1], [0], [0], [1], [0, 0, 1, 1], [], []>} : vector<8x128xf32>, vector<128x384xf32>, vector<8x384xf32> -> vector<8x384xf32>
    %cst_50 = arith.constant dense<0.000000e+00> : vector<8x384xf32>
    %186 = tpu.matmul %156, %2, %cst_50 {dimension_numbers = #tpu.dot_dimension_numbers<[1], [0], [0], [1], [0, 0, 1, 1], [], []>} : vector<8x128xf32>, vector<128x384xf32>, vector<8x384xf32> -> vector<8x384xf32>
    %187 = vector.extract_strided_slice %185 {offsets = [0, 0], sizes = [8, 128], strides = [1, 1]} : vector<8x384xf32> to vector<8x128xf32>
    %188 = vector.extract_strided_slice %186 {offsets = [0, 0], sizes = [8, 128], strides = [1, 1]} : vector<8x384xf32> to vector<8x128xf32>
    %189 = arith.addf %187, %188 : vector<8x128xf32>
    %190 = arith.negf %189 : vector<8x128xf32>
    %191 = math.exp %190 : vector<8x128xf32>
    %cst_51 = arith.constant 1.000000e+00 : f32
    %192 = vector.broadcast %cst_51 : f32 to vector<8x128xf32>
    %193 = arith.addf %192, %191 : vector<8x128xf32>
    %194 = arith.divf %192, %193 : vector<8x128xf32>
    %195 = vector.extract_strided_slice %185 {offsets = [0, 128], sizes = [8, 128], strides = [1, 1]} : vector<8x384xf32> to vector<8x128xf32>
    %196 = vector.extract_strided_slice %186 {offsets = [0, 128], sizes = [8, 128], strides = [1, 1]} : vector<8x384xf32> to vector<8x128xf32>
    %197 = arith.addf %195, %196 : vector<8x128xf32>
    %198 = arith.negf %197 : vector<8x128xf32>
    %199 = math.exp %198 : vector<8x128xf32>
    %cst_52 = arith.constant 1.000000e+00 : f32
    %200 = vector.broadcast %cst_52 : f32 to vector<8x128xf32>
    %201 = arith.addf %200, %199 : vector<8x128xf32>
    %202 = arith.divf %200, %201 : vector<8x128xf32>
    %203 = vector.extract_strided_slice %185 {offsets = [0, 256], sizes = [8, 128], strides = [1, 1]} : vector<8x384xf32> to vector<8x128xf32>
    %204 = vector.extract_strided_slice %186 {offsets = [0, 256], sizes = [8, 128], strides = [1, 1]} : vector<8x384xf32> to vector<8x128xf32>
    %205 = vector.broadcast %3 : vector<1x128xf32> to vector<8x128xf32>
    %206 = arith.addf %204, %205 : vector<8x128xf32>
    %207 = arith.mulf %194, %206 : vector<8x128xf32>
    %208 = arith.addf %203, %207 : vector<8x128xf32>
    %209 = math.tanh %208 : vector<8x128xf32>
    %cst_53 = arith.constant 1.000000e+00 : f32
    %210 = vector.broadcast %cst_53 : f32 to vector<8x128xf32>
    %211 = arith.subf %210, %202 : vector<8x128xf32>
    %212 = arith.mulf %211, %209 : vector<8x128xf32>
    %213 = arith.mulf %202, %156 : vector<8x128xf32>
    %214 = arith.addf %212, %213 : vector<8x128xf32>
    %cst_54 = arith.constant dense<0.000000e+00> : vector<8x128xf32>
    %215 = tpu.matmul %214, %4, %cst_54 {dimension_numbers = #tpu.dot_dimension_numbers<[1], [0], [0], [1], [0, 0, 1, 1], [], []>} : vector<8x128xf32>, vector<128x128xf32>, vector<8x128xf32> -> vector<8x128xf32>
    %216 = vector.broadcast %5 : vector<1x128xf32> to vector<8x128xf32>
    %217 = arith.addf %215, %216 : vector<8x128xf32>
    %cst_55 = arith.constant dense<0xFF800000> : vector<8xf32>
    %218 = vector.multi_reduction <maximumf>, %217, %cst_55 [1] : vector<8x128xf32> to vector<8xf32>
    %219 = vector.shape_cast %218 : vector<8xf32> to vector<8x1xf32>
    %220 = vector.broadcast %219 : vector<8x1xf32> to vector<8x128xf32>
    %221 = arith.cmpf oeq, %217, %220 : vector<8x128xf32>
    %c128_i32_56 = arith.constant 128 : i32
    %222 = vector.broadcast %c128_i32_56 : i32 to vector<8x128xi32>
    %223 = arith.select %221, %6, %222 : vector<8x128xi1>, vector<8x128xi32>
    %cst_57 = arith.constant dense<2147483647> : vector<8xi32>
    %224 = vector.multi_reduction <minsi>, %223, %cst_57 [1] : vector<8x128xi32> to vector<8xi32>
    %225 = vector.shape_cast %224 : vector<8xi32> to vector<8x1xi32>
    %226 = vector.broadcast %225 : vector<8x1xi32> to vector<8x128xi32>
    %227 = arith.cmpi eq, %6, %226 : vector<8x128xi32>
    %228 = arith.extui %227 : vector<8x128xi1> to vector<8x128xi32>
    %229 = arith.sitofp %228 : vector<8x128xi32> to vector<8x128xf32>
    %cst_58 = arith.constant dense<0xFF800000> : vector<8xf32>
    %230 = vector.multi_reduction <maximumf>, %217, %cst_58 [1] : vector<8x128xf32> to vector<8xf32>
    %231 = vector.shape_cast %230 : vector<8xf32> to vector<8x1xf32>
    %232 = vector.broadcast %231 : vector<8x1xf32> to vector<8x128xf32>
    %233 = arith.subf %217, %232 : vector<8x128xf32>
    %234 = math.exp %233 : vector<8x128xf32>
    %cst_59 = arith.constant dense<0.000000e+00> : vector<8xf32>
    %235 = vector.multi_reduction <add>, %234, %cst_59 [1] : vector<8x128xf32> to vector<8xf32>
    %236 = vector.shape_cast %235 : vector<8xf32> to vector<8x1xf32>
    %237 = math.log %236 : vector<8x1xf32>
    %238 = vector.broadcast %237 : vector<8x1xf32> to vector<8x128xf32>
    %239 = arith.subf %233, %238 : vector<8x128xf32>
    %c3 = arith.constant 3 : index
    %c0_60 = arith.constant 0 : index
    %c0_61 = arith.constant 0 : index
    %240 = vector.load %arg7[%c3, %c0_60, %c0_61] : memref<8x8x128xf32, #tpu.memory_space<vmem>>, vector<1x8x128xf32>
    %241 = vector.shape_cast %240 : vector<1x8x128xf32> to vector<8x128xf32>
    %242 = vector.shape_cast %239 : vector<8x128xf32> to vector<1x8x128xf32>
    tpu.vector_store %arg7[%c3, %c0_60, %c0_61], %242 {strides = array<i32>} : memref<8x8x128xf32, #tpu.memory_space<vmem>>, vector<1x8x128xf32>,
    %cst_62 = arith.constant dense<0.000000e+00> : vector<8x384xf32>
    %243 = tpu.matmul %229, %1, %cst_62 {dimension_numbers = #tpu.dot_dimension_numbers<[1], [0], [0], [1], [0, 0, 1, 1], [], []>} : vector<8x128xf32>, vector<128x384xf32>, vector<8x384xf32> -> vector<8x384xf32>
    %cst_63 = arith.constant dense<0.000000e+00> : vector<8x384xf32>
    %244 = tpu.matmul %214, %2, %cst_63 {dimension_numbers = #tpu.dot_dimension_numbers<[1], [0], [0], [1], [0, 0, 1, 1], [], []>} : vector<8x128xf32>, vector<128x384xf32>, vector<8x384xf32> -> vector<8x384xf32>
    %245 = vector.extract_strided_slice %243 {offsets = [0, 0], sizes = [8, 128], strides = [1, 1]} : vector<8x384xf32> to vector<8x128xf32>
    %246 = vector.extract_strided_slice %244 {offsets = [0, 0], sizes = [8, 128], strides = [1, 1]} : vector<8x384xf32> to vector<8x128xf32>
    %247 = arith.addf %245, %246 : vector<8x128xf32>
    %248 = arith.negf %247 : vector<8x128xf32>
    %249 = math.exp %248 : vector<8x128xf32>
    %cst_64 = arith.constant 1.000000e+00 : f32
    %250 = vector.broadcast %cst_64 : f32 to vector<8x128xf32>
    %251 = arith.addf %250, %249 : vector<8x128xf32>
    %252 = arith.divf %250, %251 : vector<8x128xf32>
    %253 = vector.extract_strided_slice %243 {offsets = [0, 128], sizes = [8, 128], strides = [1, 1]} : vector<8x384xf32> to vector<8x128xf32>
    %254 = vector.extract_strided_slice %244 {offsets = [0, 128], sizes = [8, 128], strides = [1, 1]} : vector<8x384xf32> to vector<8x128xf32>
    %255 = arith.addf %253, %254 : vector<8x128xf32>
    %256 = arith.negf %255 : vector<8x128xf32>
    %257 = math.exp %256 : vector<8x128xf32>
    %cst_65 = arith.constant 1.000000e+00 : f32
    %258 = vector.broadcast %cst_65 : f32 to vector<8x128xf32>
    %259 = arith.addf %258, %257 : vector<8x128xf32>
    %260 = arith.divf %258, %259 : vector<8x128xf32>
    %261 = vector.extract_strided_slice %243 {offsets = [0, 256], sizes = [8, 128], strides = [1, 1]} : vector<8x384xf32> to vector<8x128xf32>
    %262 = vector.extract_strided_slice %244 {offsets = [0, 256], sizes = [8, 128], strides = [1, 1]} : vector<8x384xf32> to vector<8x128xf32>
    %263 = vector.broadcast %3 : vector<1x128xf32> to vector<8x128xf32>
    %264 = arith.addf %262, %263 : vector<8x128xf32>
    %265 = arith.mulf %252, %264 : vector<8x128xf32>
    %266 = arith.addf %261, %265 : vector<8x128xf32>
    %267 = math.tanh %266 : vector<8x128xf32>
    %cst_66 = arith.constant 1.000000e+00 : f32
    %268 = vector.broadcast %cst_66 : f32 to vector<8x128xf32>
    %269 = arith.subf %268, %260 : vector<8x128xf32>
    %270 = arith.mulf %269, %267 : vector<8x128xf32>
    %271 = arith.mulf %260, %214 : vector<8x128xf32>
    %272 = arith.addf %270, %271 : vector<8x128xf32>
    %cst_67 = arith.constant dense<0.000000e+00> : vector<8x128xf32>
    %273 = tpu.matmul %272, %4, %cst_67 {dimension_numbers = #tpu.dot_dimension_numbers<[1], [0], [0], [1], [0, 0, 1, 1], [], []>} : vector<8x128xf32>, vector<128x128xf32>, vector<8x128xf32> -> vector<8x128xf32>
    %274 = vector.broadcast %5 : vector<1x128xf32> to vector<8x128xf32>
    %275 = arith.addf %273, %274 : vector<8x128xf32>
    %cst_68 = arith.constant dense<0xFF800000> : vector<8xf32>
    %276 = vector.multi_reduction <maximumf>, %275, %cst_68 [1] : vector<8x128xf32> to vector<8xf32>
    %277 = vector.shape_cast %276 : vector<8xf32> to vector<8x1xf32>
    %278 = vector.broadcast %277 : vector<8x1xf32> to vector<8x128xf32>
    %279 = arith.cmpf oeq, %275, %278 : vector<8x128xf32>
    %c128_i32_69 = arith.constant 128 : i32
    %280 = vector.broadcast %c128_i32_69 : i32 to vector<8x128xi32>
    %281 = arith.select %279, %6, %280 : vector<8x128xi1>, vector<8x128xi32>
    %cst_70 = arith.constant dense<2147483647> : vector<8xi32>
    %282 = vector.multi_reduction <minsi>, %281, %cst_70 [1] : vector<8x128xi32> to vector<8xi32>
    %283 = vector.shape_cast %282 : vector<8xi32> to vector<8x1xi32>
    %284 = vector.broadcast %283 : vector<8x1xi32> to vector<8x128xi32>
    %285 = arith.cmpi eq, %6, %284 : vector<8x128xi32>
    %286 = arith.extui %285 : vector<8x128xi1> to vector<8x128xi32>
    %287 = arith.sitofp %286 : vector<8x128xi32> to vector<8x128xf32>
    %cst_71 = arith.constant dense<0xFF800000> : vector<8xf32>
    %288 = vector.multi_reduction <maximumf>, %275, %cst_71 [1] : vector<8x128xf32> to vector<8xf32>
    %289 = vector.shape_cast %288 : vector<8xf32> to vector<8x1xf32>
    %290 = vector.broadcast %289 : vector<8x1xf32> to vector<8x128xf32>
    %291 = arith.subf %275, %290 : vector<8x128xf32>
    %292 = math.exp %291 : vector<8x128xf32>
    %cst_72 = arith.constant dense<0.000000e+00> : vector<8xf32>
    %293 = vector.multi_reduction <add>, %292, %cst_72 [1] : vector<8x128xf32> to vector<8xf32>
    %294 = vector.shape_cast %293 : vector<8xf32> to vector<8x1xf32>
    %295 = math.log %294 : vector<8x1xf32>
    %296 = vector.broadcast %295 : vector<8x1xf32> to vector<8x128xf32>
    %297 = arith.subf %291, %296 : vector<8x128xf32>
    %c4 = arith.constant 4 : index
    %c0_73 = arith.constant 0 : index
    %c0_74 = arith.constant 0 : index
    %298 = vector.load %arg7[%c4, %c0_73, %c0_74] : memref<8x8x128xf32, #tpu.memory_space<vmem>>, vector<1x8x128xf32>
    %299 = vector.shape_cast %298 : vector<1x8x128xf32> to vector<8x128xf32>
    %300 = vector.shape_cast %297 : vector<8x128xf32> to vector<1x8x128xf32>
    tpu.vector_store %arg7[%c4, %c0_73, %c0_74], %300 {strides = array<i32>} : memref<8x8x128xf32, #tpu.memory_space<vmem>>, vector<1x8x128xf32>,
    %cst_75 = arith.constant dense<0.000000e+00> : vector<8x384xf32>
    %301 = tpu.matmul %287, %1, %cst_75 {dimension_numbers = #tpu.dot_dimension_numbers<[1], [0], [0], [1], [0, 0, 1, 1], [], []>} : vector<8x128xf32>, vector<128x384xf32>, vector<8x384xf32> -> vector<8x384xf32>
    %cst_76 = arith.constant dense<0.000000e+00> : vector<8x384xf32>
    %302 = tpu.matmul %272, %2, %cst_76 {dimension_numbers = #tpu.dot_dimension_numbers<[1], [0], [0], [1], [0, 0, 1, 1], [], []>} : vector<8x128xf32>, vector<128x384xf32>, vector<8x384xf32> -> vector<8x384xf32>
    %303 = vector.extract_strided_slice %301 {offsets = [0, 0], sizes = [8, 128], strides = [1, 1]} : vector<8x384xf32> to vector<8x128xf32>
    %304 = vector.extract_strided_slice %302 {offsets = [0, 0], sizes = [8, 128], strides = [1, 1]} : vector<8x384xf32> to vector<8x128xf32>
    %305 = arith.addf %303, %304 : vector<8x128xf32>
    %306 = arith.negf %305 : vector<8x128xf32>
    %307 = math.exp %306 : vector<8x128xf32>
    %cst_77 = arith.constant 1.000000e+00 : f32
    %308 = vector.broadcast %cst_77 : f32 to vector<8x128xf32>
    %309 = arith.addf %308, %307 : vector<8x128xf32>
    %310 = arith.divf %308, %309 : vector<8x128xf32>
    %311 = vector.extract_strided_slice %301 {offsets = [0, 128], sizes = [8, 128], strides = [1, 1]} : vector<8x384xf32> to vector<8x128xf32>
    %312 = vector.extract_strided_slice %302 {offsets = [0, 128], sizes = [8, 128], strides = [1, 1]} : vector<8x384xf32> to vector<8x128xf32>
    %313 = arith.addf %311, %312 : vector<8x128xf32>
    %314 = arith.negf %313 : vector<8x128xf32>
    %315 = math.exp %314 : vector<8x128xf32>
    %cst_78 = arith.constant 1.000000e+00 : f32
    %316 = vector.broadcast %cst_78 : f32 to vector<8x128xf32>
    %317 = arith.addf %316, %315 : vector<8x128xf32>
    %318 = arith.divf %316, %317 : vector<8x128xf32>
    %319 = vector.extract_strided_slice %301 {offsets = [0, 256], sizes = [8, 128], strides = [1, 1]} : vector<8x384xf32> to vector<8x128xf32>
    %320 = vector.extract_strided_slice %302 {offsets = [0, 256], sizes = [8, 128], strides = [1, 1]} : vector<8x384xf32> to vector<8x128xf32>
    %321 = vector.broadcast %3 : vector<1x128xf32> to vector<8x128xf32>
    %322 = arith.addf %320, %321 : vector<8x128xf32>
    %323 = arith.mulf %310, %322 : vector<8x128xf32>
    %324 = arith.addf %319, %323 : vector<8x128xf32>
    %325 = math.tanh %324 : vector<8x128xf32>
    %cst_79 = arith.constant 1.000000e+00 : f32
    %326 = vector.broadcast %cst_79 : f32 to vector<8x128xf32>
    %327 = arith.subf %326, %318 : vector<8x128xf32>
    %328 = arith.mulf %327, %325 : vector<8x128xf32>
    %329 = arith.mulf %318, %272 : vector<8x128xf32>
    %330 = arith.addf %328, %329 : vector<8x128xf32>
    %cst_80 = arith.constant dense<0.000000e+00> : vector<8x128xf32>
    %331 = tpu.matmul %330, %4, %cst_80 {dimension_numbers = #tpu.dot_dimension_numbers<[1], [0], [0], [1], [0, 0, 1, 1], [], []>} : vector<8x128xf32>, vector<128x128xf32>, vector<8x128xf32> -> vector<8x128xf32>
    %332 = vector.broadcast %5 : vector<1x128xf32> to vector<8x128xf32>
    %333 = arith.addf %331, %332 : vector<8x128xf32>
    %cst_81 = arith.constant dense<0xFF800000> : vector<8xf32>
    %334 = vector.multi_reduction <maximumf>, %333, %cst_81 [1] : vector<8x128xf32> to vector<8xf32>
    %335 = vector.shape_cast %334 : vector<8xf32> to vector<8x1xf32>
    %336 = vector.broadcast %335 : vector<8x1xf32> to vector<8x128xf32>
    %337 = arith.cmpf oeq, %333, %336 : vector<8x128xf32>
    %c128_i32_82 = arith.constant 128 : i32
    %338 = vector.broadcast %c128_i32_82 : i32 to vector<8x128xi32>
    %339 = arith.select %337, %6, %338 : vector<8x128xi1>, vector<8x128xi32>
    %cst_83 = arith.constant dense<2147483647> : vector<8xi32>
    %340 = vector.multi_reduction <minsi>, %339, %cst_83 [1] : vector<8x128xi32> to vector<8xi32>
    %341 = vector.shape_cast %340 : vector<8xi32> to vector<8x1xi32>
    %342 = vector.broadcast %341 : vector<8x1xi32> to vector<8x128xi32>
    %343 = arith.cmpi eq, %6, %342 : vector<8x128xi32>
    %344 = arith.extui %343 : vector<8x128xi1> to vector<8x128xi32>
    %345 = arith.sitofp %344 : vector<8x128xi32> to vector<8x128xf32>
    %cst_84 = arith.constant dense<0xFF800000> : vector<8xf32>
    %346 = vector.multi_reduction <maximumf>, %333, %cst_84 [1] : vector<8x128xf32> to vector<8xf32>
    %347 = vector.shape_cast %346 : vector<8xf32> to vector<8x1xf32>
    %348 = vector.broadcast %347 : vector<8x1xf32> to vector<8x128xf32>
    %349 = arith.subf %333, %348 : vector<8x128xf32>
    %350 = math.exp %349 : vector<8x128xf32>
    %cst_85 = arith.constant dense<0.000000e+00> : vector<8xf32>
    %351 = vector.multi_reduction <add>, %350, %cst_85 [1] : vector<8x128xf32> to vector<8xf32>
    %352 = vector.shape_cast %351 : vector<8xf32> to vector<8x1xf32>
    %353 = math.log %352 : vector<8x1xf32>
    %354 = vector.broadcast %353 : vector<8x1xf32> to vector<8x128xf32>
    %355 = arith.subf %349, %354 : vector<8x128xf32>
    %c5 = arith.constant 5 : index
    %c0_86 = arith.constant 0 : index
    %c0_87 = arith.constant 0 : index
    %356 = vector.load %arg7[%c5, %c0_86, %c0_87] : memref<8x8x128xf32, #tpu.memory_space<vmem>>, vector<1x8x128xf32>
    %357 = vector.shape_cast %356 : vector<1x8x128xf32> to vector<8x128xf32>
    %358 = vector.shape_cast %355 : vector<8x128xf32> to vector<1x8x128xf32>
    tpu.vector_store %arg7[%c5, %c0_86, %c0_87], %358 {strides = array<i32>} : memref<8x8x128xf32, #tpu.memory_space<vmem>>, vector<1x8x128xf32>,
    %cst_88 = arith.constant dense<0.000000e+00> : vector<8x384xf32>
    %359 = tpu.matmul %345, %1, %cst_88 {dimension_numbers = #tpu.dot_dimension_numbers<[1], [0], [0], [1], [0, 0, 1, 1], [], []>} : vector<8x128xf32>, vector<128x384xf32>, vector<8x384xf32> -> vector<8x384xf32>
    %cst_89 = arith.constant dense<0.000000e+00> : vector<8x384xf32>
    %360 = tpu.matmul %330, %2, %cst_89 {dimension_numbers = #tpu.dot_dimension_numbers<[1], [0], [0], [1], [0, 0, 1, 1], [], []>} : vector<8x128xf32>, vector<128x384xf32>, vector<8x384xf32> -> vector<8x384xf32>
    %361 = vector.extract_strided_slice %359 {offsets = [0, 0], sizes = [8, 128], strides = [1, 1]} : vector<8x384xf32> to vector<8x128xf32>
    %362 = vector.extract_strided_slice %360 {offsets = [0, 0], sizes = [8, 128], strides = [1, 1]} : vector<8x384xf32> to vector<8x128xf32>
    %363 = arith.addf %361, %362 : vector<8x128xf32>
    %364 = arith.negf %363 : vector<8x128xf32>
    %365 = math.exp %364 : vector<8x128xf32>
    %cst_90 = arith.constant 1.000000e+00 : f32
    %366 = vector.broadcast %cst_90 : f32 to vector<8x128xf32>
    %367 = arith.addf %366, %365 : vector<8x128xf32>
    %368 = arith.divf %366, %367 : vector<8x128xf32>
    %369 = vector.extract_strided_slice %359 {offsets = [0, 128], sizes = [8, 128], strides = [1, 1]} : vector<8x384xf32> to vector<8x128xf32>
    %370 = vector.extract_strided_slice %360 {offsets = [0, 128], sizes = [8, 128], strides = [1, 1]} : vector<8x384xf32> to vector<8x128xf32>
    %371 = arith.addf %369, %370 : vector<8x128xf32>
    %372 = arith.negf %371 : vector<8x128xf32>
    %373 = math.exp %372 : vector<8x128xf32>
    %cst_91 = arith.constant 1.000000e+00 : f32
    %374 = vector.broadcast %cst_91 : f32 to vector<8x128xf32>
    %375 = arith.addf %374, %373 : vector<8x128xf32>
    %376 = arith.divf %374, %375 : vector<8x128xf32>
    %377 = vector.extract_strided_slice %359 {offsets = [0, 256], sizes = [8, 128], strides = [1, 1]} : vector<8x384xf32> to vector<8x128xf32>
    %378 = vector.extract_strided_slice %360 {offsets = [0, 256], sizes = [8, 128], strides = [1, 1]} : vector<8x384xf32> to vector<8x128xf32>
    %379 = vector.broadcast %3 : vector<1x128xf32> to vector<8x128xf32>
    %380 = arith.addf %378, %379 : vector<8x128xf32>
    %381 = arith.mulf %368, %380 : vector<8x128xf32>
    %382 = arith.addf %377, %381 : vector<8x128xf32>
    %383 = math.tanh %382 : vector<8x128xf32>
    %cst_92 = arith.constant 1.000000e+00 : f32
    %384 = vector.broadcast %cst_92 : f32 to vector<8x128xf32>
    %385 = arith.subf %384, %376 : vector<8x128xf32>
    %386 = arith.mulf %385, %383 : vector<8x128xf32>
    %387 = arith.mulf %376, %330 : vector<8x128xf32>
    %388 = arith.addf %386, %387 : vector<8x128xf32>
    %cst_93 = arith.constant dense<0.000000e+00> : vector<8x128xf32>
    %389 = tpu.matmul %388, %4, %cst_93 {dimension_numbers = #tpu.dot_dimension_numbers<[1], [0], [0], [1], [0, 0, 1, 1], [], []>} : vector<8x128xf32>, vector<128x128xf32>, vector<8x128xf32> -> vector<8x128xf32>
    %390 = vector.broadcast %5 : vector<1x128xf32> to vector<8x128xf32>
    %391 = arith.addf %389, %390 : vector<8x128xf32>
    %cst_94 = arith.constant dense<0xFF800000> : vector<8xf32>
    %392 = vector.multi_reduction <maximumf>, %391, %cst_94 [1] : vector<8x128xf32> to vector<8xf32>
    %393 = vector.shape_cast %392 : vector<8xf32> to vector<8x1xf32>
    %394 = vector.broadcast %393 : vector<8x1xf32> to vector<8x128xf32>
    %395 = arith.cmpf oeq, %391, %394 : vector<8x128xf32>
    %c128_i32_95 = arith.constant 128 : i32
    %396 = vector.broadcast %c128_i32_95 : i32 to vector<8x128xi32>
    %397 = arith.select %395, %6, %396 : vector<8x128xi1>, vector<8x128xi32>
    %cst_96 = arith.constant dense<2147483647> : vector<8xi32>
    %398 = vector.multi_reduction <minsi>, %397, %cst_96 [1] : vector<8x128xi32> to vector<8xi32>
    %399 = vector.shape_cast %398 : vector<8xi32> to vector<8x1xi32>
    %400 = vector.broadcast %399 : vector<8x1xi32> to vector<8x128xi32>
    %401 = arith.cmpi eq, %6, %400 : vector<8x128xi32>
    %402 = arith.extui %401 : vector<8x128xi1> to vector<8x128xi32>
    %403 = arith.sitofp %402 : vector<8x128xi32> to vector<8x128xf32>
    %cst_97 = arith.constant dense<0xFF800000> : vector<8xf32>
    %404 = vector.multi_reduction <maximumf>, %391, %cst_97 [1] : vector<8x128xf32> to vector<8xf32>
    %405 = vector.shape_cast %404 : vector<8xf32> to vector<8x1xf32>
    %406 = vector.broadcast %405 : vector<8x1xf32> to vector<8x128xf32>
    %407 = arith.subf %391, %406 : vector<8x128xf32>
    %408 = math.exp %407 : vector<8x128xf32>
    %cst_98 = arith.constant dense<0.000000e+00> : vector<8xf32>
    %409 = vector.multi_reduction <add>, %408, %cst_98 [1] : vector<8x128xf32> to vector<8xf32>
    %410 = vector.shape_cast %409 : vector<8xf32> to vector<8x1xf32>
    %411 = math.log %410 : vector<8x1xf32>
    %412 = vector.broadcast %411 : vector<8x1xf32> to vector<8x128xf32>
    %413 = arith.subf %407, %412 : vector<8x128xf32>
    %c6 = arith.constant 6 : index
    %c0_99 = arith.constant 0 : index
    %c0_100 = arith.constant 0 : index
    %414 = vector.load %arg7[%c6, %c0_99, %c0_100] : memref<8x8x128xf32, #tpu.memory_space<vmem>>, vector<1x8x128xf32>
    %415 = vector.shape_cast %414 : vector<1x8x128xf32> to vector<8x128xf32>
    %416 = vector.shape_cast %413 : vector<8x128xf32> to vector<1x8x128xf32>
    tpu.vector_store %arg7[%c6, %c0_99, %c0_100], %416 {strides = array<i32>} : memref<8x8x128xf32, #tpu.memory_space<vmem>>, vector<1x8x128xf32>,
    %cst_101 = arith.constant dense<0.000000e+00> : vector<8x384xf32>
    %417 = tpu.matmul %403, %1, %cst_101 {dimension_numbers = #tpu.dot_dimension_numbers<[1], [0], [0], [1], [0, 0, 1, 1], [], []>} : vector<8x128xf32>, vector<128x384xf32>, vector<8x384xf32> -> vector<8x384xf32>
    %cst_102 = arith.constant dense<0.000000e+00> : vector<8x384xf32>
    %418 = tpu.matmul %388, %2, %cst_102 {dimension_numbers = #tpu.dot_dimension_numbers<[1], [0], [0], [1], [0, 0, 1, 1], [], []>} : vector<8x128xf32>, vector<128x384xf32>, vector<8x384xf32> -> vector<8x384xf32>
    %419 = vector.extract_strided_slice %417 {offsets = [0, 0], sizes = [8, 128], strides = [1, 1]} : vector<8x384xf32> to vector<8x128xf32>
    %420 = vector.extract_strided_slice %418 {offsets = [0, 0], sizes = [8, 128], strides = [1, 1]} : vector<8x384xf32> to vector<8x128xf32>
    %421 = arith.addf %419, %420 : vector<8x128xf32>
    %422 = arith.negf %421 : vector<8x128xf32>
    %423 = math.exp %422 : vector<8x128xf32>
    %cst_103 = arith.constant 1.000000e+00 : f32
    %424 = vector.broadcast %cst_103 : f32 to vector<8x128xf32>
    %425 = arith.addf %424, %423 : vector<8x128xf32>
    %426 = arith.divf %424, %425 : vector<8x128xf32>
    %427 = vector.extract_strided_slice %417 {offsets = [0, 128], sizes = [8, 128], strides = [1, 1]} : vector<8x384xf32> to vector<8x128xf32>
    %428 = vector.extract_strided_slice %418 {offsets = [0, 128], sizes = [8, 128], strides = [1, 1]} : vector<8x384xf32> to vector<8x128xf32>
    %429 = arith.addf %427, %428 : vector<8x128xf32>
    %430 = arith.negf %429 : vector<8x128xf32>
    %431 = math.exp %430 : vector<8x128xf32>
    %cst_104 = arith.constant 1.000000e+00 : f32
    %432 = vector.broadcast %cst_104 : f32 to vector<8x128xf32>
    %433 = arith.addf %432, %431 : vector<8x128xf32>
    %434 = arith.divf %432, %433 : vector<8x128xf32>
    %435 = vector.extract_strided_slice %417 {offsets = [0, 256], sizes = [8, 128], strides = [1, 1]} : vector<8x384xf32> to vector<8x128xf32>
    %436 = vector.extract_strided_slice %418 {offsets = [0, 256], sizes = [8, 128], strides = [1, 1]} : vector<8x384xf32> to vector<8x128xf32>
    %437 = vector.broadcast %3 : vector<1x128xf32> to vector<8x128xf32>
    %438 = arith.addf %436, %437 : vector<8x128xf32>
    %439 = arith.mulf %426, %438 : vector<8x128xf32>
    %440 = arith.addf %435, %439 : vector<8x128xf32>
    %441 = math.tanh %440 : vector<8x128xf32>
    %cst_105 = arith.constant 1.000000e+00 : f32
    %442 = vector.broadcast %cst_105 : f32 to vector<8x128xf32>
    %443 = arith.subf %442, %434 : vector<8x128xf32>
    %444 = arith.mulf %443, %441 : vector<8x128xf32>
    %445 = arith.mulf %434, %388 : vector<8x128xf32>
    %446 = arith.addf %444, %445 : vector<8x128xf32>
    %cst_106 = arith.constant dense<0.000000e+00> : vector<8x128xf32>
    %447 = tpu.matmul %446, %4, %cst_106 {dimension_numbers = #tpu.dot_dimension_numbers<[1], [0], [0], [1], [0, 0, 1, 1], [], []>} : vector<8x128xf32>, vector<128x128xf32>, vector<8x128xf32> -> vector<8x128xf32>
    %448 = vector.broadcast %5 : vector<1x128xf32> to vector<8x128xf32>
    %449 = arith.addf %447, %448 : vector<8x128xf32>
    %cst_107 = arith.constant dense<0xFF800000> : vector<8xf32>
    %450 = vector.multi_reduction <maximumf>, %449, %cst_107 [1] : vector<8x128xf32> to vector<8xf32>
    %451 = vector.shape_cast %450 : vector<8xf32> to vector<8x1xf32>
    %452 = vector.broadcast %451 : vector<8x1xf32> to vector<8x128xf32>
    %453 = arith.subf %449, %452 : vector<8x128xf32>
    %454 = math.exp %453 : vector<8x128xf32>
    %cst_108 = arith.constant dense<0.000000e+00> : vector<8xf32>
    %455 = vector.multi_reduction <add>, %454, %cst_108 [1] : vector<8x128xf32> to vector<8xf32>
    %456 = vector.shape_cast %455 : vector<8xf32> to vector<8x1xf32>
    %457 = math.log %456 : vector<8x1xf32>
    %458 = vector.broadcast %457 : vector<8x1xf32> to vector<8x128xf32>
    %459 = arith.subf %453, %458 : vector<8x128xf32>
    %c7 = arith.constant 7 : index
    %c0_109 = arith.constant 0 : index
    %c0_110 = arith.constant 0 : index
    %460 = vector.load %arg7[%c7, %c0_109, %c0_110] : memref<8x8x128xf32, #tpu.memory_space<vmem>>, vector<1x8x128xf32>
    %461 = vector.shape_cast %460 : vector<1x8x128xf32> to vector<8x128xf32>
    %462 = vector.shape_cast %459 : vector<8x128xf32> to vector<1x8x128xf32>
    tpu.vector_store %arg7[%c7, %c0_109, %c0_110], %462 {strides = array<i32>} : memref<8x8x128xf32, #tpu.memory_space<vmem>>, vector<1x8x128xf32>,
    %c0_111 = arith.constant 0 : index
    %c0_112 = arith.constant 0 : index
    %463 = vector.load %arg8[%c0_111, %c0_112] : memref<8x128xf32, #tpu.memory_space<vmem>>, vector<8x128xf32>
    tpu.vector_store %arg8[%c0_111, %c0_112], %446 {strides = array<i32>} : memref<8x128xf32, #tpu.memory_space<vmem>>, vector<8x128xf32>,
    return
  }
  func.func @transform_0(%arg0: i32) -> (i32, i32) {
    %c0_i32 = arith.constant 0 : i32
    %c0_i32_0 = arith.constant 0 : i32
    %c0_i32_1 = arith.constant 0 : i32
    return %c0_i32, %c0_i32_0 : i32, i32
  }
  func.func @transform_1(%arg0: i32) -> (i32, i32) {
    %c0_i32 = arith.constant 0 : i32
    %c0_i32_0 = arith.constant 0 : i32
    %c0_i32_1 = arith.constant 0 : i32
    return %c0_i32, %c0_i32_0 : i32, i32
  }
  func.func @transform_2(%arg0: i32) -> (i32, i32) {
    %c0_i32 = arith.constant 0 : i32
    %c0_i32_0 = arith.constant 0 : i32
    %c0_i32_1 = arith.constant 0 : i32
    return %c0_i32, %c0_i32_0 : i32, i32
  }
  func.func @transform_3(%arg0: i32) -> (i32, i32) {
    %c0_i32 = arith.constant 0 : i32
    %c0_i32_0 = arith.constant 0 : i32
    %c0_i32_1 = arith.constant 0 : i32
    return %c0_i32, %c0_i32_0 : i32, i32
  }
  func.func @transform_4(%arg0: i32) -> (i32, i32) {
    %c0_i32 = arith.constant 0 : i32
    %c0_i32_0 = arith.constant 0 : i32
    %c0_i32_1 = arith.constant 0 : i32
    return %c0_i32, %c0_i32_0 : i32, i32
  }
  func.func @transform_5(%arg0: i32) -> (i32, i32) {
    %c0_i32 = arith.constant 0 : i32
    %c0_i32_0 = arith.constant 0 : i32
    %c0_i32_1 = arith.constant 0 : i32
    return %c0_i32, %c0_i32_0 : i32, i32
  }
  func.func @transform_6(%arg0: i32) -> (i32, i32, i32) {
    %c0_i32 = arith.constant 0 : i32
    %c0_i32_0 = arith.constant 0 : i32
    %c0_i32_1 = arith.constant 0 : i32
    %c0_i32_2 = arith.constant 0 : i32
    return %c0_i32, %c0_i32_0, %c0_i32_1 : i32, i32, i32
  }
  func.func @transform_7(%arg0: i32) -> (i32, i32) {
    %c0_i32 = arith.constant 0 : i32
    %c0_i32_0 = arith.constant 0 : i32
    %c0_i32_1 = arith.constant 0 : i32
    return %c0_i32, %c0_i32_0 : i32, i32
  }
}

</mosaic_0001>

<llo_original>
// kernel: tpu_custom_call.1
$region0: #{tpu_custom_call.1}
  #allocation0 [shape = 'u32[]', space=smem, size = 0x4, offset = 0x4, fixed_abs, tag = 'smem constant byte address 0x4 - core index']
  #allocation1 [shape = 'u32[144,128]{1,0:T(1,128)}', space=vmem, size = 0x12000, scoped, tag = 'internal scratch']
  %s0 = inlined_call_operand.hbm [shape: f32[128,384], index: 0, kind: input, shape index: {}]
  %s1 = inlined_call_operand.hbm [shape: f32[128,384], index: 1, kind: input, shape index: {}]
  %s2 = inlined_call_operand.vmem [shape: f32[1,128], index: 2, kind: input, shape index: {}]
  %s3 = inlined_call_operand.hbm [shape: f32[128,128], index: 3, kind: input, shape index: {}]
  %s4 = inlined_call_operand.vmem [shape: f32[1,128], index: 4, kind: input, shape index: {}]
  %s5 = inlined_call_operand.vmem [shape: f32[8,128], index: 5, kind: input, shape index: {}]
  %s6 = inlined_call_operand.hbm [shape: f32[8,8,128], index: 6, kind: output, shape index: {0}]
  %s7 = inlined_call_operand.hbm [shape: f32[8,128], index: 7, kind: output, shape index: {1}]
  %8 = xla_tuple %s6, %s7
  %s9 = sld [smem:[#allocation0]]
  $region54: #{tpu_custom_call.1} parent=0
    _
  %s11 = ssub.s32 1, %s9
  %s12 = scalar_select 0, %s11, %s9
  $region1: #{tpu_custom_call.1} parent=0
    #allocation2 [shape = 'u8[196608]{0}', space=vmem, size = 0x30000, scoped, tag = 'input window, operand 0, single buffered']
    #allocation3 [shape = 's32[1]{0}', space=sflag, size = 0x4, scoped, tag = 'scoped memory for tpu_custom_call.1']
    #allocation4 [shape = 's32[1]{0}', space=sflag, size = 0x4, scoped, tag = 'scoped memory for tpu_custom_call.1']
    #allocation5 [shape = 'u8[196608]{0}', space=vmem, size = 0x30000, scoped, tag = 'input window, operand 1, single buffered']
    #allocation6 [shape = 's32[1]{0}', space=sflag, size = 0x4, scoped, tag = 'scoped memory for tpu_custom_call.1']
    #allocation7 [shape = 'u8[65536]{0}', space=vmem, size = 0x10000, scoped, tag = 'input window, operand 3, single buffered']
    #allocation8 [shape = 'u8[32768]{0}', space=vmem, size = 0x8000, scoped, tag = 'output window, operand 0, single buffered']
    #allocation9 [shape = 'u8[4096]{0}', space=vmem, size = 0x1000, scoped, tag = 'output window, operand 1, single buffered']
    #allocation10 [shape = 's32[1]{0}', space=sflag, size = 0x4, scoped, tag = 'scoped memory for tpu_custom_call.1']
    %13 = vsyncpa [#allocation3], 0
    %14 = vsyncpa [#allocation6], 0
    %15 = vsyncpa [#allocation4], 0
    %16 = vsyncpa [#allocation10], 0
    // Predicated region
    $region2: #{tpu_custom_call.1} parent=1 // pred_check
      _
    $region3: #{tpu_custom_call.1} parent=1 // pred_check_branch
      %18 = sbr.rel (0) target = $region5
    $region4: #{tpu_custom_call.1} parent=1 // pred_region
      %s20 = ssub.s32 6144, 6144
      %21 = vsyncadd [#allocation3], %s20
      %s22 = sshll.u32 [#allocation2], 4
      %s23 = int_to_ptr.vmem [resolvable:$true] %s22
      %28 = dma.hbm_to_vmem [thread:$0]  %s0, 6144, %s23, [#allocation3], 384, 384, 24
    $region5: #{tpu_custom_call.1} parent=1 // pred_fallthru
      _
    // Predicated region
    $region6: #{tpu_custom_call.1} parent=1 // pred_check
      _
    $region7: #{tpu_custom_call.1} parent=1 // pred_check_branch
      %30 = sbr.rel (0) target = $region9
    $region8: #{tpu_custom_call.1} parent=1 // pred_region
      %s32 = ssub.s32 6144, 6144
      %33 = vsyncadd [#allocation6], %s32
      %s34 = sshll.u32 [#allocation5], 4
      %s35 = int_to_ptr.vmem [resolvable:$true] %s34
      %40 = dma.hbm_to_vmem [thread:$0]  %s1, 6144, %s35, [#allocation6], 384, 384, 24
    $region9: #{tpu_custom_call.1} parent=1 // pred_fallthru
      _
    // Predicated region
    $region10: #{tpu_custom_call.1} parent=1 // pred_check
      _
    $region11: #{tpu_custom_call.1} parent=1 // pred_check_branch
      %42 = sbr.rel (0) target = $region13
    $region12: #{tpu_custom_call.1} parent=1 // pred_region
      _
    $region13: #{tpu_custom_call.1} parent=1 // pred_fallthru
      _
    // Predicated region
    $region14: #{tpu_custom_call.1} parent=1 // pred_check
      _
    $region15: #{tpu_custom_call.1} parent=1 // pred_check_branch
      %44 = sbr.rel (0) target = $region17
    $region16: #{tpu_custom_call.1} parent=1 // pred_region
      %s46 = ssub.s32 2048, 2048
      %47 = vsyncadd [#allocation6], %s46
      %s48 = sshll.u32 [#allocation7], 4
      %s49 = int_to_ptr.vmem [resolvable:$true] %s48
      %54 = dma.hbm_to_vmem [thread:$0]  %s3, 2048, %s49, [#allocation6], 128, 128, 8
    $region17: #{tpu_custom_call.1} parent=1 // pred_fallthru
      _
    // Predicated region
    $region18: #{tpu_custom_call.1} parent=1 // pred_check
      _
    $region19: #{tpu_custom_call.1} parent=1 // pred_check_branch
      %56 = sbr.rel (0) target = $region21
    $region20: #{tpu_custom_call.1} parent=1 // pred_region
      _
    $region21: #{tpu_custom_call.1} parent=1 // pred_fallthru
      _
    // Predicated region
    $region22: #{tpu_custom_call.1} parent=1 // pred_check
      _
    $region23: #{tpu_custom_call.1} parent=1 // pred_check_branch
      %58 = sbr.rel (0) target = $region25
    $region24: #{tpu_custom_call.1} parent=1 // pred_region
      _
    $region25: #{tpu_custom_call.1} parent=1 // pred_fallthru
      _
    // Predicated region
    $region26: #{tpu_custom_call.1} parent=1 // pred_check
      _
    $region27: #{tpu_custom_call.1} parent=1 // pred_check_branch
      %60 = sbr.rel (0) target = $region29
    $region28: #{tpu_custom_call.1} parent=1 // pred_region
      %61 = dma.done [#allocation3], 6144
    $region29: #{tpu_custom_call.1} parent=1 // pred_fallthru
      _
    // Predicated region
    $region30: #{tpu_custom_call.1} parent=1 // pred_check
      _
    $region31: #{tpu_custom_call.1} parent=1 // pred_check_branch
      %63 = sbr.rel (0) target = $region33
    $region32: #{tpu_custom_call.1} parent=1 // pred_region
      %64 = dma.done [#allocation6], 6144
    $region33: #{tpu_custom_call.1} parent=1 // pred_fallthru
      _
    // Predicated region
    $region34: #{tpu_custom_call.1} parent=1 // pred_check
      _
    $region35: #{tpu_custom_call.1} parent=1 // pred_check_branch
      %66 = sbr.rel (0) target = $region37
    $region36: #{tpu_custom_call.1} parent=1 // pred_region
      %67 = dma.done [#allocation6], 2048
    $region37: #{tpu_custom_call.1} parent=1 // pred_fallthru
      _
    %v68 = vld [vmem:[%s5] sm:$0xff]
    %v69 = vld [vmem:[#allocation2] sm:$0xff]
    %v70 = vld [vmem:[#allocation2 + $0x8] sm:$0xff]
    %v71 = vld [vmem:[#allocation2 + $0x10] sm:$0xff]
    %v72 = vld [vmem:[#allocation2 + $0x18] sm:$0xff]
    %v73 = vld [vmem:[#allocation2 + $0x20] sm:$0xff]
    %v74 = vld [vmem:[#allocation2 + $0x28] sm:$0xff]
    %v75 = vld [vmem:[#allocation2 + $0x30] sm:$0xff]
    %v76 = vld [vmem:[#allocation2 + $0x38] sm:$0xff]
    %v77 = vld [vmem:[#allocation2 + $0x40] sm:$0xff]
    %v78 = vld [vmem:[#allocation2 + $0x48] sm:$0xff]
    %v79 = vld [vmem:[#allocation2 + $0x50] sm:$0xff]
    %v80 = vld [vmem:[#allocation2 + $0x58] sm:$0xff]
    %v81 = vld [vmem:[#allocation2 + $0x60] sm:$0xff]
    %v82 = vld [vmem:[#allocation2 + $0x68] sm:$0xff]
    %v83 = vld [vmem:[#allocation2 + $0x70] sm:$0xff]
    %v84 = vld [vmem:[#allocation2 + $0x78] sm:$0xff]
    %v85 = vld [vmem:[#allocation2 + $0x80] sm:$0xff]
    %v86 = vld [vmem:[#allocation2 + $0x88] sm:$0xff]
    %v87 = vld [vmem:[#allocation2 + $0x90] sm:$0xff]
    %v88 = vld [vmem:[#allocation2 + $0x98] sm:$0xff]
    %v89 = vld [vmem:[#allocation2 + $0xa0] sm:$0xff]
    %v90 = vld [vmem:[#allocation2 + $0xa8] sm:$0xff]
    %v91 = vld [vmem:[#allocation2 + $0xb0] sm:$0xff]
    %v92 = vld [vmem:[#allocation2 + $0xb8] sm:$0xff]
    %v93 = vld [vmem:[#allocation2 + $0xc0] sm:$0xff]
    %v94 = vld [vmem:[#allocation2 + $0xc8] sm:$0xff]
    %v95 = vld [vmem:[#allocation2 + $0xd0] sm:$0xff]
    %v96 = vld [vmem:[#allocation2 + $0xd8] sm:$0xff]
    %v97 = vld [vmem:[#allocation2 + $0xe0] sm:$0xff]
    %v98 = vld [vmem:[#allocation2 + $0xe8] sm:$0xff]
    %v99 = vld [vmem:[#allocation2 + $0xf0] sm:$0xff]
    %v100 = vld [vmem:[#allocation2 + $0xf8] sm:$0xff]
    %v101 = vld [vmem:[#allocation2 + $0x100] sm:$0xff]
    %v102 = vld [vmem:[#allocation2 + $0x108] sm:$0xff]
    %v103 = vld [vmem:[#allocation2 + $0x110] sm:$0xff]
    %v104 = vld [vmem:[#allocation2 + $0x118] sm:$0xff]
    %v105 = vld [vmem:[#allocation2 + $0x120] sm:$0xff]
    %v106 = vld [vmem:[#allocation2 + $0x128] sm:$0xff]
    %v107 = vld [vmem:[#allocation2 + $0x130] sm:$0xff]
    %v108 = vld [vmem:[#allocation2 + $0x138] sm:$0xff]
    %v109 = vld [vmem:[#allocation2 + $0x140] sm:$0xff]
    %v110 = vld [vmem:[#allocation2 + $0x148] sm:$0xff]
    %v111 = vld [vmem:[#allocation2 + $0x150] sm:$0xff]
    %v112 = vld [vmem:[#allocation2 + $0x158] sm:$0xff]
    %v113 = vld [vmem:[#allocation2 + $0x160] sm:$0xff]
    %v114 = vld [vmem:[#allocation2 + $0x168] sm:$0xff]
    %v115 = vld [vmem:[#allocation2 + $0x170] sm:$0xff]
    %v116 = vld [vmem:[#allocation2 + $0x178] sm:$0xff]
    %v117 = vld [vmem:[#allocation5] sm:$0xff]
    %v118 = vld [vmem:[#allocation5 + $0x8] sm:$0xff]
    %v119 = vld [vmem:[#allocation5 + $0x10] sm:$0xff]
    %v120 = vld [vmem:[#allocation5 + $0x18] sm:$0xff]
    %v121 = vld [vmem:[#allocation5 + $0x20] sm:$0xff]
    %v122 = vld [vmem:[#allocation5 + $0x28] sm:$0xff]
    %v123 = vld [vmem:[#allocation5 + $0x30] sm:$0xff]
    %v124 = vld [vmem:[#allocation5 + $0x38] sm:$0xff]
    %v125 = vld [vmem:[#allocation5 + $0x40] sm:$0xff]
    %v126 = vld [vmem:[#allocation5 + $0x48] sm:$0xff]
    %v127 = vld [vmem:[#allocation5 + $0x50] sm:$0xff]
    %v128 = vld [vmem:[#allocation5 + $0x58] sm:$0xff]
    %v129 = vld [vmem:[#allocation5 + $0x60] sm:$0xff]
    %v130 = vld [vmem:[#allocation5 + $0x68] sm:$0xff]
    %v131 = vld [vmem:[#allocation5 + $0x70] sm:$0xff]
    %v132 = vld [vmem:[#allocation5 + $0x78] sm:$0xff]
    %v133 = vld [vmem:[#allocation5 + $0x80] sm:$0xff]
    %v134 = vld [vmem:[#allocation5 + $0x88] sm:$0xff]
    %v135 = vld [vmem:[#allocation5 + $0x90] sm:$0xff]
    %v136 = vld [vmem:[#allocation5 + $0x98] sm:$0xff]
    %v137 = vld [vmem:[#allocation5 + $0xa0] sm:$0xff]
    %v138 = vld [vmem:[#allocation5 + $0xa8] sm:$0xff]
    %v139 = vld [vmem:[#allocation5 + $0xb0] sm:$0xff]
    %v140 = vld [vmem:[#allocation5 + $0xb8] sm:$0xff]
    %v141 = vld [vmem:[#allocation5 + $0xc0] sm:$0xff]
    %v142 = vld [vmem:[#allocation5 + $0xc8] sm:$0xff]
    %v143 = vld [vmem:[#allocation5 + $0xd0] sm:$0xff]
    %v144 = vld [vmem:[#allocation5 + $0xd8] sm:$0xff]
    %v145 = vld [vmem:[#allocation5 + $0xe0] sm:$0xff]
    %v146 = vld [vmem:[#allocation5 + $0xe8] sm:$0xff]
    %v147 = vld [vmem:[#allocation5 + $0xf0] sm:$0xff]
    %v148 = vld [vmem:[#allocation5 + $0xf8] sm:$0xff]
    %v149 = vld [vmem:[#allocation5 + $0x100] sm:$0xff]
    %v150 = vld [vmem:[#allocation5 + $0x108] sm:$0xff]
    %v151 = vld [vmem:[#allocation5 + $0x110] sm:$0xff]
    %v152 = vld [vmem:[#allocation5 + $0x118] sm:$0xff]
    %v153 = vld [vmem:[#allocation5 + $0x120] sm:$0xff]
    %v154 = vld [vmem:[#allocation5 + $0x128] sm:$0xff]
    %v155 = vld [vmem:[#allocation5 + $0x130] sm:$0xff]
    %v156 = vld [vmem:[#allocation5 + $0x138] sm:$0xff]
    %v157 = vld [vmem:[#allocation5 + $0x140] sm:$0xff]
    %v158 = vld [vmem:[#allocation5 + $0x148] sm:$0xff]
    %v159 = vld [vmem:[#allocation5 + $0x150] sm:$0xff]
    %v160 = vld [vmem:[#allocation5 + $0x158] sm:$0xff]
    %v161 = vld [vmem:[#allocation5 + $0x160] sm:$0xff]
    %v162 = vld [vmem:[#allocation5 + $0x168] sm:$0xff]
    %v163 = vld [vmem:[#allocation5 + $0x170] sm:$0xff]
    %v164 = vld [vmem:[#allocation5 + $0x178] sm:$0xff]
    %v165 = vld [vmem:[%s2] sm:$0x1]
    %v166 = vld [vmem:[#allocation7] sm:$0xff]
    %v167 = vld [vmem:[#allocation7 + $0x8] sm:$0xff]
    %v168 = vld [vmem:[#allocation7 + $0x10] sm:$0xff]
    %v169 = vld [vmem:[#allocation7 + $0x18] sm:$0xff]
    %v170 = vld [vmem:[#allocation7 + $0x20] sm:$0xff]
    %v171 = vld [vmem:[#allocation7 + $0x28] sm:$0xff]
    %v172 = vld [vmem:[#allocation7 + $0x30] sm:$0xff]
    %v173 = vld [vmem:[#allocation7 + $0x38] sm:$0xff]
    %v174 = vld [vmem:[#allocation7 + $0x40] sm:$0xff]
    %v175 = vld [vmem:[#allocation7 + $0x48] sm:$0xff]
    %v176 = vld [vmem:[#allocation7 + $0x50] sm:$0xff]
    %v177 = vld [vmem:[#allocation7 + $0x58] sm:$0xff]
    %v178 = vld [vmem:[#allocation7 + $0x60] sm:$0xff]
    %v179 = vld [vmem:[#allocation7 + $0x68] sm:$0xff]
    %v180 = vld [vmem:[#allocation7 + $0x70] sm:$0xff]
    %v181 = vld [vmem:[#allocation7 + $0x78] sm:$0xff]
    %v182 = vld [vmem:[%s4] sm:$0x1]
    %v183 = vlaneseq
    %v184 = vand.u32 %v183, 127
    %vm185 = vcmp.eq.s32.totalorder %v184, 0
    %v186 = vsel %vm185, 1, 0
    %v187 = vcvt.s32.f32 %v186
    %188 = vmatprep.subr.mxu0 %v70
    %189 = vmatpush1.msra.mxu0 %v69
    %190 = vmatprep.subr.mxu0 %v73
    %191 = vmatpush1.msra.mxu0 %v72
    %192 = vmatprep.subr.mxu0 %v76
    %193 = vmatpush1.msra.mxu0 %v75
    %194 = vmatprep.subr.mxu0 %v79
    %195 = vmatpush1.msra.mxu0 %v78
    %196 = vmatprep.subr.mxu0 %v82
    %197 = vmatpush1.msra.mxu0 %v81
    %198 = vmatprep.subr.mxu0 %v85
    %199 = vmatpush1.msra.mxu0 %v84
    %200 = vmatprep.subr.mxu0 %v88
    %201 = vmatpush1.msra.mxu0 %v87
    %202 = vmatprep.subr.mxu0 %v91
    %203 = vmatpush1.msra.mxu0 %v90
    %204 = vmatprep.subr.mxu0 %v94
    %205 = vmatpush1.msra.mxu0 %v93
    %206 = vmatprep.subr.mxu0 %v97
    %207 = vmatpush1.msra.mxu0 %v96
    %208 = vmatprep.subr.mxu0 %v100
    %209 = vmatpush1.msra.mxu0 %v99
    %210 = vmatprep.subr.mxu0 %v103
    %211 = vmatpush1.msra.mxu0 %v102
    %212 = vmatprep.subr.mxu0 %v106
    %213 = vmatpush1.msra.mxu0 %v105
    %214 = vmatprep.subr.mxu0 %v109
    %215 = vmatpush1.msra.mxu0 %v108
    %216 = vmatprep.subr.mxu0 %v112
    %217 = vmatpush1.msra.mxu0 %v111
    %218 = vmatprep.subr.mxu0 %v115
    %219 = vmatpush1.msra.mxu0 %v114
    %220 = vmatprep.subr.mxu0 0.0
    %221 = vmatpush1.msra.mxu0 0.0
    %222 = vmatprep.subr.mxu0 0.0
    %223 = vmatpush1.msra.mxu0 0.0
    %224 = vmatprep.subr.mxu0 0.0
    %225 = vmatpush1.msra.mxu0 0.0
    %226 = vmatprep.subr.mxu0 0.0
    %227 = vmatpush1.msra.mxu0 0.0
    %228 = vmatprep.subr.mxu0 0.0
    %229 = vmatpush1.msra.mxu0 0.0
    %230 = vmatprep.subr.mxu0 0.0
    %231 = vmatpush1.msra.mxu0 0.0
    %232 = vmatprep.subr.mxu0 0.0
    %233 = vmatpush1.msra.mxu0 0.0
    %234 = vmatprep.subr.mxu0 0.0
    %235 = vmatpush1.msra.mxu0 0.0
    %236 = vmatprep.subr.mxu0 0.0
    %237 = vmatpush1.msra.mxu0 0.0
    %238 = vmatprep.subr.mxu0 0.0
    %239 = vmatpush1.msra.mxu0 0.0
    %240 = vmatprep.subr.mxu0 0.0
    %241 = vmatpush1.msra.mxu0 0.0
    %242 = vmatprep.subr.mxu0 0.0
    %243 = vmatpush1.msra.mxu0 0.0
    %244 = vmatprep.subr.mxu0 0.0
    %245 = vmatpush1.msra.mxu0 0.0
    %246 = vmatprep.subr.mxu0 0.0
    %247 = vmatpush1.msra.mxu0 0.0
    %248 = vmatprep.subr.mxu0 0.0
    %249 = vmatpush1.msra.mxu0 0.0
    %250 = vmatprep.subr.mxu0 0.0
    %251 = vmatpush1.msra.mxu0 0.0
    %252 = vmatprep.mubr.f32.mxu0 0.0
    %253 = vmatmul.mubr.f32.gmra.mrb[0].mxu0 %v187
    %v254 = vpop.f32.mrb[0].mxu0
    %v255 = vadd.f32 0.0, %v254
    %v256 = vpop.f32.mrb[0].mxu0
    %v257 = vadd.f32 0.0, %v256
    %258 = vdwg.mxu0
    %259 = vmatprep.subr.mxu0 0.0
    %260 = vmatpush1.msra.mxu0 %v71
    %261 = vmatprep.subr.mxu0 0.0
    %262 = vmatpush1.msra.mxu0 %v74
    %263 = vmatprep.subr.mxu0 0.0
    %264 = vmatpush1.msra.mxu0 %v77
    %265 = vmatprep.subr.mxu0 0.0
    %266 = vmatpush1.msra.mxu0 %v80
    %267 = vmatprep.subr.mxu0 0.0
    %268 = vmatpush1.msra.mxu0 %v83
    %269 = vmatprep.subr.mxu0 0.0
    %270 = vmatpush1.msra.mxu0 %v86
    %271 = vmatprep.subr.mxu0 0.0
    %272 = vmatpush1.msra.mxu0 %v89
    %273 = vmatprep.subr.mxu0 0.0
    %274 = vmatpush1.msra.mxu0 %v92
    %275 = vmatprep.subr.mxu0 0.0
    %276 = vmatpush1.msra.mxu0 %v95
    %277 = vmatprep.subr.mxu0 0.0
    %278 = vmatpush1.msra.mxu0 %v98
    %279 = vmatprep.subr.mxu0 0.0
    %280 = vmatpush1.msra.mxu0 %v101
    %281 = vmatprep.subr.mxu0 0.0
    %282 = vmatpush1.msra.mxu0 %v104
    %283 = vmatprep.subr.mxu0 0.0
    %284 = vmatpush1.msra.mxu0 %v107
    %285 = vmatprep.subr.mxu0 0.0
    %286 = vmatpush1.msra.mxu0 %v110
    %287 = vmatprep.subr.mxu0 0.0
    %288 = vmatpush1.msra.mxu0 %v113
    %289 = vmatprep.subr.mxu0 0.0
    %290 = vmatpush1.msra.mxu0 %v116
    %291 = vmatprep.subr.mxu0 0.0
    %292 = vmatpush1.msra.mxu0 0.0
    %293 = vmatprep.subr.mxu0 0.0
    %294 = vmatpush1.msra.mxu0 0.0
    %295 = vmatprep.subr.mxu0 0.0
    %296 = vmatpush1.msra.mxu0 0.0
    %297 = vmatprep.subr.mxu0 0.0
    %298 = vmatpush1.msra.mxu0 0.0
    %299 = vmatprep.subr.mxu0 0.0
    %300 = vmatpush1.msra.mxu0 0.0
    %301 = vmatprep.subr.mxu0 0.0
    %302 = vmatpush1.msra.mxu0 0.0
    %303 = vmatprep.subr.mxu0 0.0
    %304 = vmatpush1.msra.mxu0 0.0
    %305 = vmatprep.subr.mxu0 0.0
    %306 = vmatpush1.msra.mxu0 0.0
    %307 = vmatprep.subr.mxu0 0.0
    %308 = vmatpush1.msra.mxu0 0.0
    %309 = vmatprep.subr.mxu0 0.0
    %310 = vmatpush1.msra.mxu0 0.0
    %311 = vmatprep.subr.mxu0 0.0
    %312 = vmatpush1.msra.mxu0 0.0
    %313 = vmatprep.subr.mxu0 0.0
    %314 = vmatpush1.msra.mxu0 0.0
    %315 = vmatprep.subr.mxu0 0.0
    %316 = vmatpush1.msra.mxu0 0.0
    %317 = vmatprep.subr.mxu0 0.0
    %318 = vmatpush1.msra.mxu0 0.0
    %319 = vmatprep.subr.mxu0 0.0
    %320 = vmatpush1.msra.mxu0 0.0
    %321 = vmatprep.subr.mxu0 0.0
    %322 = vmatpush1.msra.mxu0 0.0
    %323 = vmatprep.mubr.f32.mxu0 0.0
    %324 = vmatmul.mubr.f32.gmra.mrb[0].mxu0 %v187
    %v325 = vpop.f32.mrb[0].mxu0
    %v326 = vadd.f32 0.0, %v325
    %v327 = vpop.f32.mrb[0].mxu0
    %328 = vdwg.mxu0
    %329 = vmatprep.subr.mxu0 %v118
    %330 = vmatpush1.msra.mxu0 %v117
    %331 = vmatprep.subr.mxu0 %v121
    %332 = vmatpush1.msra.mxu0 %v120
    %333 = vmatprep.subr.mxu0 %v124
    %334 = vmatpush1.msra.mxu0 %v123
    %335 = vmatprep.subr.mxu0 %v127
    %336 = vmatpush1.msra.mxu0 %v126
    %337 = vmatprep.subr.mxu0 %v130
    %338 = vmatpush1.msra.mxu0 %v129
    %339 = vmatprep.subr.mxu0 %v133
    %340 = vmatpush1.msra.mxu0 %v132
    %341 = vmatprep.subr.mxu0 %v136
    %342 = vmatpush1.msra.mxu0 %v135
    %343 = vmatprep.subr.mxu0 %v139
    %344 = vmatpush1.msra.mxu0 %v138
    %345 = vmatprep.subr.mxu0 %v142
    %346 = vmatpush1.msra.mxu0 %v141
    %347 = vmatprep.subr.mxu0 %v145
    %348 = vmatpush1.msra.mxu0 %v144
    %349 = vmatprep.subr.mxu0 %v148
    %350 = vmatpush1.msra.mxu0 %v147
    %351 = vmatprep.subr.mxu0 %v151
    %352 = vmatpush1.msra.mxu0 %v150
    %353 = vmatprep.subr.mxu0 %v154
    %354 = vmatpush1.msra.mxu0 %v153
    %355 = vmatprep.subr.mxu0 %v157
    %356 = vmatpush1.msra.mxu0 %v156
    %357 = vmatprep.subr.mxu0 %v160
    %358 = vmatpush1.msra.mxu0 %v159
    %359 = vmatprep.subr.mxu0 %v163
    %360 = vmatpush1.msra.mxu0 %v162
    %361 = vmatprep.subr.mxu0 0.0
    %362 = vmatpush1.msra.mxu0 0.0
    %363 = vmatprep.subr.mxu0 0.0
    %364 = vmatpush1.msra.mxu0 0.0
    %365 = vmatprep.subr.mxu0 0.0
    %366 = vmatpush1.msra.mxu0 0.0
    %367 = vmatprep.subr.mxu0 0.0
    %368 = vmatpush1.msra.mxu0 0.0
    %369 = vmatprep.subr.mxu0 0.0
    %370 = vmatpush1.msra.mxu0 0.0
    %371 = vmatprep.subr.mxu0 0.0
    %372 = vmatpush1.msra.mxu0 0.0
    %373 = vmatprep.subr.mxu0 0.0
    %374 = vmatpush1.msra.mxu0 0.0
    %375 = vmatprep.subr.mxu0 0.0
    %376 = vmatpush1.msra.mxu0 0.0
    %377 = vmatprep.subr.mxu0 0.0
    %378 = vmatpush1.msra.mxu0 0.0
    %379 = vmatprep.subr.mxu0 0.0
    %380 = vmatpush1.msra.mxu0 0.0
    %381 = vmatprep.subr.mxu0 0.0
    %382 = vmatpush1.msra.mxu0 0.0
    %383 = vmatprep.subr.mxu0 0.0
    %384 = vmatpush1.msra.mxu0 0.0
    %385 = vmatprep.subr.mxu0 0.0
    %386 = vmatpush1.msra.mxu0 0.0
    %387 = vmatprep.subr.mxu0 0.0
    %388 = vmatpush1.msra.mxu0 0.0
    %389 = vmatprep.subr.mxu0 0.0
    %390 = vmatpush1.msra.mxu0 0.0
    %391 = vmatprep.subr.mxu0 0.0
    %392 = vmatpush1.msra.mxu0 0.0
    %393 = vmatprep.mubr.f32.mxu0 0.0
    %394 = vmatmul.mubr.f32.gmra.mrb[0].mxu0 %v68
    %v395 = vpop.f32.mrb[0].mxu0
    %v396 = vadd.f32 0.0, %v395
    %v397 = vpop.f32.mrb[0].mxu0
    %v398 = vadd.f32 0.0, %v397
    %399 = vdwg.mxu0
    %400 = vmatprep.subr.mxu0 0.0
    %401 = vmatpush1.msra.mxu0 %v119
    %402 = vmatprep.subr.mxu0 0.0
    %403 = vmatpush1.msra.mxu0 %v122
    %404 = vmatprep.subr.mxu0 0.0
    %405 = vmatpush1.msra.mxu0 %v125
    %406 = vmatprep.subr.mxu0 0.0
    %407 = vmatpush1.msra.mxu0 %v128
    %408 = vmatprep.subr.mxu0 0.0
    %409 = vmatpush1.msra.mxu0 %v131
    %410 = vmatprep.subr.mxu0 0.0
    %411 = vmatpush1.msra.mxu0 %v134
    %412 = vmatprep.subr.mxu0 0.0
    %413 = vmatpush1.msra.mxu0 %v137
    %414 = vmatprep.subr.mxu0 0.0
    %415 = vmatpush1.msra.mxu0 %v140
    %416 = vmatprep.subr.mxu0 0.0
    %417 = vmatpush1.msra.mxu0 %v143
    %418 = vmatprep.subr.mxu0 0.0
    %419 = vmatpush1.msra.mxu0 %v146
    %420 = vmatprep.subr.mxu0 0.0
    %421 = vmatpush1.msra.mxu0 %v149
    %422 = vmatprep.subr.mxu0 0.0
    %423 = vmatpush1.msra.mxu0 %v152
    %424 = vmatprep.subr.mxu0 0.0
    %425 = vmatpush1.msra.mxu0 %v155
    %426 = vmatprep.subr.mxu0 0.0
    %427 = vmatpush1.msra.mxu0 %v158
    %428 = vmatprep.subr.mxu0 0.0
    %429 = vmatpush1.msra.mxu0 %v161
    %430 = vmatprep.subr.mxu0 0.0
    %431 = vmatpush1.msra.mxu0 %v164
    %432 = vmatprep.subr.mxu0 0.0
    %433 = vmatpush1.msra.mxu0 0.0
    %434 = vmatprep.subr.mxu0 0.0
    %435 = vmatpush1.msra.mxu0 0.0
    %436 = vmatprep.subr.mxu0 0.0
    %437 = vmatpush1.msra.mxu0 0.0
    %438 = vmatprep.subr.mxu0 0.0
    %439 = vmatpush1.msra.mxu0 0.0
    %440 = vmatprep.subr.mxu0 0.0
    %441 = vmatpush1.msra.mxu0 0.0
    %442 = vmatprep.subr.mxu0 0.0
    %443 = vmatpush1.msra.mxu0 0.0
    %444 = vmatprep.subr.mxu0 0.0
    %445 = vmatpush1.msra.mxu0 0.0
    %446 = vmatprep.subr.mxu0 0.0
    %447 = vmatpush1.msra.mxu0 0.0
    %448 = vmatprep.subr.mxu0 0.0
    %449 = vmatpush1.msra.mxu0 0.0
    %450 = vmatprep.subr.mxu0 0.0
    %451 = vmatpush1.msra.mxu0 0.0
    %452 = vmatprep.subr.mxu0 0.0
    %453 = vmatpush1.msra.mxu0 0.0
    %454 = vmatprep.subr.mxu0 0.0
    %455 = vmatpush1.msra.mxu0 0.0
    %456 = vmatprep.subr.mxu0 0.0
    %457 = vmatpush1.msra.mxu0 0.0
    %458 = vmatprep.subr.mxu0 0.0
    %459 = vmatpush1.msra.mxu0 0.0
    %460 = vmatprep.subr.mxu0 0.0
    %461 = vmatpush1.msra.mxu0 0.0
    %462 = vmatprep.subr.mxu0 0.0
    %463 = vmatpush1.msra.mxu0 0.0
    %464 = vmatprep.mubr.f32.mxu0 0.0
    %465 = vmatmul.mubr.f32.gmra.mrb[0].mxu0 %v68
    %v466 = vpop.f32.mrb[0].mxu0
    %v467 = vadd.f32 0.0, %v466
    %v468 = vpop.f32.mrb[0].mxu0
    %469 = vdwg.mxu0
    %v470 = vadd.f32 %v255, %v396
    %v471 = vxor.u32 %v470, 2147483648
    %v472 = vmul.f32 %v471, 1.442695
    %v473 = vpow.pop %v472
    %v474 = vadd.f32 %v473, 1.0
    %v475 = vrcp.pop %v474
    %v476 = vmul.f32 1.0, %v475
    %v477 = vadd.f32 %v257, %v398
    %v478 = vxor.u32 %v477, 2147483648
    %v479 = vmul.f32 %v478, 1.442695
    %v480 = vpow.pop %v479
    %v481 = vadd.f32 %v480, 1.0
    %v482 = vrcp.pop %v481
    %v483 = vmul.f32 1.0, %v482
    %v485 = vlaneseq
    %v486 = vshrl.u32 %v485, 7
    %v487 = vsub.s32 0, %v486
    %v488 = vrot.slane %v165, %v487
    %v490 = vadd.f32 %v467, %v488
    %v491 = vmul.f32 %v476, %v490
    %v492 = vadd.f32 %v326, %v491
    %v493 = vtanh.pop %v492
    %v494 = vsub.f32 1.0, %v483
    %v495 = vmul.f32 %v494, %v493
    %v496 = vmul.f32 %v483, %v68
    %v497 = vadd.f32 %v495, %v496
    %v499 = vlaneseq
    %v500 = vshrl.u32 %v499, 7
    %v501 = vsub.s32 0, %v500
    %v502 = vrot.slane %v182, %v501
    %504 = vmatprep.subr.mxu0 0.0
    %505 = vmatpush1.msra.mxu0 %v166
    %506 = vmatprep.subr.mxu0 0.0
    %507 = vmatpush1.msra.mxu0 %v167
    %508 = vmatprep.subr.mxu0 0.0
    %509 = vmatpush1.msra.mxu0 %v168
    %510 = vmatprep.subr.mxu0 0.0
    %511 = vmatpush1.msra.mxu0 %v169
    %512 = vmatprep.subr.mxu0 0.0
    %513 = vmatpush1.msra.mxu0 %v170
    %514 = vmatprep.subr.mxu0 0.0
    %515 = vmatpush1.msra.mxu0 %v171
    %516 = vmatprep.subr.mxu0 0.0
    %517 = vmatpush1.msra.mxu0 %v172
    %518 = vmatprep.subr.mxu0 0.0
    %519 = vmatpush1.msra.mxu0 %v173
    %520 = vmatprep.subr.mxu0 0.0
    %521 = vmatpush1.msra.mxu0 %v174
    %522 = vmatprep.subr.mxu0 0.0
    %523 = vmatpush1.msra.mxu0 %v175
    %524 = vmatprep.subr.mxu0 0.0
    %525 = vmatpush1.msra.mxu0 %v176
    %526 = vmatprep.subr.mxu0 0.0
    %527 = vmatpush1.msra.mxu0 %v177
    %528 = vmatprep.subr.mxu0 0.0
    %529 = vmatpush1.msra.mxu0 %v178
    %530 = vmatprep.subr.mxu0 0.0
    %531 = vmatpush1.msra.mxu0 %v179
    %532 = vmatprep.subr.mxu0 0.0
    %533 = vmatpush1.msra.mxu0 %v180
    %534 = vmatprep.subr.mxu0 0.0
    %535 = vmatpush1.msra.mxu0 %v181
    %536 = vmatprep.subr.mxu0 0.0
    %537 = vmatpush1.msra.mxu0 0.0
    %538 = vmatprep.subr.mxu0 0.0
    %539 = vmatpush1.msra.mxu0 0.0
    %540 = vmatprep.subr.mxu0 0.0
    %541 = vmatpush1.msra.mxu0 0.0
    %542 = vmatprep.subr.mxu0 0.0
    %543 = vmatpush1.msra.mxu0 0.0
    %544 = vmatprep.subr.mxu0 0.0
    %545 = vmatpush1.msra.mxu0 0.0
    %546 = vmatprep.subr.mxu0 0.0
    %547 = vmatpush1.msra.mxu0 0.0
    %548 = vmatprep.subr.mxu0 0.0
    %549 = vmatpush1.msra.mxu0 0.0
    %550 = vmatprep.subr.mxu0 0.0
    %551 = vmatpush1.msra.mxu0 0.0
    %552 = vmatprep.subr.mxu0 0.0
    %553 = vmatpush1.msra.mxu0 0.0
    %554 = vmatprep.subr.mxu0 0.0
    %555 = vmatpush1.msra.mxu0 0.0
    %556 = vmatprep.subr.mxu0 0.0
    %557 = vmatpush1.msra.mxu0 0.0
    %558 = vmatprep.subr.mxu0 0.0
    %559 = vmatpush1.msra.mxu0 0.0
    %560 = vmatprep.subr.mxu0 0.0
    %561 = vmatpush1.msra.mxu0 0.0
    %562 = vmatprep.subr.mxu0 0.0
    %563 = vmatpush1.msra.mxu0 0.0
    %564 = vmatprep.subr.mxu0 0.0
    %565 = vmatpush1.msra.mxu0 0.0
    %566 = vmatprep.subr.mxu0 0.0
    %567 = vmatpush1.msra.mxu0 0.0
    %568 = vmatprep.mubr.f32.mxu0 0.0
    %569 = vmatmul.mubr.f32.gmra.mrb[0].mxu0 %v497
    %v570 = vpop.f32.mrb[0].mxu0
    %v571 = vadd.f32 %v502, %v570
    %v572 = vpop.f32.mrb[0].mxu0
    %573 = vdwg.mxu0
    %574 = vmax.xlane.f32.xlu0 %v571
    %v575 = vpop.xlane.xlu0 %574
    %vm576 = vcmp.eq.f32.partialorder %v571, %v575
    %v577 = vsel %vm576, %v184, 128
    %v578 = vand.u32 %v577, 65535
    %v579 = vshra.s32 %v577, 16
    %v580 = vcvt.s32.f32 %v578
    %v581 = vcvt.s32.f32 %v579
    %582 = vmin.xlane.f32.xlu0 %v581
    %v583 = vpop.xlane.xlu0 %582
    %vm584 = vcmp.eq.f32.partialorder %v581, %v583
    %v585 = vsel %vm584, %v580, inf
    %586 = vmin.xlane.f32.xlu0 %v585
    %v587 = vpop.xlane.xlu0 %586
    %v588 = vcvt.f32.s32 %v587
    %v589 = vcvt.f32.s32 %v583
    %v590 = vshll.u32 %v589, 16
    %v591 = vadd.s32 %v590, %v588
    %vm592 = vcmp.eq.s32.totalorder %v184, %v591
    %v593 = vsel %vm592, 1, 0
    %v594 = vcvt.s32.f32 %v593
    %v595 = vsub.f32 %v571, %v575
    %v596 = vmul.f32 %v595, 1.442695
    %v597 = vpow.pop %v596
    %598 = vadd.xlane.f32.xlu0 %v597
    %v599 = vpop.xlane.xlu0 %598
    %v600 = vlog2.pop %v599
    %v601 = vmul.f32 %v600, 0.6931472
    %v602 = vsub.f32 %v595, %v601
    %603 = vst [vmem:[#allocation8] sm:$0xff] %v602
    %604 = vmatprep.subr.mxu0 %v70
    %605 = vmatpush1.msra.mxu0 %v69
    %606 = vmatprep.subr.mxu0 %v73
    %607 = vmatpush1.msra.mxu0 %v72
    %608 = vmatprep.subr.mxu0 %v76
    %609 = vmatpush1.msra.mxu0 %v75
    %610 = vmatprep.subr.mxu0 %v79
    %611 = vmatpush1.msra.mxu0 %v78
    %612 = vmatprep.subr.mxu0 %v82
    %613 = vmatpush1.msra.mxu0 %v81
    %614 = vmatprep.subr.mxu0 %v85
    %615 = vmatpush1.msra.mxu0 %v84
    %616 = vmatprep.subr.mxu0 %v88
    %617 = vmatpush1.msra.mxu0 %v87
    %618 = vmatprep.subr.mxu0 %v91
    %619 = vmatpush1.msra.mxu0 %v90
    %620 = vmatprep.subr.mxu0 %v94
    %621 = vmatpush1.msra.mxu0 %v93
    %622 = vmatprep.subr.mxu0 %v97
    %623 = vmatpush1.msra.mxu0 %v96
    %624 = vmatprep.subr.mxu0 %v100
    %625 = vmatpush1.msra.mxu0 %v99
    %626 = vmatprep.subr.mxu0 %v103
    %627 = vmatpush1.msra.mxu0 %v102
    %628 = vmatprep.subr.mxu0 %v106
    %629 = vmatpush1.msra.mxu0 %v105
    %630 = vmatprep.subr.mxu0 %v109
    %631 = vmatpush1.msra.mxu0 %v108
    %632 = vmatprep.subr.mxu0 %v112
    %633 = vmatpush1.msra.mxu0 %v111
    %634 = vmatprep.subr.mxu0 %v115
    %635 = vmatpush1.msra.mxu0 %v114
    %636 = vmatprep.subr.mxu0 0.0
    %637 = vmatpush1.msra.mxu0 0.0
    %638 = vmatprep.subr.mxu0 0.0
    %639 = vmatpush1.msra.mxu0 0.0
    %640 = vmatprep.subr.mxu0 0.0
    %641 = vmatpush1.msra.mxu0 0.0
    %642 = vmatprep.subr.mxu0 0.0
    %643 = vmatpush1.msra.mxu0 0.0
    %644 = vmatprep.subr.mxu0 0.0
    %645 = vmatpush1.msra.mxu0 0.0
    %646 = vmatprep.subr.mxu0 0.0
    %647 = vmatpush1.msra.mxu0 0.0
    %648 = vmatprep.subr.mxu0 0.0
    %649 = vmatpush1.msra.mxu0 0.0
    %650 = vmatprep.subr.mxu0 0.0
    %651 = vmatpush1.msra.mxu0 0.0
    %652 = vmatprep.subr.mxu0 0.0
    %653 = vmatpush1.msra.mxu0 0.0
    %654 = vmatprep.subr.mxu0 0.0
    %655 = vmatpush1.msra.mxu0 0.0
    %656 = vmatprep.subr.mxu0 0.0
    %657 = vmatpush1.msra.mxu0 0.0
    %658 = vmatprep.subr.mxu0 0.0
    %659 = vmatpush1.msra.mxu0 0.0
    %660 = vmatprep.subr.mxu0 0.0
    %661 = vmatpush1.msra.mxu0 0.0
    %662 = vmatprep.subr.mxu0 0.0
    %663 = vmatpush1.msra.mxu0 0.0
    %664 = vmatprep.subr.mxu0 0.0
    %665 = vmatpush1.msra.mxu0 0.0
    %666 = vmatprep.subr.mxu0 0.0
    %667 = vmatpush1.msra.mxu0 0.0
    %668 = vmatprep.mubr.f32.mxu0 0.0
    %669 = vmatmul.mubr.f32.gmra.mrb[0].mxu0 %v594
    %v670 = vpop.f32.mrb[0].mxu0
    %v671 = vadd.f32 0.0, %v670
    %v672 = vpop.f32.mrb[0].mxu0
    %v673 = vadd.f32 0.0, %v672
    %674 = vdwg.mxu0
    %675 = vmatprep.subr.mxu0 0.0
    %676 = vmatpush1.msra.mxu0 %v71
    %677 = vmatprep.subr.mxu0 0.0
    %678 = vmatpush1.msra.mxu0 %v74
    %679 = vmatprep.subr.mxu0 0.0
    %680 = vmatpush1.msra.mxu0 %v77
    %681 = vmatprep.subr.mxu0 0.0
    %682 = vmatpush1.msra.mxu0 %v80
    %683 = vmatprep.subr.mxu0 0.0
    %684 = vmatpush1.msra.mxu0 %v83
    %685 = vmatprep.subr.mxu0 0.0
    %686 = vmatpush1.msra.mxu0 %v86
    %687 = vmatprep.subr.mxu0 0.0
    %688 = vmatpush1.msra.mxu0 %v89
    %689 = vmatprep.subr.mxu0 0.0
    %690 = vmatpush1.msra.mxu0 %v92
    %691 = vmatprep.subr.mxu0 0.0
    %692 = vmatpush1.msra.mxu0 %v95
    %693 = vmatprep.subr.mxu0 0.0
    %694 = vmatpush1.msra.mxu0 %v98
    %695 = vmatprep.subr.mxu0 0.0
    %696 = vmatpush1.msra.mxu0 %v101
    %697 = vmatprep.subr.mxu0 0.0
    %698 = vmatpush1.msra.mxu0 %v104
    %699 = vmatprep.subr.mxu0 0.0
    %700 = vmatpush1.msra.mxu0 %v107
    %701 = vmatprep.subr.mxu0 0.0
    %702 = vmatpush1.msra.mxu0 %v110
    %703 = vmatprep.subr.mxu0 0.0
    %704 = vmatpush1.msra.mxu0 %v113
    %705 = vmatprep.subr.mxu0 0.0
    %706 = vmatpush1.msra.mxu0 %v116
    %707 = vmatprep.subr.mxu0 0.0
    %708 = vmatpush1.msra.mxu0 0.0
    %709 = vmatprep.subr.mxu0 0.0
    %710 = vmatpush1.msra.mxu0 0.0
    %711 = vmatprep.subr.mxu0 0.0
    %712 = vmatpush1.msra.mxu0 0.0
    %713 = vmatprep.subr.mxu0 0.0
    %714 = vmatpush1.msra.mxu0 0.0
    %715 = vmatprep.subr.mxu0 0.0
    %716 = vmatpush1.msra.mxu0 0.0
    %717 = vmatprep.subr.mxu0 0.0
    %718 = vmatpush1.msra.mxu0 0.0
    %719 = vmatprep.subr.mxu0 0.0
    %720 = vmatpush1.msra.mxu0 0.0
    %721 = vmatprep.subr.mxu0 0.0
    %722 = vmatpush1.msra.mxu0 0.0
    %723 = vmatprep.subr.mxu0 0.0
    %724 = vmatpush1.msra.mxu0 0.0
    %725 = vmatprep.subr.mxu0 0.0
    %726 = vmatpush1.msra.mxu0 0.0
    %727 = vmatprep.subr.mxu0 0.0
    %728 = vmatpush1.msra.mxu0 0.0
    %729 = vmatprep.subr.mxu0 0.0
    %730 = vmatpush1.msra.mxu0 0.0
    %731 = vmatprep.subr.mxu0 0.0
    %732 = vmatpush1.msra.mxu0 0.0
    %733 = vmatprep.subr.mxu0 0.0
    %734 = vmatpush1.msra.mxu0 0.0
    %735 = vmatprep.subr.mxu0 0.0
    %736 = vmatpush1.msra.mxu0 0.0
    %737 = vmatprep.subr.mxu0 0.0
    %738 = vmatpush1.msra.mxu0 0.0
    %739 = vmatprep.mubr.f32.mxu0 0.0
    %740 = vmatmul.mubr.f32.gmra.mrb[0].mxu0 %v594
    %v741 = vpop.f32.mrb[0].mxu0
    %v742 = vadd.f32 0.0, %v741
    %v743 = vpop.f32.mrb[0].mxu0
    %744 = vdwg.mxu0
    %745 = vmatprep.subr.mxu0 %v118
    %746 = vmatpush1.msra.mxu0 %v117
    %747 = vmatprep.subr.mxu0 %v121
    %748 = vmatpush1.msra.mxu0 %v120
    %749 = vmatprep.subr.mxu0 %v124
    %750 = vmatpush1.msra.mxu0 %v123
    %751 = vmatprep.subr.mxu0 %v127
    %752 = vmatpush1.msra.mxu0 %v126
    %753 = vmatprep.subr.mxu0 %v130
    %754 = vmatpush1.msra.mxu0 %v129
    %755 = vmatprep.subr.mxu0 %v133
    %756 = vmatpush1.msra.mxu0 %v132
    %757 = vmatprep.subr.mxu0 %v136
    %758 = vmatpush1.msra.mxu0 %v135
    %759 = vmatprep.subr.mxu0 %v139
    %760 = vmatpush1.msra.mxu0 %v138
    %761 = vmatprep.subr.mxu0 %v142
    %762 = vmatpush1.msra.mxu0 %v141
    %763 = vmatprep.subr.mxu0 %v145
    %764 = vmatpush1.msra.mxu0 %v144
    %765 = vmatprep.subr.mxu0 %v148
    %766 = vmatpush1.msra.mxu0 %v147
    %767 = vmatprep.subr.mxu0 %v151
    %768 = vmatpush1.msra.mxu0 %v150
    %769 = vmatprep.subr.mxu0 %v154
    %770 = vmatpush1.msra.mxu0 %v153
    %771 = vmatprep.subr.mxu0 %v157
    %772 = vmatpush1.msra.mxu0 %v156
    %773 = vmatprep.subr.mxu0 %v160
    %774 = vmatpush1.msra.mxu0 %v159
    %775 = vmatprep.subr.mxu0 %v163
    %776 = vmatpush1.msra.mxu0 %v162
    %777 = vmatprep.subr.mxu0 0.0
    %778 = vmatpush1.msra.mxu0 0.0
    %779 = vmatprep.subr.mxu0 0.0
    %780 = vmatpush1.msra.mxu0 0.0
    %781 = vmatprep.subr.mxu0 0.0
    %782 = vmatpush1.msra.mxu0 0.0
    %783 = vmatprep.subr.mxu0 0.0
    %784 = vmatpush1.msra.mxu0 0.0
    %785 = vmatprep.subr.mxu0 0.0
    %786 = vmatpush1.msra.mxu0 0.0
    %787 = vmatprep.subr.mxu0 0.0
    %788 = vmatpush1.msra.mxu0 0.0
    %789 = vmatprep.subr.mxu0 0.0
    %790 = vmatpush1.msra.mxu0 0.0
    %791 = vmatprep.subr.mxu0 0.0
    %792 = vmatpush1.msra.mxu0 0.0
    %793 = vmatprep.subr.mxu0 0.0
    %794 = vmatpush1.msra.mxu0 0.0
    %795 = vmatprep.subr.mxu0 0.0
    %796 = vmatpush1.msra.mxu0 0.0
    %797 = vmatprep.subr.mxu0 0.0
    %798 = vmatpush1.msra.mxu0 0.0
    %799 = vmatprep.subr.mxu0 0.0
    %800 = vmatpush1.msra.mxu0 0.0
    %801 = vmatprep.subr.mxu0 0.0
    %802 = vmatpush1.msra.mxu0 0.0
    %803 = vmatprep.subr.mxu0 0.0
    %804 = vmatpush1.msra.mxu0 0.0
    %805 = vmatprep.subr.mxu0 0.0
    %806 = vmatpush1.msra.mxu0 0.0
    %807 = vmatprep.subr.mxu0 0.0
    %808 = vmatpush1.msra.mxu0 0.0
    %809 = vmatprep.mubr.f32.mxu0 0.0
    %810 = vmatmul.mubr.f32.gmra.mrb[0].mxu0 %v497
    %v811 = vpop.f32.mrb[0].mxu0
    %v812 = vadd.f32 0.0, %v811
    %v813 = vpop.f32.mrb[0].mxu0
    %v814 = vadd.f32 0.0, %v813
    %815 = vdwg.mxu0
    %816 = vmatprep.subr.mxu0 0.0
    %817 = vmatpush1.msra.mxu0 %v119
    %818 = vmatprep.subr.mxu0 0.0
    %819 = vmatpush1.msra.mxu0 %v122
    %820 = vmatprep.subr.mxu0 0.0
    %821 = vmatpush1.msra.mxu0 %v125
    %822 = vmatprep.subr.mxu0 0.0
    %823 = vmatpush1.msra.mxu0 %v128
    %824 = vmatprep.subr.mxu0 0.0
    %825 = vmatpush1.msra.mxu0 %v131
    %826 = vmatprep.subr.mxu0 0.0
    %827 = vmatpush1.msra.mxu0 %v134
    %828 = vmatprep.subr.mxu0 0.0
    %829 = vmatpush1.msra.mxu0 %v137
    %830 = vmatprep.subr.mxu0 0.0
    %831 = vmatpush1.msra.mxu0 %v140
    %832 = vmatprep.subr.mxu0 0.0
    %833 = vmatpush1.msra.mxu0 %v143
    %834 = vmatprep.subr.mxu0 0.0
    %835 = vmatpush1.msra.mxu0 %v146
    %836 = vmatprep.subr.mxu0 0.0
    %837 = vmatpush1.msra.mxu0 %v149
    %838 = vmatprep.subr.mxu0 0.0
    %839 = vmatpush1.msra.mxu0 %v152
    %840 = vmatprep.subr.mxu0 0.0
    %841 = vmatpush1.msra.mxu0 %v155
    %842 = vmatprep.subr.mxu0 0.0
    %843 = vmatpush1.msra.mxu0 %v158
    %844 = vmatprep.subr.mxu0 0.0
    %845 = vmatpush1.msra.mxu0 %v161
    %846 = vmatprep.subr.mxu0 0.0
    %847 = vmatpush1.msra.mxu0 %v164
    %848 = vmatprep.subr.mxu0 0.0
    %849 = vmatpush1.msra.mxu0 0.0
    %850 = vmatprep.subr.mxu0 0.0
    %851 = vmatpush1.msra.mxu0 0.0
    %852 = vmatprep.subr.mxu0 0.0
    %853 = vmatpush1.msra.mxu0 0.0
    %854 = vmatprep.subr.mxu0 0.0
    %855 = vmatpush1.msra.mxu0 0.0
    %856 = vmatprep.subr.mxu0 0.0
    %857 = vmatpush1.msra.mxu0 0.0
    %858 = vmatprep.subr.mxu0 0.0
    %859 = vmatpush1.msra.mxu0 0.0
    %860 = vmatprep.subr.mxu0 0.0
    %861 = vmatpush1.msra.mxu0 0.0
    %862 = vmatprep.subr.mxu0 0.0
    %863 = vmatpush1.msra.mxu0 0.0
    %864 = vmatprep.subr.mxu0 0.0
    %865 = vmatpush1.msra.mxu0 0.0
    %866 = vmatprep.subr.mxu0 0.0
    %867 = vmatpush1.msra.mxu0 0.0
    %868 = vmatprep.subr.mxu0 0.0
    %869 = vmatpush1.msra.mxu0 0.0
    %870 = vmatprep.subr.mxu0 0.0
    %871 = vmatpush1.msra.mxu0 0.0
    %872 = vmatprep.subr.mxu0 0.0
    %873 = vmatpush1.msra.mxu0 0.0
    %874 = vmatprep.subr.mxu0 0.0
    %875 = vmatpush1.msra.mxu0 0.0
    %876 = vmatprep.subr.mxu0 0.0
    %877 = vmatpush1.msra.mxu0 0.0
    %878 = vmatprep.subr.mxu0 0.0
    %879 = vmatpush1.msra.mxu0 0.0
    %880 = vmatprep.mubr.f32.mxu0 0.0
    %881 = vmatmul.mubr.f32.gmra.mrb[0].mxu0 %v497
    %v882 = vpop.f32.mrb[0].mxu0
    %v883 = vadd.f32 0.0, %v882
    %v884 = vpop.f32.mrb[0].mxu0
    %885 = vdwg.mxu0
    %v886 = vadd.f32 %v671, %v812
    %v887 = vxor.u32 %v886, 2147483648
    %v888 = vmul.f32 %v887, 1.442695
    %v889 = vpow.pop %v888
    %v890 = vadd.f32 %v889, 1.0
    %v891 = vrcp.pop %v890
    %v892 = vmul.f32 1.0, %v891
    %v893 = vadd.f32 %v673, %v814
    %v894 = vxor.u32 %v893, 2147483648
    %v895 = vmul.f32 %v894, 1.442695
    %v896 = vpow.pop %v895
    %v897 = vadd.f32 %v896, 1.0
    %v898 = vrcp.pop %v897
    %v899 = vmul.f32 1.0, %v898
    %v900 = vadd.f32 %v883, %v488
    %v901 = vmul.f32 %v892, %v900
    %v902 = vadd.f32 %v742, %v901
    %v903 = vtanh.pop %v902
    %v904 = vsub.f32 1.0, %v899
    %v905 = vmul.f32 %v904, %v903
    %v906 = vmul.f32 %v899, %v497
    %v907 = vadd.f32 %v905, %v906
    %908 = vmatprep.subr.mxu0 0.0
    %909 = vmatpush1.msra.mxu0 %v166
    %910 = vmatprep.subr.mxu0 0.0
    %911 = vmatpush1.msra.mxu0 %v167
    %912 = vmatprep.subr.mxu0 0.0
    %913 = vmatpush1.msra.mxu0 %v168
    %914 = vmatprep.subr.mxu0 0.0
    %915 = vmatpush1.msra.mxu0 %v169
    %916 = vmatprep.subr.mxu0 0.0
    %917 = vmatpush1.msra.mxu0 %v170
    %918 = vmatprep.subr.mxu0 0.0
    %919 = vmatpush1.msra.mxu0 %v171
    %920 = vmatprep.subr.mxu0 0.0
    %921 = vmatpush1.msra.mxu0 %v172
    %922 = vmatprep.subr.mxu0 0.0
    %923 = vmatpush1.msra.mxu0 %v173
    %924 = vmatprep.subr.mxu0 0.0
    %925 = vmatpush1.msra.mxu0 %v174
    %926 = vmatprep.subr.mxu0 0.0
    %927 = vmatpush1.msra.mxu0 %v175
    %928 = vmatprep.subr.mxu0 0.0
    %929 = vmatpush1.msra.mxu0 %v176
    %930 = vmatprep.subr.mxu0 0.0
    %931 = vmatpush1.msra.mxu0 %v177
    %932 = vmatprep.subr.mxu0 0.0
    %933 = vmatpush1.msra.mxu0 %v178
    %934 = vmatprep.subr.mxu0 0.0
    %935 = vmatpush1.msra.mxu0 %v179
    %936 = vmatprep.subr.mxu0 0.0
    %937 = vmatpush1.msra.mxu0 %v180
    %938 = vmatprep.subr.mxu0 0.0
    %939 = vmatpush1.msra.mxu0 %v181
    %940 = vmatprep.subr.mxu0 0.0
    %941 = vmatpush1.msra.mxu0 0.0
    %942 = vmatprep.subr.mxu0 0.0
    %943 = vmatpush1.msra.mxu0 0.0
    %944 = vmatprep.subr.mxu0 0.0
    %945 = vmatpush1.msra.mxu0 0.0
    %946 = vmatprep.subr.mxu0 0.0
    %947 = vmatpush1.msra.mxu0 0.0
    %948 = vmatprep.subr.mxu0 0.0
    %949 = vmatpush1.msra.mxu0 0.0
    %950 = vmatprep.subr.mxu0 0.0
    %951 = vmatpush1.msra.mxu0 0.0
    %952 = vmatprep.subr.mxu0 0.0
    %953 = vmatpush1.msra.mxu0 0.0
    %954 = vmatprep.subr.mxu0 0.0
    %955 = vmatpush1.msra.mxu0 0.0
    %956 = vmatprep.subr.mxu0 0.0
    %957 = vmatpush1.msra.mxu0 0.0
    %958 = vmatprep.subr.mxu0 0.0
    %959 = vmatpush1.msra.mxu0 0.0
    %960 = vmatprep.subr.mxu0 0.0
    %961 = vmatpush1.msra.mxu0 0.0
    %962 = vmatprep.subr.mxu0 0.0
    %963 = vmatpush1.msra.mxu0 0.0
    %964 = vmatprep.subr.mxu0 0.0
    %965 = vmatpush1.msra.mxu0 0.0
    %966 = vmatprep.subr.mxu0 0.0
    %967 = vmatpush1.msra.mxu0 0.0
    %968 = vmatprep.subr.mxu0 0.0
    %969 = vmatpush1.msra.mxu0 0.0
    %970 = vmatprep.subr.mxu0 0.0
    %971 = vmatpush1.msra.mxu0 0.0
    %972 = vmatprep.mubr.f32.mxu0 0.0
    %973 = vmatmul.mubr.f32.gmra.mrb[0].mxu0 %v907
    %v974 = vpop.f32.mrb[0].mxu0
    %v975 = vadd.f32 %v502, %v974
    %v976 = vpop.f32.mrb[0].mxu0
    %977 = vdwg.mxu0
    %978 = vmax.xlane.f32.xlu0 %v975
    %v979 = vpop.xlane.xlu0 %978
    %vm980 = vcmp.eq.f32.partialorder %v975, %v979
    %v981 = vsel %vm980, %v184, 128
    %v982 = vand.u32 %v981, 65535
    %v983 = vshra.s32 %v981, 16
    %v984 = vcvt.s32.f32 %v982
    %v985 = vcvt.s32.f32 %v983
    %986 = vmin.xlane.f32.xlu0 %v985
    %v987 = vpop.xlane.xlu0 %986
    %vm988 = vcmp.eq.f32.partialorder %v985, %v987
    %v989 = vsel %vm988, %v984, inf
    %990 = vmin.xlane.f32.xlu0 %v989
    %v991 = vpop.xlane.xlu0 %990
    %v992 = vcvt.f32.s32 %v991
    %v993 = vcvt.f32.s32 %v987
    %v994 = vshll.u32 %v993, 16
    %v995 = vadd.s32 %v994, %v992
    %vm996 = vcmp.eq.s32.totalorder %v184, %v995
    %v997 = vsel %vm996, 1, 0
    %v998 = vcvt.s32.f32 %v997
    %v999 = vsub.f32 %v975, %v979
    %v1000 = vmul.f32 %v999, 1.442695
    %v1001 = vpow.pop %v1000
    %1002 = vadd.xlane.f32.xlu0 %v1001
    %v1003 = vpop.xlane.xlu0 %1002
    %v1004 = vlog2.pop %v1003
    %v1005 = vmul.f32 %v1004, 0.6931472
    %v1006 = vsub.f32 %v999, %v1005
    %s1007 = scalar_lea.vmem [#allocation8], 8
    %1008 = vst [vmem:[%s1007] sm:$0xff] %v1006
    %1009 = vmatprep.subr.mxu0 %v70
    %1010 = vmatpush1.msra.mxu0 %v69
    %1011 = vmatprep.subr.mxu0 %v73
    %1012 = vmatpush1.msra.mxu0 %v72
    %1013 = vmatprep.subr.mxu0 %v76
    %1014 = vmatpush1.msra.mxu0 %v75
    %1015 = vmatprep.subr.mxu0 %v79
    %1016 = vmatpush1.msra.mxu0 %v78
    %1017 = vmatprep.subr.mxu0 %v82
    %1018 = vmatpush1.msra.mxu0 %v81
    %1019 = vmatprep.subr.mxu0 %v85
    %1020 = vmatpush1.msra.mxu0 %v84
    %1021 = vmatprep.subr.mxu0 %v88
    %1022 = vmatpush1.msra.mxu0 %v87
    %1023 = vmatprep.subr.mxu0 %v91
    %1024 = vmatpush1.msra.mxu0 %v90
    %1025 = vmatprep.subr.mxu0 %v94
    %1026 = vmatpush1.msra.mxu0 %v93
    %1027 = vmatprep.subr.mxu0 %v97
    %1028 = vmatpush1.msra.mxu0 %v96
    %1029 = vmatprep.subr.mxu0 %v100
    %1030 = vmatpush1.msra.mxu0 %v99
    %1031 = vmatprep.subr.mxu0 %v103
    %1032 = vmatpush1.msra.mxu0 %v102
    %1033 = vmatprep.subr.mxu0 %v106
    %1034 = vmatpush1.msra.mxu0 %v105
    %1035 = vmatprep.subr.mxu0 %v109
    %1036 = vmatpush1.msra.mxu0 %v108
    %1037 = vmatprep.subr.mxu0 %v112
    %1038 = vmatpush1.msra.mxu0 %v111
    %1039 = vmatprep.subr.mxu0 %v115
    %1040 = vmatpush1.msra.mxu0 %v114
    %1041 = vmatprep.subr.mxu0 0.0
    %1042 = vmatpush1.msra.mxu0 0.0
    %1043 = vmatprep.subr.mxu0 0.0
    %1044 = vmatpush1.msra.mxu0 0.0
    %1045 = vmatprep.subr.mxu0 0.0
    %1046 = vmatpush1.msra.mxu0 0.0
    %1047 = vmatprep.subr.mxu0 0.0
    %1048 = vmatpush1.msra.mxu0 0.0
    %1049 = vmatprep.subr.mxu0 0.0
    %1050 = vmatpush1.msra.mxu0 0.0
    %1051 = vmatprep.subr.mxu0 0.0
    %1052 = vmatpush1.msra.mxu0 0.0
    %1053 = vmatprep.subr.mxu0 0.0
    %1054 = vmatpush1.msra.mxu0 0.0
    %1055 = vmatprep.subr.mxu0 0.0
    %1056 = vmatpush1.msra.mxu0 0.0
    %1057 = vmatprep.subr.mxu0 0.0
    %1058 = vmatpush1.msra.mxu0 0.0
    %1059 = vmatprep.subr.mxu0 0.0
    %1060 = vmatpush1.msra.mxu0 0.0
    %1061 = vmatprep.subr.mxu0 0.0
    %1062 = vmatpush1.msra.mxu0 0.0
    %1063 = vmatprep.subr.mxu0 0.0
    %1064 = vmatpush1.msra.mxu0 0.0
    %1065 = vmatprep.subr.mxu0 0.0
    %1066 = vmatpush1.msra.mxu0 0.0
    %1067 = vmatprep.subr.mxu0 0.0
    %1068 = vmatpush1.msra.mxu0 0.0
    %1069 = vmatprep.subr.mxu0 0.0
    %1070 = vmatpush1.msra.mxu0 0.0
    %1071 = vmatprep.subr.mxu0 0.0
    %1072 = vmatpush1.msra.mxu0 0.0
    %1073 = vmatprep.mubr.f32.mxu0 0.0
    %1074 = vmatmul.mubr.f32.gmra.mrb[0].mxu0 %v998
    %v1075 = vpop.f32.mrb[0].mxu0
    %v1076 = vadd.f32 0.0, %v1075
    %v1077 = vpop.f32.mrb[0].mxu0
    %v1078 = vadd.f32 0.0, %v1077
    %1079 = vdwg.mxu0
    %1080 = vmatprep.subr.mxu0 0.0
    %1081 = vmatpush1.msra.mxu0 %v71
    %1082 = vmatprep.subr.mxu0 0.0
    %1083 = vmatpush1.msra.mxu0 %v74
    %1084 = vmatprep.subr.mxu0 0.0
    %1085 = vmatpush1.msra.mxu0 %v77
    %1086 = vmatprep.subr.mxu0 0.0
    %1087 = vmatpush1.msra.mxu0 %v80
    %1088 = vmatprep.subr.mxu0 0.0
    %1089 = vmatpush1.msra.mxu0 %v83
    %1090 = vmatprep.subr.mxu0 0.0
    %1091 = vmatpush1.msra.mxu0 %v86
    %1092 = vmatprep.subr.mxu0 0.0
    %1093 = vmatpush1.msra.mxu0 %v89
    %1094 = vmatprep.subr.mxu0 0.0
    %1095 = vmatpush1.msra.mxu0 %v92
    %1096 = vmatprep.subr.mxu0 0.0
    %1097 = vmatpush1.msra.mxu0 %v95
    %1098 = vmatprep.subr.mxu0 0.0
    %1099 = vmatpush1.msra.mxu0 %v98
    %1100 = vmatprep.subr.mxu0 0.0
    %1101 = vmatpush1.msra.mxu0 %v101
    %1102 = vmatprep.subr.mxu0 0.0
    %1103 = vmatpush1.msra.mxu0 %v104
    %1104 = vmatprep.subr.mxu0 0.0
    %1105 = vmatpush1.msra.mxu0 %v107
    %1106 = vmatprep.subr.mxu0 0.0
    %1107 = vmatpush1.msra.mxu0 %v110
    %1108 = vmatprep.subr.mxu0 0.0
    %1109 = vmatpush1.msra.mxu0 %v113
    %1110 = vmatprep.subr.mxu0 0.0
    %1111 = vmatpush1.msra.mxu0 %v116
    %1112 = vmatprep.subr.mxu0 0.0
    %1113 = vmatpush1.msra.mxu0 0.0
    %1114 = vmatprep.subr.mxu0 0.0
    %1115 = vmatpush1.msra.mxu0 0.0
    %1116 = vmatprep.subr.mxu0 0.0
    %1117 = vmatpush1.msra.mxu0 0.0
    %1118 = vmatprep.subr.mxu0 0.0
    %1119 = vmatpush1.msra.mxu0 0.0
    %1120 = vmatprep.subr.mxu0 0.0
    %1121 = vmatpush1.msra.mxu0 0.0
    %1122 = vmatprep.subr.mxu0 0.0
    %1123 = vmatpush1.msra.mxu0 0.0
    %1124 = vmatprep.subr.mxu0 0.0
    %1125 = vmatpush1.msra.mxu0 0.0
    %1126 = vmatprep.subr.mxu0 0.0
    %1127 = vmatpush1.msra.mxu0 0.0
    %1128 = vmatprep.subr.mxu0 0.0
    %1129 = vmatpush1.msra.mxu0 0.0
    %1130 = vmatprep.subr.mxu0 0.0
    %1131 = vmatpush1.msra.mxu0 0.0
    %1132 = vmatprep.subr.mxu0 0.0
    %1133 = vmatpush1.msra.mxu0 0.0
    %1134 = vmatprep.subr.mxu0 0.0
    %1135 = vmatpush1.msra.mxu0 0.0
    %1136 = vmatprep.subr.mxu0 0.0
    %1137 = vmatpush1.msra.mxu0 0.0
    %1138 = vmatprep.subr.mxu0 0.0
    %1139 = vmatpush1.msra.mxu0 0.0
    %1140 = vmatprep.subr.mxu0 0.0
    %1141 = vmatpush1.msra.mxu0 0.0
    %1142 = vmatprep.subr.mxu0 0.0
    %1143 = vmatpush1.msra.mxu0 0.0
    %1144 = vmatprep.mubr.f32.mxu0 0.0
    %1145 = vmatmul.mubr.f32.gmra.mrb[0].mxu0 %v998
    %v1146 = vpop.f32.mrb[0].mxu0
    %v1147 = vadd.f32 0.0, %v1146
    %v1148 = vpop.f32.mrb[0].mxu0
    %1149 = vdwg.mxu0
    %1150 = vmatprep.subr.mxu0 %v118
    %1151 = vmatpush1.msra.mxu0 %v117
    %1152 = vmatprep.subr.mxu0 %v121
    %1153 = vmatpush1.msra.mxu0 %v120
    %1154 = vmatprep.subr.mxu0 %v124
    %1155 = vmatpush1.msra.mxu0 %v123
    %1156 = vmatprep.subr.mxu0 %v127
    %1157 = vmatpush1.msra.mxu0 %v126
    %1158 = vmatprep.subr.mxu0 %v130
    %1159 = vmatpush1.msra.mxu0 %v129
    %1160 = vmatprep.subr.mxu0 %v133
    %1161 = vmatpush1.msra.mxu0 %v132
    %1162 = vmatprep.subr.mxu0 %v136
    %1163 = vmatpush1.msra.mxu0 %v135
    %1164 = vmatprep.subr.mxu0 %v139
    %1165 = vmatpush1.msra.mxu0 %v138
    %1166 = vmatprep.subr.mxu0 %v142
    %1167 = vmatpush1.msra.mxu0 %v141
    %1168 = vmatprep.subr.mxu0 %v145
    %1169 = vmatpush1.msra.mxu0 %v144
    %1170 = vmatprep.subr.mxu0 %v148
    %1171 = vmatpush1.msra.mxu0 %v147
    %1172 = vmatprep.subr.mxu0 %v151
    %1173 = vmatpush1.msra.mxu0 %v150
    %1174 = vmatprep.subr.mxu0 %v154
    %1175 = vmatpush1.msra.mxu0 %v153
    %1176 = vmatprep.subr.mxu0 %v157
    %1177 = vmatpush1.msra.mxu0 %v156
    %1178 = vmatprep.subr.mxu0 %v160
    %1179 = vmatpush1.msra.mxu0 %v159
    %1180 = vmatprep.subr.mxu0 %v163
    %1181 = vmatpush1.msra.mxu0 %v162
    %1182 = vmatprep.subr.mxu0 0.0
    %1183 = vmatpush1.msra.mxu0 0.0
    %1184 = vmatprep.subr.mxu0 0.0
    %1185 = vmatpush1.msra.mxu0 0.0
    %1186 = vmatprep.subr.mxu0 0.0
    %1187 = vmatpush1.msra.mxu0 0.0
    %1188 = vmatprep.subr.mxu0 0.0
    %1189 = vmatpush1.msra.mxu0 0.0
    %1190 = vmatprep.subr.mxu0 0.0
    %1191 = vmatpush1.msra.mxu0 0.0
    %1192 = vmatprep.subr.mxu0 0.0
    %1193 = vmatpush1.msra.mxu0 0.0
    %1194 = vmatprep.subr.mxu0 0.0
    %1195 = vmatpush1.msra.mxu0 0.0
    %1196 = vmatprep.subr.mxu0 0.0
    %1197 = vmatpush1.msra.mxu0 0.0
    %1198 = vmatprep.subr.mxu0 0.0
    %1199 = vmatpush1.msra.mxu0 0.0
    %1200 = vmatprep.subr.mxu0 0.0
    %1201 = vmatpush1.msra.mxu0 0.0
    %1202 = vmatprep.subr.mxu0 0.0
    %1203 = vmatpush1.msra.mxu0 0.0
    %1204 = vmatprep.subr.mxu0 0.0
    %1205 = vmatpush1.msra.mxu0 0.0
    %1206 = vmatprep.subr.mxu0 0.0
    %1207 = vmatpush1.msra.mxu0 0.0
    %1208 = vmatprep.subr.mxu0 0.0
    %1209 = vmatpush1.msra.mxu0 0.0
    %1210 = vmatprep.subr.mxu0 0.0
    %1211 = vmatpush1.msra.mxu0 0.0
    %1212 = vmatprep.subr.mxu0 0.0
    %1213 = vmatpush1.msra.mxu0 0.0
    %1214 = vmatprep.mubr.f32.mxu0 0.0
    %1215 = vmatmul.mubr.f32.gmra.mrb[0].mxu0 %v907
    %v1216 = vpop.f32.mrb[0].mxu0
    %v1217 = vadd.f32 0.0, %v1216
    %v1218 = vpop.f32.mrb[0].mxu0
    %v1219 = vadd.f32 0.0, %v1218
    %1220 = vdwg.mxu0
    %1221 = vmatprep.subr.mxu0 0.0
    %1222 = vmatpush1.msra.mxu0 %v119
    %1223 = vmatprep.subr.mxu0 0.0
    %1224 = vmatpush1.msra.mxu0 %v122
    %1225 = vmatprep.subr.mxu0 0.0
    %1226 = vmatpush1.msra.mxu0 %v125
    %1227 = vmatprep.subr.mxu0 0.0
    %1228 = vmatpush1.msra.mxu0 %v128
    %1229 = vmatprep.subr.mxu0 0.0
    %1230 = vmatpush1.msra.mxu0 %v131
    %1231 = vmatprep.subr.mxu0 0.0
    %1232 = vmatpush1.msra.mxu0 %v134
    %1233 = vmatprep.subr.mxu0 0.0
    %1234 = vmatpush1.msra.mxu0 %v137
    %1235 = vmatprep.subr.mxu0 0.0
    %1236 = vmatpush1.msra.mxu0 %v140
    %1237 = vmatprep.subr.mxu0 0.0
    %1238 = vmatpush1.msra.mxu0 %v143
    %1239 = vmatprep.subr.mxu0 0.0
    %1240 = vmatpush1.msra.mxu0 %v146
    %1241 = vmatprep.subr.mxu0 0.0
    %1242 = vmatpush1.msra.mxu0 %v149
    %1243 = vmatprep.subr.mxu0 0.0
    %1244 = vmatpush1.msra.mxu0 %v152
    %1245 = vmatprep.subr.mxu0 0.0
    %1246 = vmatpush1.msra.mxu0 %v155
    %1247 = vmatprep.subr.mxu0 0.0
    %1248 = vmatpush1.msra.mxu0 %v158
    %1249 = vmatprep.subr.mxu0 0.0
    %1250 = vmatpush1.msra.mxu0 %v161
    %1251 = vmatprep.subr.mxu0 0.0
    %1252 = vmatpush1.msra.mxu0 %v164
    %1253 = vmatprep.subr.mxu0 0.0
    %1254 = vmatpush1.msra.mxu0 0.0
    %1255 = vmatprep.subr.mxu0 0.0
    %1256 = vmatpush1.msra.mxu0 0.0
    %1257 = vmatprep.subr.mxu0 0.0
    %1258 = vmatpush1.msra.mxu0 0.0
    %1259 = vmatprep.subr.mxu0 0.0
    %1260 = vmatpush1.msra.mxu0 0.0
    %1261 = vmatprep.subr.mxu0 0.0
    %1262 = vmatpush1.msra.mxu0 0.0
    %1263 = vmatprep.subr.mxu0 0.0
    %1264 = vmatpush1.msra.mxu0 0.0
    %1265 = vmatprep.subr.mxu0 0.0
    %1266 = vmatpush1.msra.mxu0 0.0
    %1267 = vmatprep.subr.mxu0 0.0
    %1268 = vmatpush1.msra.mxu0 0.0
    %1269 = vmatprep.subr.mxu0 0.0
    %1270 = vmatpush1.msra.mxu0 0.0
    %1271 = vmatprep.subr.mxu0 0.0
    %1272 = vmatpush1.msra.mxu0 0.0
    %1273 = vmatprep.subr.mxu0 0.0
    %1274 = vmatpush1.msra.mxu0 0.0
    %1275 = vmatprep.subr.mxu0 0.0
    %1276 = vmatpush1.msra.mxu0 0.0
    %1277 = vmatprep.subr.mxu0 0.0
    %1278 = vmatpush1.msra.mxu0 0.0
    %1279 = vmatprep.subr.mxu0 0.0
    %1280 = vmatpush1.msra.mxu0 0.0
    %1281 = vmatprep.subr.mxu0 0.0
    %1282 = vmatpush1.msra.mxu0 0.0
    %1283 = vmatprep.subr.mxu0 0.0
    %1284 = vmatpush1.msra.mxu0 0.0
    %1285 = vmatprep.mubr.f32.mxu0 0.0
    %1286 = vmatmul.mubr.f32.gmra.mrb[0].mxu0 %v907
    %v1287 = vpop.f32.mrb[0].mxu0
    %v1288 = vadd.f32 0.0, %v1287
    %v1289 = vpop.f32.mrb[0].mxu0
    %1290 = vdwg.mxu0
    %v1291 = vadd.f32 %v1076, %v1217
    %v1292 = vxor.u32 %v1291, 2147483648
    %v1293 = vmul.f32 %v1292, 1.442695
    %v1294 = vpow.pop %v1293
    %v1295 = vadd.f32 %v1294, 1.0
    %v1296 = vrcp.pop %v1295
    %v1297 = vmul.f32 1.0, %v1296
    %v1298 = vadd.f32 %v1078, %v1219
    %v1299 = vxor.u32 %v1298, 2147483648
    %v1300 = vmul.f32 %v1299, 1.442695
    %v1301 = vpow.pop %v1300
    %v1302 = vadd.f32 %v1301, 1.0
    %v1303 = vrcp.pop %v1302
    %v1304 = vmul.f32 1.0, %v1303
    %v1305 = vadd.f32 %v1288, %v488
    %v1306 = vmul.f32 %v1297, %v1305
    %v1307 = vadd.f32 %v1147, %v1306
    %v1308 = vtanh.pop %v1307
    %v1309 = vsub.f32 1.0, %v1304
    %v1310 = vmul.f32 %v1309, %v1308
    %v1311 = vmul.f32 %v1304, %v907
    %v1312 = vadd.f32 %v1310, %v1311
    %1313 = vmatprep.subr.mxu0 0.0
    %1314 = vmatpush1.msra.mxu0 %v166
    %1315 = vmatprep.subr.mxu0 0.0
    %1316 = vmatpush1.msra.mxu0 %v167
    %1317 = vmatprep.subr.mxu0 0.0
    %1318 = vmatpush1.msra.mxu0 %v168
    %1319 = vmatprep.subr.mxu0 0.0
    %1320 = vmatpush1.msra.mxu0 %v169
    %1321 = vmatprep.subr.mxu0 0.0
    %1322 = vmatpush1.msra.mxu0 %v170
    %1323 = vmatprep.subr.mxu0 0.0
    %1324 = vmatpush1.msra.mxu0 %v171
    %1325 = vmatprep.subr.mxu0 0.0
    %1326 = vmatpush1.msra.mxu0 %v172
    %1327 = vmatprep.subr.mxu0 0.0
    %1328 = vmatpush1.msra.mxu0 %v173
    %1329 = vmatprep.subr.mxu0 0.0
    %1330 = vmatpush1.msra.mxu0 %v174
    %1331 = vmatprep.subr.mxu0 0.0
    %1332 = vmatpush1.msra.mxu0 %v175
    %1333 = vmatprep.subr.mxu0 0.0
    %1334 = vmatpush1.msra.mxu0 %v176
    %1335 = vmatprep.subr.mxu0 0.0
    %1336 = vmatpush1.msra.mxu0 %v177
    %1337 = vmatprep.subr.mxu0 0.0
    %1338 = vmatpush1.msra.mxu0 %v178
    %1339 = vmatprep.subr.mxu0 0.0
    %1340 = vmatpush1.msra.mxu0 %v179
    %1341 = vmatprep.subr.mxu0 0.0
    %1342 = vmatpush1.msra.mxu0 %v180
    %1343 = vmatprep.subr.mxu0 0.0
    %1344 = vmatpush1.msra.mxu0 %v181
    %1345 = vmatprep.subr.mxu0 0.0
    %1346 = vmatpush1.msra.mxu0 0.0
    %1347 = vmatprep.subr.mxu0 0.0
    %1348 = vmatpush1.msra.mxu0 0.0
    %1349 = vmatprep.subr.mxu0 0.0
    %1350 = vmatpush1.msra.mxu0 0.0
    %1351 = vmatprep.subr.mxu0 0.0
    %1352 = vmatpush1.msra.mxu0 0.0
    %1353 = vmatprep.subr.mxu0 0.0
    %1354 = vmatpush1.msra.mxu0 0.0
    %1355 = vmatprep.subr.mxu0 0.0
    %1356 = vmatpush1.msra.mxu0 0.0
    %1357 = vmatprep.subr.mxu0 0.0
    %1358 = vmatpush1.msra.mxu0 0.0
    %1359 = vmatprep.subr.mxu0 0.0
    %1360 = vmatpush1.msra.mxu0 0.0
    %1361 = vmatprep.subr.mxu0 0.0
    %1362 = vmatpush1.msra.mxu0 0.0
    %1363 = vmatprep.subr.mxu0 0.0
    %1364 = vmatpush1.msra.mxu0 0.0
    %1365 = vmatprep.subr.mxu0 0.0
    %1366 = vmatpush1.msra.mxu0 0.0
    %1367 = vmatprep.subr.mxu0 0.0
    %1368 = vmatpush1.msra.mxu0 0.0
    %1369 = vmatprep.subr.mxu0 0.0
    %1370 = vmatpush1.msra.mxu0 0.0
    %1371 = vmatprep.subr.mxu0 0.0
    %1372 = vmatpush1.msra.mxu0 0.0
    %1373 = vmatprep.subr.mxu0 0.0
    %1374 = vmatpush1.msra.mxu0 0.0
    %1375 = vmatprep.subr.mxu0 0.0
    %1376 = vmatpush1.msra.mxu0 0.0
    %1377 = vmatprep.mubr.f32.mxu0 0.0
    %1378 = vmatmul.mubr.f32.gmra.mrb[0].mxu0 %v1312
    %v1379 = vpop.f32.mrb[0].mxu0
    %v1380 = vadd.f32 %v502, %v1379
    %v1381 = vpop.f32.mrb[0].mxu0
    %1382 = vdwg.mxu0
    %1383 = vmax.xlane.f32.xlu0 %v1380
    %v1384 = vpop.xlane.xlu0 %1383
    %vm1385 = vcmp.eq.f32.partialorder %v1380, %v1384
    %v1386 = vsel %vm1385, %v184, 128
    %v1387 = vand.u32 %v1386, 65535
    %v1388 = vshra.s32 %v1386, 16
    %v1389 = vcvt.s32.f32 %v1387
    %v1390 = vcvt.s32.f32 %v1388
    %1391 = vmin.xlane.f32.xlu0 %v1390
    %v1392 = vpop.xlane.xlu0 %1391
    %vm1393 = vcmp.eq.f32.partialorder %v1390, %v1392
    %v1394 = vsel %vm1393, %v1389, inf
    %1395 = vmin.xlane.f32.xlu0 %v1394
    %v1396 = vpop.xlane.xlu0 %1395
    %v1397 = vcvt.f32.s32 %v1396
    %v1398 = vcvt.f32.s32 %v1392
    %v1399 = vshll.u32 %v1398, 16
    %v1400 = vadd.s32 %v1399, %v1397
    %vm1401 = vcmp.eq.s32.totalorder %v184, %v1400
    %v1402 = vsel %vm1401, 1, 0
    %v1403 = vcvt.s32.f32 %v1402
    %v1404 = vsub.f32 %v1380, %v1384
    %v1405 = vmul.f32 %v1404, 1.442695
    %v1406 = vpow.pop %v1405
    %1407 = vadd.xlane.f32.xlu0 %v1406
    %v1408 = vpop.xlane.xlu0 %1407
    %v1409 = vlog2.pop %v1408
    %v1410 = vmul.f32 %v1409, 0.6931472
    %v1411 = vsub.f32 %v1404, %v1410
    %s1412 = scalar_lea.vmem [#allocation8], 16
    %1413 = vst [vmem:[%s1412] sm:$0xff] %v1411
    %1414 = vmatprep.subr.mxu0 %v70
    %1415 = vmatpush1.msra.mxu0 %v69
    %1416 = vmatprep.subr.mxu0 %v73
    %1417 = vmatpush1.msra.mxu0 %v72
    %1418 = vmatprep.subr.mxu0 %v76
    %1419 = vmatpush1.msra.mxu0 %v75
    %1420 = vmatprep.subr.mxu0 %v79
    %1421 = vmatpush1.msra.mxu0 %v78
    %1422 = vmatprep.subr.mxu0 %v82
    %1423 = vmatpush1.msra.mxu0 %v81
    %1424 = vmatprep.subr.mxu0 %v85
    %1425 = vmatpush1.msra.mxu0 %v84
    %1426 = vmatprep.subr.mxu0 %v88
    %1427 = vmatpush1.msra.mxu0 %v87
    %1428 = vmatprep.subr.mxu0 %v91
    %1429 = vmatpush1.msra.mxu0 %v90
    %1430 = vmatprep.subr.mxu0 %v94
    %1431 = vmatpush1.msra.mxu0 %v93
    %1432 = vmatprep.subr.mxu0 %v97
    %1433 = vmatpush1.msra.mxu0 %v96
    %1434 = vmatprep.subr.mxu0 %v100
    %1435 = vmatpush1.msra.mxu0 %v99
    %1436 = vmatprep.subr.mxu0 %v103
    %1437 = vmatpush1.msra.mxu0 %v102
    %1438 = vmatprep.subr.mxu0 %v106
    %1439 = vmatpush1.msra.mxu0 %v105
    %1440 = vmatprep.subr.mxu0 %v109
    %1441 = vmatpush1.msra.mxu0 %v108
    %1442 = vmatprep.subr.mxu0 %v112
    %1443 = vmatpush1.msra.mxu0 %v111
    %1444 = vmatprep.subr.mxu0 %v115
    %1445 = vmatpush1.msra.mxu0 %v114
    %1446 = vmatprep.subr.mxu0 0.0
    %1447 = vmatpush1.msra.mxu0 0.0
    %1448 = vmatprep.subr.mxu0 0.0
    %1449 = vmatpush1.msra.mxu0 0.0
    %1450 = vmatprep.subr.mxu0 0.0
    %1451 = vmatpush1.msra.mxu0 0.0
    %1452 = vmatprep.subr.mxu0 0.0
    %1453 = vmatpush1.msra.mxu0 0.0
    %1454 = vmatprep.subr.mxu0 0.0
    %1455 = vmatpush1.msra.mxu0 0.0
    %1456 = vmatprep.subr.mxu0 0.0
    %1457 = vmatpush1.msra.mxu0 0.0
    %1458 = vmatprep.subr.mxu0 0.0
    %1459 = vmatpush1.msra.mxu0 0.0
    %1460 = vmatprep.subr.mxu0 0.0
    %1461 = vmatpush1.msra.mxu0 0.0
    %1462 = vmatprep.subr.mxu0 0.0
    %1463 = vmatpush1.msra.mxu0 0.0
    %1464 = vmatprep.subr.mxu0 0.0
    %1465 = vmatpush1.msra.mxu0 0.0
    %1466 = vmatprep.subr.mxu0 0.0
    %1467 = vmatpush1.msra.mxu0 0.0
    %1468 = vmatprep.subr.mxu0 0.0
    %1469 = vmatpush1.msra.mxu0 0.0
    %1470 = vmatprep.subr.mxu0 0.0
    %1471 = vmatpush1.msra.mxu0 0.0
    %1472 = vmatprep.subr.mxu0 0.0
    %1473 = vmatpush1.msra.mxu0 0.0
    %1474 = vmatprep.subr.mxu0 0.0
    %1475 = vmatpush1.msra.mxu0 0.0
    %1476 = vmatprep.subr.mxu0 0.0
    %1477 = vmatpush1.msra.mxu0 0.0
    %1478 = vmatprep.mubr.f32.mxu0 0.0
    %1479 = vmatmul.mubr.f32.gmra.mrb[0].mxu0 %v1403
    %v1480 = vpop.f32.mrb[0].mxu0
    %v1481 = vadd.f32 0.0, %v1480
    %v1482 = vpop.f32.mrb[0].mxu0
    %v1483 = vadd.f32 0.0, %v1482
    %1484 = vdwg.mxu0
    %1485 = vmatprep.subr.mxu0 0.0
    %1486 = vmatpush1.msra.mxu0 %v71
    %1487 = vmatprep.subr.mxu0 0.0
    %1488 = vmatpush1.msra.mxu0 %v74
    %1489 = vmatprep.subr.mxu0 0.0
    %1490 = vmatpush1.msra.mxu0 %v77
    %1491 = vmatprep.subr.mxu0 0.0
    %1492 = vmatpush1.msra.mxu0 %v80
    %1493 = vmatprep.subr.mxu0 0.0
    %1494 = vmatpush1.msra.mxu0 %v83
    %1495 = vmatprep.subr.mxu0 0.0
    %1496 = vmatpush1.msra.mxu0 %v86
    %1497 = vmatprep.subr.mxu0 0.0
    %1498 = vmatpush1.msra.mxu0 %v89
    %1499 = vmatprep.subr.mxu0 0.0
    %1500 = vmatpush1.msra.mxu0 %v92
    %1501 = vmatprep.subr.mxu0 0.0
    %1502 = vmatpush1.msra.mxu0 %v95
    %1503 = vmatprep.subr.mxu0 0.0
    %1504 = vmatpush1.msra.mxu0 %v98
    %1505 = vmatprep.subr.mxu0 0.0
    %1506 = vmatpush1.msra.mxu0 %v101
    %1507 = vmatprep.subr.mxu0 0.0
    %1508 = vmatpush1.msra.mxu0 %v104
    %1509 = vmatprep.subr.mxu0 0.0
    %1510 = vmatpush1.msra.mxu0 %v107
    %1511 = vmatprep.subr.mxu0 0.0
    %1512 = vmatpush1.msra.mxu0 %v110
    %1513 = vmatprep.subr.mxu0 0.0
    %1514 = vmatpush1.msra.mxu0 %v113
    %1515 = vmatprep.subr.mxu0 0.0
    %1516 = vmatpush1.msra.mxu0 %v116
    %1517 = vmatprep.subr.mxu0 0.0
    %1518 = vmatpush1.msra.mxu0 0.0
    %1519 = vmatprep.subr.mxu0 0.0
    %1520 = vmatpush1.msra.mxu0 0.0
    %1521 = vmatprep.subr.mxu0 0.0
    %1522 = vmatpush1.msra.mxu0 0.0
    %1523 = vmatprep.subr.mxu0 0.0
    %1524 = vmatpush1.msra.mxu0 0.0
    %1525 = vmatprep.subr.mxu0 0.0
    %1526 = vmatpush1.msra.mxu0 0.0
    %1527 = vmatprep.subr.mxu0 0.0
    %1528 = vmatpush1.msra.mxu0 0.0
    %1529 = vmatprep.subr.mxu0 0.0
    %1530 = vmatpush1.msra.mxu0 0.0
    %1531 = vmatprep.subr.mxu0 0.0
    %1532 = vmatpush1.msra.mxu0 0.0
    %1533 = vmatprep.subr.mxu0 0.0
    %1534 = vmatpush1.msra.mxu0 0.0
    %1535 = vmatprep.subr.mxu0 0.0
    %1536 = vmatpush1.msra.mxu0 0.0
    %1537 = vmatprep.subr.mxu0 0.0
    %1538 = vmatpush1.msra.mxu0 0.0
    %1539 = vmatprep.subr.mxu0 0.0
    %1540 = vmatpush1.msra.mxu0 0.0
    %1541 = vmatprep.subr.mxu0 0.0
    %1542 = vmatpush1.msra.mxu0 0.0
    %1543 = vmatprep.subr.mxu0 0.0
    %1544 = vmatpush1.msra.mxu0 0.0
    %1545 = vmatprep.subr.mxu0 0.0
    %1546 = vmatpush1.msra.mxu0 0.0
    %1547 = vmatprep.subr.mxu0 0.0
    %1548 = vmatpush1.msra.mxu0 0.0
    %1549 = vmatprep.mubr.f32.mxu0 0.0
    %1550 = vmatmul.mubr.f32.gmra.mrb[0].mxu0 %v1403
    %v1551 = vpop.f32.mrb[0].mxu0
    %v1552 = vadd.f32 0.0, %v1551
    %v1553 = vpop.f32.mrb[0].mxu0
    %1554 = vdwg.mxu0
    %1555 = vmatprep.subr.mxu0 %v118
    %1556 = vmatpush1.msra.mxu0 %v117
    %1557 = vmatprep.subr.mxu0 %v121
    %1558 = vmatpush1.msra.mxu0 %v120
    %1559 = vmatprep.subr.mxu0 %v124
    %1560 = vmatpush1.msra.mxu0 %v123
    %1561 = vmatprep.subr.mxu0 %v127
    %1562 = vmatpush1.msra.mxu0 %v126
    %1563 = vmatprep.subr.mxu0 %v130
    %1564 = vmatpush1.msra.mxu0 %v129
    %1565 = vmatprep.subr.mxu0 %v133
    %1566 = vmatpush1.msra.mxu0 %v132
    %1567 = vmatprep.subr.mxu0 %v136
    %1568 = vmatpush1.msra.mxu0 %v135
    %1569 = vmatprep.subr.mxu0 %v139
    %1570 = vmatpush1.msra.mxu0 %v138
    %1571 = vmatprep.subr.mxu0 %v142
    %1572 = vmatpush1.msra.mxu0 %v141
    %1573 = vmatprep.subr.mxu0 %v145
    %1574 = vmatpush1.msra.mxu0 %v144
    %1575 = vmatprep.subr.mxu0 %v148
    %1576 = vmatpush1.msra.mxu0 %v147
    %1577 = vmatprep.subr.mxu0 %v151
    %1578 = vmatpush1.msra.mxu0 %v150
    %1579 = vmatprep.subr.mxu0 %v154
    %1580 = vmatpush1.msra.mxu0 %v153
    %1581 = vmatprep.subr.mxu0 %v157
    %1582 = vmatpush1.msra.mxu0 %v156
    %1583 = vmatprep.subr.mxu0 %v160
    %1584 = vmatpush1.msra.mxu0 %v159
    %1585 = vmatprep.subr.mxu0 %v163
    %1586 = vmatpush1.msra.mxu0 %v162
    %1587 = vmatprep.subr.mxu0 0.0
    %1588 = vmatpush1.msra.mxu0 0.0
    %1589 = vmatprep.subr.mxu0 0.0
    %1590 = vmatpush1.msra.mxu0 0.0
    %1591 = vmatprep.subr.mxu0 0.0
    %1592 = vmatpush1.msra.mxu0 0.0
    %1593 = vmatprep.subr.mxu0 0.0
    %1594 = vmatpush1.msra.mxu0 0.0
    %1595 = vmatprep.subr.mxu0 0.0
    %1596 = vmatpush1.msra.mxu0 0.0
    %1597 = vmatprep.subr.mxu0 0.0
    %1598 = vmatpush1.msra.mxu0 0.0
    %1599 = vmatprep.subr.mxu0 0.0
    %1600 = vmatpush1.msra.mxu0 0.0
    %1601 = vmatprep.subr.mxu0 0.0
    %1602 = vmatpush1.msra.mxu0 0.0
    %1603 = vmatprep.subr.mxu0 0.0
    %1604 = vmatpush1.msra.mxu0 0.0
    %1605 = vmatprep.subr.mxu0 0.0
    %1606 = vmatpush1.msra.mxu0 0.0
    %1607 = vmatprep.subr.mxu0 0.0
    %1608 = vmatpush1.msra.mxu0 0.0
    %1609 = vmatprep.subr.mxu0 0.0
    %1610 = vmatpush1.msra.mxu0 0.0
    %1611 = vmatprep.subr.mxu0 0.0
    %1612 = vmatpush1.msra.mxu0 0.0
    %1613 = vmatprep.subr.mxu0 0.0
    %1614 = vmatpush1.msra.mxu0 0.0
    %1615 = vmatprep.subr.mxu0 0.0
    %1616 = vmatpush1.msra.mxu0 0.0
    %1617 = vmatprep.subr.mxu0 0.0
    %1618 = vmatpush1.msra.mxu0 0.0
    %1619 = vmatprep.mubr.f32.mxu0 0.0
    %1620 = vmatmul.mubr.f32.gmra.mrb[0].mxu0 %v1312
    %v1621 = vpop.f32.mrb[0].mxu0
    %v1622 = vadd.f32 0.0, %v1621
    %v1623 = vpop.f32.mrb[0].mxu0
    %v1624 = vadd.f32 0.0, %v1623
    %1625 = vdwg.mxu0
    %1626 = vmatprep.subr.mxu0 0.0
    %1627 = vmatpush1.msra.mxu0 %v119
    %1628 = vmatprep.subr.mxu0 0.0
    %1629 = vmatpush1.msra.mxu0 %v122
    %1630 = vmatprep.subr.mxu0 0.0
    %1631 = vmatpush1.msra.mxu0 %v125
    %1632 = vmatprep.subr.mxu0 0.0
    %1633 = vmatpush1.msra.mxu0 %v128
    %1634 = vmatprep.subr.mxu0 0.0
    %1635 = vmatpush1.msra.mxu0 %v131
    %1636 = vmatprep.subr.mxu0 0.0
    %1637 = vmatpush1.msra.mxu0 %v134
    %1638 = vmatprep.subr.mxu0 0.0
    %1639 = vmatpush1.msra.mxu0 %v137
    %1640 = vmatprep.subr.mxu0 0.0
    %1641 = vmatpush1.msra.mxu0 %v140
    %1642 = vmatprep.subr.mxu0 0.0
    %1643 = vmatpush1.msra.mxu0 %v143
    %1644 = vmatprep.subr.mxu0 0.0
    %1645 = vmatpush1.msra.mxu0 %v146
    %1646 = vmatprep.subr.mxu0 0.0
    %1647 = vmatpush1.msra.mxu0 %v149
    %1648 = vmatprep.subr.mxu0 0.0
    %1649 = vmatpush1.msra.mxu0 %v152
    %1650 = vmatprep.subr.mxu0 0.0
    %1651 = vmatpush1.msra.mxu0 %v155
    %1652 = vmatprep.subr.mxu0 0.0
    %1653 = vmatpush1.msra.mxu0 %v158
    %1654 = vmatprep.subr.mxu0 0.0
    %1655 = vmatpush1.msra.mxu0 %v161
    %1656 = vmatprep.subr.mxu0 0.0
    %1657 = vmatpush1.msra.mxu0 %v164
    %1658 = vmatprep.subr.mxu0 0.0
    %1659 = vmatpush1.msra.mxu0 0.0
    %1660 = vmatprep.subr.mxu0 0.0
    %1661 = vmatpush1.msra.mxu0 0.0
    %1662 = vmatprep.subr.mxu0 0.0
    %1663 = vmatpush1.msra.mxu0 0.0
    %1664 = vmatprep.subr.mxu0 0.0
    %1665 = vmatpush1.msra.mxu0 0.0
    %1666 = vmatprep.subr.mxu0 0.0
    %1667 = vmatpush1.msra.mxu0 0.0
    %1668 = vmatprep.subr.mxu0 0.0
    %1669 = vmatpush1.msra.mxu0 0.0
    %1670 = vmatprep.subr.mxu0 0.0
    %1671 = vmatpush1.msra.mxu0 0.0
    %1672 = vmatprep.subr.mxu0 0.0
    %1673 = vmatpush1.msra.mxu0 0.0
    %1674 = vmatprep.subr.mxu0 0.0
    %1675 = vmatpush1.msra.mxu0 0.0
    %1676 = vmatprep.subr.mxu0 0.0
    %1677 = vmatpush1.msra.mxu0 0.0
    %1678 = vmatprep.subr.mxu0 0.0
    %1679 = vmatpush1.msra.mxu0 0.0
    %1680 = vmatprep.subr.mxu0 0.0
    %1681 = vmatpush1.msra.mxu0 0.0
    %1682 = vmatprep.subr.mxu0 0.0
    %1683 = vmatpush1.msra.mxu0 0.0
    %1684 = vmatprep.subr.mxu0 0.0
    %1685 = vmatpush1.msra.mxu0 0.0
    %1686 = vmatprep.subr.mxu0 0.0
    %1687 = vmatpush1.msra.mxu0 0.0
    %1688 = vmatprep.subr.mxu0 0.0
    %1689 = vmatpush1.msra.mxu0 0.0
    %1690 = vmatprep.mubr.f32.mxu0 0.0
    %1691 = vmatmul.mubr.f32.gmra.mrb[0].mxu0 %v1312
    %v1692 = vpop.f32.mrb[0].mxu0
    %v1693 = vadd.f32 0.0, %v1692
    %v1694 = vpop.f32.mrb[0].mxu0
    %1695 = vdwg.mxu0
    %v1696 = vadd.f32 %v1481, %v1622
    %v1697 = vxor.u32 %v1696, 2147483648
    %v1698 = vmul.f32 %v1697, 1.442695
    %v1699 = vpow.pop %v1698
    %v1700 = vadd.f32 %v1699, 1.0
    %v1701 = vrcp.pop %v1700
    %v1702 = vmul.f32 1.0, %v1701
    %v1703 = vadd.f32 %v1483, %v1624
    %v1704 = vxor.u32 %v1703, 2147483648
    %v1705 = vmul.f32 %v1704, 1.442695
    %v1706 = vpow.pop %v1705
    %v1707 = vadd.f32 %v1706, 1.0
    %v1708 = vrcp.pop %v1707
    %v1709 = vmul.f32 1.0, %v1708
    %v1710 = vadd.f32 %v1693, %v488
    %v1711 = vmul.f32 %v1702, %v1710
    %v1712 = vadd.f32 %v1552, %v1711
    %v1713 = vtanh.pop %v1712
    %v1714 = vsub.f32 1.0, %v1709
    %v1715 = vmul.f32 %v1714, %v1713
    %v1716 = vmul.f32 %v1709, %v1312
    %v1717 = vadd.f32 %v1715, %v1716
    %1718 = vmatprep.subr.mxu0 0.0
    %1719 = vmatpush1.msra.mxu0 %v166
    %1720 = vmatprep.subr.mxu0 0.0
    %1721 = vmatpush1.msra.mxu0 %v167
    %1722 = vmatprep.subr.mxu0 0.0
    %1723 = vmatpush1.msra.mxu0 %v168
    %1724 = vmatprep.subr.mxu0 0.0
    %1725 = vmatpush1.msra.mxu0 %v169
    %1726 = vmatprep.subr.mxu0 0.0
    %1727 = vmatpush1.msra.mxu0 %v170
    %1728 = vmatprep.subr.mxu0 0.0
    %1729 = vmatpush1.msra.mxu0 %v171
    %1730 = vmatprep.subr.mxu0 0.0
    %1731 = vmatpush1.msra.mxu0 %v172
    %1732 = vmatprep.subr.mxu0 0.0
    %1733 = vmatpush1.msra.mxu0 %v173
    %1734 = vmatprep.subr.mxu0 0.0
    %1735 = vmatpush1.msra.mxu0 %v174
    %1736 = vmatprep.subr.mxu0 0.0
    %1737 = vmatpush1.msra.mxu0 %v175
    %1738 = vmatprep.subr.mxu0 0.0
    %1739 = vmatpush1.msra.mxu0 %v176
    %1740 = vmatprep.subr.mxu0 0.0
    %1741 = vmatpush1.msra.mxu0 %v177
    %1742 = vmatprep.subr.mxu0 0.0
    %1743 = vmatpush1.msra.mxu0 %v178
    %1744 = vmatprep.subr.mxu0 0.0
    %1745 = vmatpush1.msra.mxu0 %v179
    %1746 = vmatprep.subr.mxu0 0.0
    %1747 = vmatpush1.msra.mxu0 %v180
    %1748 = vmatprep.subr.mxu0 0.0
    %1749 = vmatpush1.msra.mxu0 %v181
    %1750 = vmatprep.subr.mxu0 0.0
    %1751 = vmatpush1.msra.mxu0 0.0
    %1752 = vmatprep.subr.mxu0 0.0
    %1753 = vmatpush1.msra.mxu0 0.0
    %1754 = vmatprep.subr.mxu0 0.0
    %1755 = vmatpush1.msra.mxu0 0.0
    %1756 = vmatprep.subr.mxu0 0.0
    %1757 = vmatpush1.msra.mxu0 0.0
    %1758 = vmatprep.subr.mxu0 0.0
    %1759 = vmatpush1.msra.mxu0 0.0
    %1760 = vmatprep.subr.mxu0 0.0
    %1761 = vmatpush1.msra.mxu0 0.0
    %1762 = vmatprep.subr.mxu0 0.0
    %1763 = vmatpush1.msra.mxu0 0.0
    %1764 = vmatprep.subr.mxu0 0.0
    %1765 = vmatpush1.msra.mxu0 0.0
    %1766 = vmatprep.subr.mxu0 0.0
    %1767 = vmatpush1.msra.mxu0 0.0
    %1768 = vmatprep.subr.mxu0 0.0
    %1769 = vmatpush1.msra.mxu0 0.0
    %1770 = vmatprep.subr.mxu0 0.0
    %1771 = vmatpush1.msra.mxu0 0.0
    %1772 = vmatprep.subr.mxu0 0.0
    %1773 = vmatpush1.msra.mxu0 0.0
    %1774 = vmatprep.subr.mxu0 0.0
    %1775 = vmatpush1.msra.mxu0 0.0
    %1776 = vmatprep.subr.mxu0 0.0
    %1777 = vmatpush1.msra.mxu0 0.0
    %1778 = vmatprep.subr.mxu0 0.0
    %1779 = vmatpush1.msra.mxu0 0.0
    %1780 = vmatprep.subr.mxu0 0.0
    %1781 = vmatpush1.msra.mxu0 0.0
    %1782 = vmatprep.mubr.f32.mxu0 0.0
    %1783 = vmatmul.mubr.f32.gmra.mrb[0].mxu0 %v1717
    %v1784 = vpop.f32.mrb[0].mxu0
    %v1785 = vadd.f32 %v502, %v1784
    %v1786 = vpop.f32.mrb[0].mxu0
    %1787 = vdwg.mxu0
    %1788 = vmax.xlane.f32.xlu0 %v1785
    %v1789 = vpop.xlane.xlu0 %1788
    %vm1790 = vcmp.eq.f32.partialorder %v1785, %v1789
    %v1791 = vsel %vm1790, %v184, 128
    %v1792 = vand.u32 %v1791, 65535
    %v1793 = vshra.s32 %v1791, 16
    %v1794 = vcvt.s32.f32 %v1792
    %v1795 = vcvt.s32.f32 %v1793
    %1796 = vmin.xlane.f32.xlu0 %v1795
    %v1797 = vpop.xlane.xlu0 %1796
    %vm1798 = vcmp.eq.f32.partialorder %v1795, %v1797
    %v1799 = vsel %vm1798, %v1794, inf
    %1800 = vmin.xlane.f32.xlu0 %v1799
    %v1801 = vpop.xlane.xlu0 %1800
    %v1802 = vcvt.f32.s32 %v1801
    %v1803 = vcvt.f32.s32 %v1797
    %v1804 = vshll.u32 %v1803, 16
    %v1805 = vadd.s32 %v1804, %v1802
    %vm1806 = vcmp.eq.s32.totalorder %v184, %v1805
    %v1807 = vsel %vm1806, 1, 0
    %v1808 = vcvt.s32.f32 %v1807
    %v1809 = vsub.f32 %v1785, %v1789
    %v1810 = vmul.f32 %v1809, 1.442695
    %v1811 = vpow.pop %v1810
    %1812 = vadd.xlane.f32.xlu0 %v1811
    %v1813 = vpop.xlane.xlu0 %1812
    %v1814 = vlog2.pop %v1813
    %v1815 = vmul.f32 %v1814, 0.6931472
    %v1816 = vsub.f32 %v1809, %v1815
    %s1817 = scalar_lea.vmem [#allocation8], 24
    %1818 = vst [vmem:[%s1817] sm:$0xff] %v1816
    %1819 = vmatprep.subr.mxu0 %v70
    %1820 = vmatpush1.msra.mxu0 %v69
    %1821 = vmatprep.subr.mxu0 %v73
    %1822 = vmatpush1.msra.mxu0 %v72
    %1823 = vmatprep.subr.mxu0 %v76
    %1824 = vmatpush1.msra.mxu0 %v75
    %1825 = vmatprep.subr.mxu0 %v79
    %1826 = vmatpush1.msra.mxu0 %v78
    %1827 = vmatprep.subr.mxu0 %v82
    %1828 = vmatpush1.msra.mxu0 %v81
    %1829 = vmatprep.subr.mxu0 %v85
    %1830 = vmatpush1.msra.mxu0 %v84
    %1831 = vmatprep.subr.mxu0 %v88
    %1832 = vmatpush1.msra.mxu0 %v87
    %1833 = vmatprep.subr.mxu0 %v91
    %1834 = vmatpush1.msra.mxu0 %v90
    %1835 = vmatprep.subr.mxu0 %v94
    %1836 = vmatpush1.msra.mxu0 %v93
    %1837 = vmatprep.subr.mxu0 %v97
    %1838 = vmatpush1.msra.mxu0 %v96
    %1839 = vmatprep.subr.mxu0 %v100
    %1840 = vmatpush1.msra.mxu0 %v99
    %1841 = vmatprep.subr.mxu0 %v103
    %1842 = vmatpush1.msra.mxu0 %v102
    %1843 = vmatprep.subr.mxu0 %v106
    %1844 = vmatpush1.msra.mxu0 %v105
    %1845 = vmatprep.subr.mxu0 %v109
    %1846 = vmatpush1.msra.mxu0 %v108
    %1847 = vmatprep.subr.mxu0 %v112
    %1848 = vmatpush1.msra.mxu0 %v111
    %1849 = vmatprep.subr.mxu0 %v115
    %1850 = vmatpush1.msra.mxu0 %v114
    %1851 = vmatprep.subr.mxu0 0.0
    %1852 = vmatpush1.msra.mxu0 0.0
    %1853 = vmatprep.subr.mxu0 0.0
    %1854 = vmatpush1.msra.mxu0 0.0
    %1855 = vmatprep.subr.mxu0 0.0
    %1856 = vmatpush1.msra.mxu0 0.0
    %1857 = vmatprep.subr.mxu0 0.0
    %1858 = vmatpush1.msra.mxu0 0.0
    %1859 = vmatprep.subr.mxu0 0.0
    %1860 = vmatpush1.msra.mxu0 0.0
    %1861 = vmatprep.subr.mxu0 0.0
    %1862 = vmatpush1.msra.mxu0 0.0
    %1863 = vmatprep.subr.mxu0 0.0
    %1864 = vmatpush1.msra.mxu0 0.0
    %1865 = vmatprep.subr.mxu0 0.0
    %1866 = vmatpush1.msra.mxu0 0.0
    %1867 = vmatprep.subr.mxu0 0.0
    %1868 = vmatpush1.msra.mxu0 0.0
    %1869 = vmatprep.subr.mxu0 0.0
    %1870 = vmatpush1.msra.mxu0 0.0
    %1871 = vmatprep.subr.mxu0 0.0
    %1872 = vmatpush1.msra.mxu0 0.0
    %1873 = vmatprep.subr.mxu0 0.0
    %1874 = vmatpush1.msra.mxu0 0.0
    %1875 = vmatprep.subr.mxu0 0.0
    %1876 = vmatpush1.msra.mxu0 0.0
    %1877 = vmatprep.subr.mxu0 0.0
    %1878 = vmatpush1.msra.mxu0 0.0
    %1879 = vmatprep.subr.mxu0 0.0
    %1880 = vmatpush1.msra.mxu0 0.0
    %1881 = vmatprep.subr.mxu0 0.0
    %1882 = vmatpush1.msra.mxu0 0.0
    %1883 = vmatprep.mubr.f32.mxu0 0.0
    %1884 = vmatmul.mubr.f32.gmra.mrb[0].mxu0 %v1808
    %v1885 = vpop.f32.mrb[0].mxu0
    %v1886 = vadd.f32 0.0, %v1885
    %v1887 = vpop.f32.mrb[0].mxu0
    %v1888 = vadd.f32 0.0, %v1887
    %1889 = vdwg.mxu0
    %1890 = vmatprep.subr.mxu0 0.0
    %1891 = vmatpush1.msra.mxu0 %v71
    %1892 = vmatprep.subr.mxu0 0.0
    %1893 = vmatpush1.msra.mxu0 %v74
    %1894 = vmatprep.subr.mxu0 0.0
    %1895 = vmatpush1.msra.mxu0 %v77
    %1896 = vmatprep.subr.mxu0 0.0
    %1897 = vmatpush1.msra.mxu0 %v80
    %1898 = vmatprep.subr.mxu0 0.0
    %1899 = vmatpush1.msra.mxu0 %v83
    %1900 = vmatprep.subr.mxu0 0.0
    %1901 = vmatpush1.msra.mxu0 %v86
    %1902 = vmatprep.subr.mxu0 0.0
    %1903 = vmatpush1.msra.mxu0 %v89
    %1904 = vmatprep.subr.mxu0 0.0
    %1905 = vmatpush1.msra.mxu0 %v92
    %1906 = vmatprep.subr.mxu0 0.0
    %1907 = vmatpush1.msra.mxu0 %v95
    %1908 = vmatprep.subr.mxu0 0.0
    %1909 = vmatpush1.msra.mxu0 %v98
    %1910 = vmatprep.subr.mxu0 0.0
    %1911 = vmatpush1.msra.mxu0 %v101
    %1912 = vmatprep.subr.mxu0 0.0
    %1913 = vmatpush1.msra.mxu0 %v104
    %1914 = vmatprep.subr.mxu0 0.0
    %1915 = vmatpush1.msra.mxu0 %v107
    %1916 = vmatprep.subr.mxu0 0.0
    %1917 = vmatpush1.msra.mxu0 %v110
    %1918 = vmatprep.subr.mxu0 0.0
    %1919 = vmatpush1.msra.mxu0 %v113
    %1920 = vmatprep.subr.mxu0 0.0
    %1921 = vmatpush1.msra.mxu0 %v116
    %1922 = vmatprep.subr.mxu0 0.0
    %1923 = vmatpush1.msra.mxu0 0.0
    %1924 = vmatprep.subr.mxu0 0.0
    %1925 = vmatpush1.msra.mxu0 0.0
    %1926 = vmatprep.subr.mxu0 0.0
    %1927 = vmatpush1.msra.mxu0 0.0
    %1928 = vmatprep.subr.mxu0 0.0
    %1929 = vmatpush1.msra.mxu0 0.0
    %1930 = vmatprep.subr.mxu0 0.0
    %1931 = vmatpush1.msra.mxu0 0.0
    %1932 = vmatprep.subr.mxu0 0.0
    %1933 = vmatpush1.msra.mxu0 0.0
    %1934 = vmatprep.subr.mxu0 0.0
    %1935 = vmatpush1.msra.mxu0 0.0
    %1936 = vmatprep.subr.mxu0 0.0
    %1937 = vmatpush1.msra.mxu0 0.0
    %1938 = vmatprep.subr.mxu0 0.0
    %1939 = vmatpush1.msra.mxu0 0.0
    %1940 = vmatprep.subr.mxu0 0.0
    %1941 = vmatpush1.msra.mxu0 0.0
    %1942 = vmatprep.subr.mxu0 0.0
    %1943 = vmatpush1.msra.mxu0 0.0
    %1944 = vmatprep.subr.mxu0 0.0
    %1945 = vmatpush1.msra.mxu0 0.0
    %1946 = vmatprep.subr.mxu0 0.0
    %1947 = vmatpush1.msra.mxu0 0.0
    %1948 = vmatprep.subr.mxu0 0.0
    %1949 = vmatpush1.msra.mxu0 0.0
    %1950 = vmatprep.subr.mxu0 0.0
    %1951 = vmatpush1.msra.mxu0 0.0
    %1952 = vmatprep.subr.mxu0 0.0
    %1953 = vmatpush1.msra.mxu0 0.0
    %1954 = vmatprep.mubr.f32.mxu0 0.0
    %1955 = vmatmul.mubr.f32.gmra.mrb[0].mxu0 %v1808
    %v1956 = vpop.f32.mrb[0].mxu0
    %v1957 = vadd.f32 0.0, %v1956
    %v1958 = vpop.f32.mrb[0].mxu0
    %1959 = vdwg.mxu0
    %1960 = vmatprep.subr.mxu0 %v118
    %1961 = vmatpush1.msra.mxu0 %v117
    %1962 = vmatprep.subr.mxu0 %v121
    %1963 = vmatpush1.msra.mxu0 %v120
    %1964 = vmatprep.subr.mxu0 %v124
    %1965 = vmatpush1.msra.mxu0 %v123
    %1966 = vmatprep.subr.mxu0 %v127
    %1967 = vmatpush1.msra.mxu0 %v126
    %1968 = vmatprep.subr.mxu0 %v130
    %1969 = vmatpush1.msra.mxu0 %v129
    %1970 = vmatprep.subr.mxu0 %v133
    %1971 = vmatpush1.msra.mxu0 %v132
    %1972 = vmatprep.subr.mxu0 %v136
    %1973 = vmatpush1.msra.mxu0 %v135
    %1974 = vmatprep.subr.mxu0 %v139
    %1975 = vmatpush1.msra.mxu0 %v138
    %1976 = vmatprep.subr.mxu0 %v142
    %1977 = vmatpush1.msra.mxu0 %v141
    %1978 = vmatprep.subr.mxu0 %v145
    %1979 = vmatpush1.msra.mxu0 %v144
    %1980 = vmatprep.subr.mxu0 %v148
    %1981 = vmatpush1.msra.mxu0 %v147
    %1982 = vmatprep.subr.mxu0 %v151
    %1983 = vmatpush1.msra.mxu0 %v150
    %1984 = vmatprep.subr.mxu0 %v154
    %1985 = vmatpush1.msra.mxu0 %v153
    %1986 = vmatprep.subr.mxu0 %v157
    %1987 = vmatpush1.msra.mxu0 %v156
    %1988 = vmatprep.subr.mxu0 %v160
    %1989 = vmatpush1.msra.mxu0 %v159
    %1990 = vmatprep.subr.mxu0 %v163
    %1991 = vmatpush1.msra.mxu0 %v162
    %1992 = vmatprep.subr.mxu0 0.0
    %1993 = vmatpush1.msra.mxu0 0.0
    %1994 = vmatprep.subr.mxu0 0.0
    %1995 = vmatpush1.msra.mxu0 0.0
    %1996 = vmatprep.subr.mxu0 0.0
    %1997 = vmatpush1.msra.mxu0 0.0
    %1998 = vmatprep.subr.mxu0 0.0
    %1999 = vmatpush1.msra.mxu0 0.0
    %2000 = vmatprep.subr.mxu0 0.0
    %2001 = vmatpush1.msra.mxu0 0.0
    %2002 = vmatprep.subr.mxu0 0.0
    %2003 = vmatpush1.msra.mxu0 0.0
    %2004 = vmatprep.subr.mxu0 0.0
    %2005 = vmatpush1.msra.mxu0 0.0
    %2006 = vmatprep.subr.mxu0 0.0
    %2007 = vmatpush1.msra.mxu0 0.0
    %2008 = vmatprep.subr.mxu0 0.0
    %2009 = vmatpush1.msra.mxu0 0.0
    %2010 = vmatprep.subr.mxu0 0.0
    %2011 = vmatpush1.msra.mxu0 0.0
    %2012 = vmatprep.subr.mxu0 0.0
    %2013 = vmatpush1.msra.mxu0 0.0
    %2014 = vmatprep.subr.mxu0 0.0
    %2015 = vmatpush1.msra.mxu0 0.0
    %2016 = vmatprep.subr.mxu0 0.0
    %2017 = vmatpush1.msra.mxu0 0.0
    %2018 = vmatprep.subr.mxu0 0.0
    %2019 = vmatpush1.msra.mxu0 0.0
    %2020 = vmatprep.subr.mxu0 0.0
    %2021 = vmatpush1.msra.mxu0 0.0
    %2022 = vmatprep.subr.mxu0 0.0
    %2023 = vmatpush1.msra.mxu0 0.0
    %2024 = vmatprep.mubr.f32.mxu0 0.0
    %2025 = vmatmul.mubr.f32.gmra.mrb[0].mxu0 %v1717
    %v2026 = vpop.f32.mrb[0].mxu0
    %v2027 = vadd.f32 0.0, %v2026
    %v2028 = vpop.f32.mrb[0].mxu0
    %v2029 = vadd.f32 0.0, %v2028
    %2030 = vdwg.mxu0
    %2031 = vmatprep.subr.mxu0 0.0
    %2032 = vmatpush1.msra.mxu0 %v119
    %2033 = vmatprep.subr.mxu0 0.0
    %2034 = vmatpush1.msra.mxu0 %v122
    %2035 = vmatprep.subr.mxu0 0.0
    %2036 = vmatpush1.msra.mxu0 %v125
    %2037 = vmatprep.subr.mxu0 0.0
    %2038 = vmatpush1.msra.mxu0 %v128
    %2039 = vmatprep.subr.mxu0 0.0
    %2040 = vmatpush1.msra.mxu0 %v131
    %2041 = vmatprep.subr.mxu0 0.0
    %2042 = vmatpush1.msra.mxu0 %v134
    %2043 = vmatprep.subr.mxu0 0.0
    %2044 = vmatpush1.msra.mxu0 %v137
    %2045 = vmatprep.subr.mxu0 0.0
    %2046 = vmatpush1.msra.mxu0 %v140
    %2047 = vmatprep.subr.mxu0 0.0
    %2048 = vmatpush1.msra.mxu0 %v143
    %2049 = vmatprep.subr.mxu0 0.0
    %2050 = vmatpush1.msra.mxu0 %v146
    %2051 = vmatprep.subr.mxu0 0.0
    %2052 = vmatpush1.msra.mxu0 %v149
    %2053 = vmatprep.subr.mxu0 0.0
    %2054 = vmatpush1.msra.mxu0 %v152
    %2055 = vmatprep.subr.mxu0 0.0
    %2056 = vmatpush1.msra.mxu0 %v155
    %2057 = vmatprep.subr.mxu0 0.0
    %2058 = vmatpush1.msra.mxu0 %v158
    %2059 = vmatprep.subr.mxu0 0.0
    %2060 = vmatpush1.msra.mxu0 %v161
    %2061 = vmatprep.subr.mxu0 0.0
    %2062 = vmatpush1.msra.mxu0 %v164
    %2063 = vmatprep.subr.mxu0 0.0
    %2064 = vmatpush1.msra.mxu0 0.0
    %2065 = vmatprep.subr.mxu0 0.0
    %2066 = vmatpush1.msra.mxu0 0.0
    %2067 = vmatprep.subr.mxu0 0.0
    %2068 = vmatpush1.msra.mxu0 0.0
    %2069 = vmatprep.subr.mxu0 0.0
    %2070 = vmatpush1.msra.mxu0 0.0
    %2071 = vmatprep.subr.mxu0 0.0
    %2072 = vmatpush1.msra.mxu0 0.0
    %2073 = vmatprep.subr.mxu0 0.0
    %2074 = vmatpush1.msra.mxu0 0.0
    %2075 = vmatprep.subr.mxu0 0.0
    %2076 = vmatpush1.msra.mxu0 0.0
    %2077 = vmatprep.subr.mxu0 0.0
    %2078 = vmatpush1.msra.mxu0 0.0
    %2079 = vmatprep.subr.mxu0 0.0
    %2080 = vmatpush1.msra.mxu0 0.0
    %2081 = vmatprep.subr.mxu0 0.0
    %2082 = vmatpush1.msra.mxu0 0.0
    %2083 = vmatprep.subr.mxu0 0.0
    %2084 = vmatpush1.msra.mxu0 0.0
    %2085 = vmatprep.subr.mxu0 0.0
    %2086 = vmatpush1.msra.mxu0 0.0
    %2087 = vmatprep.subr.mxu0 0.0
    %2088 = vmatpush1.msra.mxu0 0.0
    %2089 = vmatprep.subr.mxu0 0.0
    %2090 = vmatpush1.msra.mxu0 0.0
    %2091 = vmatprep.subr.mxu0 0.0
    %2092 = vmatpush1.msra.mxu0 0.0
    %2093 = vmatprep.subr.mxu0 0.0
    %2094 = vmatpush1.msra.mxu0 0.0
    %2095 = vmatprep.mubr.f32.mxu0 0.0
    %2096 = vmatmul.mubr.f32.gmra.mrb[0].mxu0 %v1717
    %v2097 = vpop.f32.mrb[0].mxu0
    %v2098 = vadd.f32 0.0, %v2097
    %v2099 = vpop.f32.mrb[0].mxu0
    %2100 = vdwg.mxu0
    %v2101 = vadd.f32 %v1886, %v2027
    %v2102 = vxor.u32 %v2101, 2147483648
    %v2103 = vmul.f32 %v2102, 1.442695
    %v2104 = vpow.pop %v2103
    %v2105 = vadd.f32 %v2104, 1.0
    %v2106 = vrcp.pop %v2105
    %v2107 = vmul.f32 1.0, %v2106
    %v2108 = vadd.f32 %v1888, %v2029
    %v2109 = vxor.u32 %v2108, 2147483648
    %v2110 = vmul.f32 %v2109, 1.442695
    %v2111 = vpow.pop %v2110
    %v2112 = vadd.f32 %v2111, 1.0
    %v2113 = vrcp.pop %v2112
    %v2114 = vmul.f32 1.0, %v2113
    %v2115 = vadd.f32 %v2098, %v488
    %v2116 = vmul.f32 %v2107, %v2115
    %v2117 = vadd.f32 %v1957, %v2116
    %v2118 = vtanh.pop %v2117
    %v2119 = vsub.f32 1.0, %v2114
    %v2120 = vmul.f32 %v2119, %v2118
    %v2121 = vmul.f32 %v2114, %v1717
    %v2122 = vadd.f32 %v2120, %v2121
    %2123 = vmatprep.subr.mxu0 0.0
    %2124 = vmatpush1.msra.mxu0 %v166
    %2125 = vmatprep.subr.mxu0 0.0
    %2126 = vmatpush1.msra.mxu0 %v167
    %2127 = vmatprep.subr.mxu0 0.0
    %2128 = vmatpush1.msra.mxu0 %v168
    %2129 = vmatprep.subr.mxu0 0.0
    %2130 = vmatpush1.msra.mxu0 %v169
    %2131 = vmatprep.subr.mxu0 0.0
    %2132 = vmatpush1.msra.mxu0 %v170
    %2133 = vmatprep.subr.mxu0 0.0
    %2134 = vmatpush1.msra.mxu0 %v171
    %2135 = vmatprep.subr.mxu0 0.0
    %2136 = vmatpush1.msra.mxu0 %v172
    %2137 = vmatprep.subr.mxu0 0.0
    %2138 = vmatpush1.msra.mxu0 %v173
    %2139 = vmatprep.subr.mxu0 0.0
    %2140 = vmatpush1.msra.mxu0 %v174
    %2141 = vmatprep.subr.mxu0 0.0
    %2142 = vmatpush1.msra.mxu0 %v175
    %2143 = vmatprep.subr.mxu0 0.0
    %2144 = vmatpush1.msra.mxu0 %v176
    %2145 = vmatprep.subr.mxu0 0.0
    %2146 = vmatpush1.msra.mxu0 %v177
    %2147 = vmatprep.subr.mxu0 0.0
    %2148 = vmatpush1.msra.mxu0 %v178
    %2149 = vmatprep.subr.mxu0 0.0
    %2150 = vmatpush1.msra.mxu0 %v179
    %2151 = vmatprep.subr.mxu0 0.0
    %2152 = vmatpush1.msra.mxu0 %v180
    %2153 = vmatprep.subr.mxu0 0.0
    %2154 = vmatpush1.msra.mxu0 %v181
    %2155 = vmatprep.subr.mxu0 0.0
    %2156 = vmatpush1.msra.mxu0 0.0
    %2157 = vmatprep.subr.mxu0 0.0
    %2158 = vmatpush1.msra.mxu0 0.0
    %2159 = vmatprep.subr.mxu0 0.0
    %2160 = vmatpush1.msra.mxu0 0.0
    %2161 = vmatprep.subr.mxu0 0.0
    %2162 = vmatpush1.msra.mxu0 0.0
    %2163 = vmatprep.subr.mxu0 0.0
    %2164 = vmatpush1.msra.mxu0 0.0
    %2165 = vmatprep.subr.mxu0 0.0
    %2166 = vmatpush1.msra.mxu0 0.0
    %2167 = vmatprep.subr.mxu0 0.0
    %2168 = vmatpush1.msra.mxu0 0.0
    %2169 = vmatprep.subr.mxu0 0.0
    %2170 = vmatpush1.msra.mxu0 0.0
    %2171 = vmatprep.subr.mxu0 0.0
    %2172 = vmatpush1.msra.mxu0 0.0
    %2173 = vmatprep.subr.mxu0 0.0
    %2174 = vmatpush1.msra.mxu0 0.0
    %2175 = vmatprep.subr.mxu0 0.0
    %2176 = vmatpush1.msra.mxu0 0.0
    %2177 = vmatprep.subr.mxu0 0.0
    %2178 = vmatpush1.msra.mxu0 0.0
    %2179 = vmatprep.subr.mxu0 0.0
    %2180 = vmatpush1.msra.mxu0 0.0
    %2181 = vmatprep.subr.mxu0 0.0
    %2182 = vmatpush1.msra.mxu0 0.0
    %2183 = vmatprep.subr.mxu0 0.0
    %2184 = vmatpush1.msra.mxu0 0.0
    %2185 = vmatprep.subr.mxu0 0.0
    %2186 = vmatpush1.msra.mxu0 0.0
    %2187 = vmatprep.mubr.f32.mxu0 0.0
    %2188 = vmatmul.mubr.f32.gmra.mrb[0].mxu0 %v2122
    %v2189 = vpop.f32.mrb[0].mxu0
    %v2190 = vadd.f32 %v502, %v2189
    %v2191 = vpop.f32.mrb[0].mxu0
    %2192 = vdwg.mxu0
    %2193 = vmax.xlane.f32.xlu0 %v2190
    %v2194 = vpop.xlane.xlu0 %2193
    %vm2195 = vcmp.eq.f32.partialorder %v2190, %v2194
    %v2196 = vsel %vm2195, %v184, 128
    %v2197 = vand.u32 %v2196, 65535
    %v2198 = vshra.s32 %v2196, 16
    %v2199 = vcvt.s32.f32 %v2197
    %v2200 = vcvt.s32.f32 %v2198
    %2201 = vmin.xlane.f32.xlu0 %v2200
    %v2202 = vpop.xlane.xlu0 %2201
    %vm2203 = vcmp.eq.f32.partialorder %v2200, %v2202
    %v2204 = vsel %vm2203, %v2199, inf
    %2205 = vmin.xlane.f32.xlu0 %v2204
    %v2206 = vpop.xlane.xlu0 %2205
    %v2207 = vcvt.f32.s32 %v2206
    %v2208 = vcvt.f32.s32 %v2202
    %v2209 = vshll.u32 %v2208, 16
    %v2210 = vadd.s32 %v2209, %v2207
    %vm2211 = vcmp.eq.s32.totalorder %v184, %v2210
    %v2212 = vsel %vm2211, 1, 0
    %v2213 = vcvt.s32.f32 %v2212
    %v2214 = vsub.f32 %v2190, %v2194
    %v2215 = vmul.f32 %v2214, 1.442695
    %v2216 = vpow.pop %v2215
    %2217 = vadd.xlane.f32.xlu0 %v2216
    %v2218 = vpop.xlane.xlu0 %2217
    %v2219 = vlog2.pop %v2218
    %v2220 = vmul.f32 %v2219, 0.6931472
    %v2221 = vsub.f32 %v2214, %v2220
    %s2222 = scalar_lea.vmem [#allocation8], 32
    %2223 = vst [vmem:[%s2222] sm:$0xff] %v2221
    %2224 = vmatprep.subr.mxu0 %v70
    %2225 = vmatpush1.msra.mxu0 %v69
    %2226 = vmatprep.subr.mxu0 %v73
    %2227 = vmatpush1.msra.mxu0 %v72
    %2228 = vmatprep.subr.mxu0 %v76
    %2229 = vmatpush1.msra.mxu0 %v75
    %2230 = vmatprep.subr.mxu0 %v79
    %2231 = vmatpush1.msra.mxu0 %v78
    %2232 = vmatprep.subr.mxu0 %v82
    %2233 = vmatpush1.msra.mxu0 %v81
    %2234 = vmatprep.subr.mxu0 %v85
    %2235 = vmatpush1.msra.mxu0 %v84
    %2236 = vmatprep.subr.mxu0 %v88
    %2237 = vmatpush1.msra.mxu0 %v87
    %2238 = vmatprep.subr.mxu0 %v91
    %2239 = vmatpush1.msra.mxu0 %v90
    %2240 = vmatprep.subr.mxu0 %v94
    %2241 = vmatpush1.msra.mxu0 %v93
    %2242 = vmatprep.subr.mxu0 %v97
    %2243 = vmatpush1.msra.mxu0 %v96
    %2244 = vmatprep.subr.mxu0 %v100
    %2245 = vmatpush1.msra.mxu0 %v99
    %2246 = vmatprep.subr.mxu0 %v103
    %2247 = vmatpush1.msra.mxu0 %v102
    %2248 = vmatprep.subr.mxu0 %v106
    %2249 = vmatpush1.msra.mxu0 %v105
    %2250 = vmatprep.subr.mxu0 %v109
    %2251 = vmatpush1.msra.mxu0 %v108
    %2252 = vmatprep.subr.mxu0 %v112
    %2253 = vmatpush1.msra.mxu0 %v111
    %2254 = vmatprep.subr.mxu0 %v115
    %2255 = vmatpush1.msra.mxu0 %v114
    %2256 = vmatprep.subr.mxu0 0.0
    %2257 = vmatpush1.msra.mxu0 0.0
    %2258 = vmatprep.subr.mxu0 0.0
    %2259 = vmatpush1.msra.mxu0 0.0
    %2260 = vmatprep.subr.mxu0 0.0
    %2261 = vmatpush1.msra.mxu0 0.0
    %2262 = vmatprep.subr.mxu0 0.0
    %2263 = vmatpush1.msra.mxu0 0.0
    %2264 = vmatprep.subr.mxu0 0.0
    %2265 = vmatpush1.msra.mxu0 0.0
    %2266 = vmatprep.subr.mxu0 0.0
    %2267 = vmatpush1.msra.mxu0 0.0
    %2268 = vmatprep.subr.mxu0 0.0
    %2269 = vmatpush1.msra.mxu0 0.0
    %2270 = vmatprep.subr.mxu0 0.0
    %2271 = vmatpush1.msra.mxu0 0.0
    %2272 = vmatprep.subr.mxu0 0.0
    %2273 = vmatpush1.msra.mxu0 0.0
    %2274 = vmatprep.subr.mxu0 0.0
    %2275 = vmatpush1.msra.mxu0 0.0
    %2276 = vmatprep.subr.mxu0 0.0
    %2277 = vmatpush1.msra.mxu0 0.0
    %2278 = vmatprep.subr.mxu0 0.0
    %2279 = vmatpush1.msra.mxu0 0.0
    %2280 = vmatprep.subr.mxu0 0.0
    %2281 = vmatpush1.msra.mxu0 0.0
    %2282 = vmatprep.subr.mxu0 0.0
    %2283 = vmatpush1.msra.mxu0 0.0
    %2284 = vmatprep.subr.mxu0 0.0
    %2285 = vmatpush1.msra.mxu0 0.0
    %2286 = vmatprep.subr.mxu0 0.0
    %2287 = vmatpush1.msra.mxu0 0.0
    %2288 = vmatprep.mubr.f32.mxu0 0.0
    %2289 = vmatmul.mubr.f32.gmra.mrb[0].mxu0 %v2213
    %v2290 = vpop.f32.mrb[0].mxu0
    %v2291 = vadd.f32 0.0, %v2290
    %v2292 = vpop.f32.mrb[0].mxu0
    %v2293 = vadd.f32 0.0, %v2292
    %2294 = vdwg.mxu0
    %2295 = vmatprep.subr.mxu0 0.0
    %2296 = vmatpush1.msra.mxu0 %v71
    %2297 = vmatprep.subr.mxu0 0.0
    %2298 = vmatpush1.msra.mxu0 %v74
    %2299 = vmatprep.subr.mxu0 0.0
    %2300 = vmatpush1.msra.mxu0 %v77
    %2301 = vmatprep.subr.mxu0 0.0
    %2302 = vmatpush1.msra.mxu0 %v80
    %2303 = vmatprep.subr.mxu0 0.0
    %2304 = vmatpush1.msra.mxu0 %v83
    %2305 = vmatprep.subr.mxu0 0.0
    %2306 = vmatpush1.msra.mxu0 %v86
    %2307 = vmatprep.subr.mxu0 0.0
    %2308 = vmatpush1.msra.mxu0 %v89
    %2309 = vmatprep.subr.mxu0 0.0
    %2310 = vmatpush1.msra.mxu0 %v92
    %2311 = vmatprep.subr.mxu0 0.0
    %2312 = vmatpush1.msra.mxu0 %v95
    %2313 = vmatprep.subr.mxu0 0.0
    %2314 = vmatpush1.msra.mxu0 %v98
    %2315 = vmatprep.subr.mxu0 0.0
    %2316 = vmatpush1.msra.mxu0 %v101
    %2317 = vmatprep.subr.mxu0 0.0
    %2318 = vmatpush1.msra.mxu0 %v104
    %2319 = vmatprep.subr.mxu0 0.0
    %2320 = vmatpush1.msra.mxu0 %v107
    %2321 = vmatprep.subr.mxu0 0.0
    %2322 = vmatpush1.msra.mxu0 %v110
    %2323 = vmatprep.subr.mxu0 0.0
    %2324 = vmatpush1.msra.mxu0 %v113
    %2325 = vmatprep.subr.mxu0 0.0
    %2326 = vmatpush1.msra.mxu0 %v116
    %2327 = vmatprep.subr.mxu0 0.0
    %2328 = vmatpush1.msra.mxu0 0.0
    %2329 = vmatprep.subr.mxu0 0.0
    %2330 = vmatpush1.msra.mxu0 0.0
    %2331 = vmatprep.subr.mxu0 0.0
    %2332 = vmatpush1.msra.mxu0 0.0
    %2333 = vmatprep.subr.mxu0 0.0
    %2334 = vmatpush1.msra.mxu0 0.0
    %2335 = vmatprep.subr.mxu0 0.0
    %2336 = vmatpush1.msra.mxu0 0.0
    %2337 = vmatprep.subr.mxu0 0.0
    %2338 = vmatpush1.msra.mxu0 0.0
    %2339 = vmatprep.subr.mxu0 0.0
    %2340 = vmatpush1.msra.mxu0 0.0
    %2341 = vmatprep.subr.mxu0 0.0
    %2342 = vmatpush1.msra.mxu0 0.0
    %2343 = vmatprep.subr.mxu0 0.0
    %2344 = vmatpush1.msra.mxu0 0.0
    %2345 = vmatprep.subr.mxu0 0.0
    %2346 = vmatpush1.msra.mxu0 0.0
    %2347 = vmatprep.subr.mxu0 0.0
    %2348 = vmatpush1.msra.mxu0 0.0
    %2349 = vmatprep.subr.mxu0 0.0
    %2350 = vmatpush1.msra.mxu0 0.0
    %2351 = vmatprep.subr.mxu0 0.0
    %2352 = vmatpush1.msra.mxu0 0.0
    %2353 = vmatprep.subr.mxu0 0.0
    %2354 = vmatpush1.msra.mxu0 0.0
    %2355 = vmatprep.subr.mxu0 0.0
    %2356 = vmatpush1.msra.mxu0 0.0
    %2357 = vmatprep.subr.mxu0 0.0
    %2358 = vmatpush1.msra.mxu0 0.0
    %2359 = vmatprep.mubr.f32.mxu0 0.0
    %2360 = vmatmul.mubr.f32.gmra.mrb[0].mxu0 %v2213
    %v2361 = vpop.f32.mrb[0].mxu0
    %v2362 = vadd.f32 0.0, %v2361
    %v2363 = vpop.f32.mrb[0].mxu0
    %2364 = vdwg.mxu0
    %2365 = vmatprep.subr.mxu0 %v118
    %2366 = vmatpush1.msra.mxu0 %v117
    %2367 = vmatprep.subr.mxu0 %v121
    %2368 = vmatpush1.msra.mxu0 %v120
    %2369 = vmatprep.subr.mxu0 %v124
    %2370 = vmatpush1.msra.mxu0 %v123
    %2371 = vmatprep.subr.mxu0 %v127
    %2372 = vmatpush1.msra.mxu0 %v126
    %2373 = vmatprep.subr.mxu0 %v130
    %2374 = vmatpush1.msra.mxu0 %v129
    %2375 = vmatprep.subr.mxu0 %v133
    %2376 = vmatpush1.msra.mxu0 %v132
    %2377 = vmatprep.subr.mxu0 %v136
    %2378 = vmatpush1.msra.mxu0 %v135
    %2379 = vmatprep.subr.mxu0 %v139
    %2380 = vmatpush1.msra.mxu0 %v138
    %2381 = vmatprep.subr.mxu0 %v142
    %2382 = vmatpush1.msra.mxu0 %v141
    %2383 = vmatprep.subr.mxu0 %v145
    %2384 = vmatpush1.msra.mxu0 %v144
    %2385 = vmatprep.subr.mxu0 %v148
    %2386 = vmatpush1.msra.mxu0 %v147
    %2387 = vmatprep.subr.mxu0 %v151
    %2388 = vmatpush1.msra.mxu0 %v150
    %2389 = vmatprep.subr.mxu0 %v154
    %2390 = vmatpush1.msra.mxu0 %v153
    %2391 = vmatprep.subr.mxu0 %v157
    %2392 = vmatpush1.msra.mxu0 %v156
    %2393 = vmatprep.subr.mxu0 %v160
    %2394 = vmatpush1.msra.mxu0 %v159
    %2395 = vmatprep.subr.mxu0 %v163
    %2396 = vmatpush1.msra.mxu0 %v162
    %2397 = vmatprep.subr.mxu0 0.0
    %2398 = vmatpush1.msra.mxu0 0.0
    %2399 = vmatprep.subr.mxu0 0.0
    %2400 = vmatpush1.msra.mxu0 0.0
    %2401 = vmatprep.subr.mxu0 0.0
    %2402 = vmatpush1.msra.mxu0 0.0
    %2403 = vmatprep.subr.mxu0 0.0
    %2404 = vmatpush1.msra.mxu0 0.0
    %2405 = vmatprep.subr.mxu0 0.0
    %2406 = vmatpush1.msra.mxu0 0.0
    %2407 = vmatprep.subr.mxu0 0.0
    %2408 = vmatpush1.msra.mxu0 0.0
    %2409 = vmatprep.subr.mxu0 0.0
    %2410 = vmatpush1.msra.mxu0 0.0
    %2411 = vmatprep.subr.mxu0 0.0
    %2412 = vmatpush1.msra.mxu0 0.0
    %2413 = vmatprep.subr.mxu0 0.0
    %2414 = vmatpush1.msra.mxu0 0.0
    %2415 = vmatprep.subr.mxu0 0.0
    %2416 = vmatpush1.msra.mxu0 0.0
    %2417 = vmatprep.subr.mxu0 0.0
    %2418 = vmatpush1.msra.mxu0 0.0
    %2419 = vmatprep.subr.mxu0 0.0
    %2420 = vmatpush1.msra.mxu0 0.0
    %2421 = vmatprep.subr.mxu0 0.0
    %2422 = vmatpush1.msra.mxu0 0.0
    %2423 = vmatprep.subr.mxu0 0.0
    %2424 = vmatpush1.msra.mxu0 0.0
    %2425 = vmatprep.subr.mxu0 0.0
    %2426 = vmatpush1.msra.mxu0 0.0
    %2427 = vmatprep.subr.mxu0 0.0
    %2428 = vmatpush1.msra.mxu0 0.0
    %2429 = vmatprep.mubr.f32.mxu0 0.0
    %2430 = vmatmul.mubr.f32.gmra.mrb[0].mxu0 %v2122
    %v2431 = vpop.f32.mrb[0].mxu0
    %v2432 = vadd.f32 0.0, %v2431
    %v2433 = vpop.f32.mrb[0].mxu0
    %v2434 = vadd.f32 0.0, %v2433
    %2435 = vdwg.mxu0
    %2436 = vmatprep.subr.mxu0 0.0
    %2437 = vmatpush1.msra.mxu0 %v119
    %2438 = vmatprep.subr.mxu0 0.0
    %2439 = vmatpush1.msra.mxu0 %v122
    %2440 = vmatprep.subr.mxu0 0.0
    %2441 = vmatpush1.msra.mxu0 %v125
    %2442 = vmatprep.subr.mxu0 0.0
    %2443 = vmatpush1.msra.mxu0 %v128
    %2444 = vmatprep.subr.mxu0 0.0
    %2445 = vmatpush1.msra.mxu0 %v131
    %2446 = vmatprep.subr.mxu0 0.0
    %2447 = vmatpush1.msra.mxu0 %v134
    %2448 = vmatprep.subr.mxu0 0.0
    %2449 = vmatpush1.msra.mxu0 %v137
    %2450 = vmatprep.subr.mxu0 0.0
    %2451 = vmatpush1.msra.mxu0 %v140
    %2452 = vmatprep.subr.mxu0 0.0
    %2453 = vmatpush1.msra.mxu0 %v143
    %2454 = vmatprep.subr.mxu0 0.0
    %2455 = vmatpush1.msra.mxu0 %v146
    %2456 = vmatprep.subr.mxu0 0.0
    %2457 = vmatpush1.msra.mxu0 %v149
    %2458 = vmatprep.subr.mxu0 0.0
    %2459 = vmatpush1.msra.mxu0 %v152
    %2460 = vmatprep.subr.mxu0 0.0
    %2461 = vmatpush1.msra.mxu0 %v155
    %2462 = vmatprep.subr.mxu0 0.0
    %2463 = vmatpush1.msra.mxu0 %v158
    %2464 = vmatprep.subr.mxu0 0.0
    %2465 = vmatpush1.msra.mxu0 %v161
    %2466 = vmatprep.subr.mxu0 0.0
    %2467 = vmatpush1.msra.mxu0 %v164
    %2468 = vmatprep.subr.mxu0 0.0
    %2469 = vmatpush1.msra.mxu0 0.0
    %2470 = vmatprep.subr.mxu0 0.0
    %2471 = vmatpush1.msra.mxu0 0.0
    %2472 = vmatprep.subr.mxu0 0.0
    %2473 = vmatpush1.msra.mxu0 0.0
    %2474 = vmatprep.subr.mxu0 0.0
    %2475 = vmatpush1.msra.mxu0 0.0
    %2476 = vmatprep.subr.mxu0 0.0
    %2477 = vmatpush1.msra.mxu0 0.0
    %2478 = vmatprep.subr.mxu0 0.0
    %2479 = vmatpush1.msra.mxu0 0.0
    %2480 = vmatprep.subr.mxu0 0.0
    %2481 = vmatpush1.msra.mxu0 0.0
    %2482 = vmatprep.subr.mxu0 0.0
    %2483 = vmatpush1.msra.mxu0 0.0
    %2484 = vmatprep.subr.mxu0 0.0
    %2485 = vmatpush1.msra.mxu0 0.0
    %2486 = vmatprep.subr.mxu0 0.0
    %2487 = vmatpush1.msra.mxu0 0.0
    %2488 = vmatprep.subr.mxu0 0.0
    %2489 = vmatpush1.msra.mxu0 0.0
    %2490 = vmatprep.subr.mxu0 0.0
    %2491 = vmatpush1.msra.mxu0 0.0
    %2492 = vmatprep.subr.mxu0 0.0
    %2493 = vmatpush1.msra.mxu0 0.0
    %2494 = vmatprep.subr.mxu0 0.0
    %2495 = vmatpush1.msra.mxu0 0.0
    %2496 = vmatprep.subr.mxu0 0.0
    %2497 = vmatpush1.msra.mxu0 0.0
    %2498 = vmatprep.subr.mxu0 0.0
    %2499 = vmatpush1.msra.mxu0 0.0
    %2500 = vmatprep.mubr.f32.mxu0 0.0
    %2501 = vmatmul.mubr.f32.gmra.mrb[0].mxu0 %v2122
    %v2502 = vpop.f32.mrb[0].mxu0
    %v2503 = vadd.f32 0.0, %v2502
    %v2504 = vpop.f32.mrb[0].mxu0
    %2505 = vdwg.mxu0
    %v2506 = vadd.f32 %v2291, %v2432
    %v2507 = vxor.u32 %v2506, 2147483648
    %v2508 = vmul.f32 %v2507, 1.442695
    %v2509 = vpow.pop %v2508
    %v2510 = vadd.f32 %v2509, 1.0
    %v2511 = vrcp.pop %v2510
    %v2512 = vmul.f32 1.0, %v2511
    %v2513 = vadd.f32 %v2293, %v2434
    %v2514 = vxor.u32 %v2513, 2147483648
    %v2515 = vmul.f32 %v2514, 1.442695
    %v2516 = vpow.pop %v2515
    %v2517 = vadd.f32 %v2516, 1.0
    %v2518 = vrcp.pop %v2517
    %v2519 = vmul.f32 1.0, %v2518
    %v2520 = vadd.f32 %v2503, %v488
    %v2521 = vmul.f32 %v2512, %v2520
    %v2522 = vadd.f32 %v2362, %v2521
    %v2523 = vtanh.pop %v2522
    %v2524 = vsub.f32 1.0, %v2519
    %v2525 = vmul.f32 %v2524, %v2523
    %v2526 = vmul.f32 %v2519, %v2122
    %v2527 = vadd.f32 %v2525, %v2526
    %2528 = vmatprep.subr.mxu0 0.0
    %2529 = vmatpush1.msra.mxu0 %v166
    %2530 = vmatprep.subr.mxu0 0.0
    %2531 = vmatpush1.msra.mxu0 %v167
    %2532 = vmatprep.subr.mxu0 0.0
    %2533 = vmatpush1.msra.mxu0 %v168
    %2534 = vmatprep.subr.mxu0 0.0
    %2535 = vmatpush1.msra.mxu0 %v169
    %2536 = vmatprep.subr.mxu0 0.0
    %2537 = vmatpush1.msra.mxu0 %v170
    %2538 = vmatprep.subr.mxu0 0.0
    %2539 = vmatpush1.msra.mxu0 %v171
    %2540 = vmatprep.subr.mxu0 0.0
    %2541 = vmatpush1.msra.mxu0 %v172
    %2542 = vmatprep.subr.mxu0 0.0
    %2543 = vmatpush1.msra.mxu0 %v173
    %2544 = vmatprep.subr.mxu0 0.0
    %2545 = vmatpush1.msra.mxu0 %v174
    %2546 = vmatprep.subr.mxu0 0.0
    %2547 = vmatpush1.msra.mxu0 %v175
    %2548 = vmatprep.subr.mxu0 0.0
    %2549 = vmatpush1.msra.mxu0 %v176
    %2550 = vmatprep.subr.mxu0 0.0
    %2551 = vmatpush1.msra.mxu0 %v177
    %2552 = vmatprep.subr.mxu0 0.0
    %2553 = vmatpush1.msra.mxu0 %v178
    %2554 = vmatprep.subr.mxu0 0.0
    %2555 = vmatpush1.msra.mxu0 %v179
    %2556 = vmatprep.subr.mxu0 0.0
    %2557 = vmatpush1.msra.mxu0 %v180
    %2558 = vmatprep.subr.mxu0 0.0
    %2559 = vmatpush1.msra.mxu0 %v181
    %2560 = vmatprep.subr.mxu0 0.0
    %2561 = vmatpush1.msra.mxu0 0.0
    %2562 = vmatprep.subr.mxu0 0.0
    %2563 = vmatpush1.msra.mxu0 0.0
    %2564 = vmatprep.subr.mxu0 0.0
    %2565 = vmatpush1.msra.mxu0 0.0
    %2566 = vmatprep.subr.mxu0 0.0
    %2567 = vmatpush1.msra.mxu0 0.0
    %2568 = vmatprep.subr.mxu0 0.0
    %2569 = vmatpush1.msra.mxu0 0.0
    %2570 = vmatprep.subr.mxu0 0.0
    %2571 = vmatpush1.msra.mxu0 0.0
    %2572 = vmatprep.subr.mxu0 0.0
    %2573 = vmatpush1.msra.mxu0 0.0
    %2574 = vmatprep.subr.mxu0 0.0
    %2575 = vmatpush1.msra.mxu0 0.0
    %2576 = vmatprep.subr.mxu0 0.0
    %2577 = vmatpush1.msra.mxu0 0.0
    %2578 = vmatprep.subr.mxu0 0.0
    %2579 = vmatpush1.msra.mxu0 0.0
    %2580 = vmatprep.subr.mxu0 0.0
    %2581 = vmatpush1.msra.mxu0 0.0
    %2582 = vmatprep.subr.mxu0 0.0
    %2583 = vmatpush1.msra.mxu0 0.0
    %2584 = vmatprep.subr.mxu0 0.0
    %2585 = vmatpush1.msra.mxu0 0.0
    %2586 = vmatprep.subr.mxu0 0.0
    %2587 = vmatpush1.msra.mxu0 0.0
    %2588 = vmatprep.subr.mxu0 0.0
    %2589 = vmatpush1.msra.mxu0 0.0
    %2590 = vmatprep.subr.mxu0 0.0
    %2591 = vmatpush1.msra.mxu0 0.0
    %2592 = vmatprep.mubr.f32.mxu0 0.0
    %2593 = vmatmul.mubr.f32.gmra.mrb[0].mxu0 %v2527
    %v2594 = vpop.f32.mrb[0].mxu0
    %v2595 = vadd.f32 %v502, %v2594
    %v2596 = vpop.f32.mrb[0].mxu0
    %2597 = vdwg.mxu0
    %2598 = vmax.xlane.f32.xlu0 %v2595
    %v2599 = vpop.xlane.xlu0 %2598
    %vm2600 = vcmp.eq.f32.partialorder %v2595, %v2599
    %v2601 = vsel %vm2600, %v184, 128
    %v2602 = vand.u32 %v2601, 65535
    %v2603 = vshra.s32 %v2601, 16
    %v2604 = vcvt.s32.f32 %v2602
    %v2605 = vcvt.s32.f32 %v2603
    %2606 = vmin.xlane.f32.xlu0 %v2605
    %v2607 = vpop.xlane.xlu0 %2606
    %vm2608 = vcmp.eq.f32.partialorder %v2605, %v2607
    %v2609 = vsel %vm2608, %v2604, inf
    %2610 = vmin.xlane.f32.xlu0 %v2609
    %v2611 = vpop.xlane.xlu0 %2610
    %v2612 = vcvt.f32.s32 %v2611
    %v2613 = vcvt.f32.s32 %v2607
    %v2614 = vshll.u32 %v2613, 16
    %v2615 = vadd.s32 %v2614, %v2612
    %vm2616 = vcmp.eq.s32.totalorder %v184, %v2615
    %v2617 = vsel %vm2616, 1, 0
    %v2618 = vcvt.s32.f32 %v2617
    %v2619 = vsub.f32 %v2595, %v2599
    %v2620 = vmul.f32 %v2619, 1.442695
    %v2621 = vpow.pop %v2620
    %2622 = vadd.xlane.f32.xlu0 %v2621
    %v2623 = vpop.xlane.xlu0 %2622
    %v2624 = vlog2.pop %v2623
    %v2625 = vmul.f32 %v2624, 0.6931472
    %v2626 = vsub.f32 %v2619, %v2625
    %s2627 = scalar_lea.vmem [#allocation8], 40
    %2628 = vst [vmem:[%s2627] sm:$0xff] %v2626
    %2629 = vmatprep.subr.mxu0 %v70
    %2630 = vmatpush1.msra.mxu0 %v69
    %2631 = vmatprep.subr.mxu0 %v73
    %2632 = vmatpush1.msra.mxu0 %v72
    %2633 = vmatprep.subr.mxu0 %v76
    %2634 = vmatpush1.msra.mxu0 %v75
    %2635 = vmatprep.subr.mxu0 %v79
    %2636 = vmatpush1.msra.mxu0 %v78
    %2637 = vmatprep.subr.mxu0 %v82
    %2638 = vmatpush1.msra.mxu0 %v81
    %2639 = vmatprep.subr.mxu0 %v85
    %2640 = vmatpush1.msra.mxu0 %v84
    %2641 = vmatprep.subr.mxu0 %v88
    %2642 = vmatpush1.msra.mxu0 %v87
    %2643 = vmatprep.subr.mxu0 %v91
    %2644 = vmatpush1.msra.mxu0 %v90
    %2645 = vmatprep.subr.mxu0 %v94
    %2646 = vmatpush1.msra.mxu0 %v93
    %2647 = vmatprep.subr.mxu0 %v97
    %2648 = vmatpush1.msra.mxu0 %v96
    %2649 = vmatprep.subr.mxu0 %v100
    %2650 = vmatpush1.msra.mxu0 %v99
    %2651 = vmatprep.subr.mxu0 %v103
    %2652 = vmatpush1.msra.mxu0 %v102
    %2653 = vmatprep.subr.mxu0 %v106
    %2654 = vmatpush1.msra.mxu0 %v105
    %2655 = vmatprep.subr.mxu0 %v109
    %2656 = vmatpush1.msra.mxu0 %v108
    %2657 = vmatprep.subr.mxu0 %v112
    %2658 = vmatpush1.msra.mxu0 %v111
    %2659 = vmatprep.subr.mxu0 %v115
    %2660 = vmatpush1.msra.mxu0 %v114
    %2661 = vmatprep.subr.mxu0 0.0
    %2662 = vmatpush1.msra.mxu0 0.0
    %2663 = vmatprep.subr.mxu0 0.0
    %2664 = vmatpush1.msra.mxu0 0.0
    %2665 = vmatprep.subr.mxu0 0.0
    %2666 = vmatpush1.msra.mxu0 0.0
    %2667 = vmatprep.subr.mxu0 0.0
    %2668 = vmatpush1.msra.mxu0 0.0
    %2669 = vmatprep.subr.mxu0 0.0
    %2670 = vmatpush1.msra.mxu0 0.0
    %2671 = vmatprep.subr.mxu0 0.0
    %2672 = vmatpush1.msra.mxu0 0.0
    %2673 = vmatprep.subr.mxu0 0.0
    %2674 = vmatpush1.msra.mxu0 0.0
    %2675 = vmatprep.subr.mxu0 0.0
    %2676 = vmatpush1.msra.mxu0 0.0
    %2677 = vmatprep.subr.mxu0 0.0
    %2678 = vmatpush1.msra.mxu0 0.0
    %2679 = vmatprep.subr.mxu0 0.0
    %2680 = vmatpush1.msra.mxu0 0.0
    %2681 = vmatprep.subr.mxu0 0.0
    %2682 = vmatpush1.msra.mxu0 0.0
    %2683 = vmatprep.subr.mxu0 0.0
    %2684 = vmatpush1.msra.mxu0 0.0
    %2685 = vmatprep.subr.mxu0 0.0
    %2686 = vmatpush1.msra.mxu0 0.0
    %2687 = vmatprep.subr.mxu0 0.0
    %2688 = vmatpush1.msra.mxu0 0.0
    %2689 = vmatprep.subr.mxu0 0.0
    %2690 = vmatpush1.msra.mxu0 0.0
    %2691 = vmatprep.subr.mxu0 0.0
    %2692 = vmatpush1.msra.mxu0 0.0
    %2693 = vmatprep.mubr.f32.mxu0 0.0
    %2694 = vmatmul.mubr.f32.gmra.mrb[0].mxu0 %v2618
    %v2695 = vpop.f32.mrb[0].mxu0
    %v2696 = vadd.f32 0.0, %v2695
    %v2697 = vpop.f32.mrb[0].mxu0
    %v2698 = vadd.f32 0.0, %v2697
    %2699 = vdwg.mxu0
    %2700 = vmatprep.subr.mxu0 0.0
    %2701 = vmatpush1.msra.mxu0 %v71
    %2702 = vmatprep.subr.mxu0 0.0
    %2703 = vmatpush1.msra.mxu0 %v74
    %2704 = vmatprep.subr.mxu0 0.0
    %2705 = vmatpush1.msra.mxu0 %v77
    %2706 = vmatprep.subr.mxu0 0.0
    %2707 = vmatpush1.msra.mxu0 %v80
    %2708 = vmatprep.subr.mxu0 0.0
    %2709 = vmatpush1.msra.mxu0 %v83
    %2710 = vmatprep.subr.mxu0 0.0
    %2711 = vmatpush1.msra.mxu0 %v86
    %2712 = vmatprep.subr.mxu0 0.0
    %2713 = vmatpush1.msra.mxu0 %v89
    %2714 = vmatprep.subr.mxu0 0.0
    %2715 = vmatpush1.msra.mxu0 %v92
    %2716 = vmatprep.subr.mxu0 0.0
    %2717 = vmatpush1.msra.mxu0 %v95
    %2718 = vmatprep.subr.mxu0 0.0
    %2719 = vmatpush1.msra.mxu0 %v98
    %2720 = vmatprep.subr.mxu0 0.0
    %2721 = vmatpush1.msra.mxu0 %v101
    %2722 = vmatprep.subr.mxu0 0.0
    %2723 = vmatpush1.msra.mxu0 %v104
    %2724 = vmatprep.subr.mxu0 0.0
    %2725 = vmatpush1.msra.mxu0 %v107
    %2726 = vmatprep.subr.mxu0 0.0
    %2727 = vmatpush1.msra.mxu0 %v110
    %2728 = vmatprep.subr.mxu0 0.0
    %2729 = vmatpush1.msra.mxu0 %v113
    %2730 = vmatprep.subr.mxu0 0.0
    %2731 = vmatpush1.msra.mxu0 %v116
    %2732 = vmatprep.subr.mxu0 0.0
    %2733 = vmatpush1.msra.mxu0 0.0
    %2734 = vmatprep.subr.mxu0 0.0
    %2735 = vmatpush1.msra.mxu0 0.0
    %2736 = vmatprep.subr.mxu0 0.0
    %2737 = vmatpush1.msra.mxu0 0.0
    %2738 = vmatprep.subr.mxu0 0.0
    %2739 = vmatpush1.msra.mxu0 0.0
    %2740 = vmatprep.subr.mxu0 0.0
    %2741 = vmatpush1.msra.mxu0 0.0
    %2742 = vmatprep.subr.mxu0 0.0
    %2743 = vmatpush1.msra.mxu0 0.0
    %2744 = vmatprep.subr.mxu0 0.0
    %2745 = vmatpush1.msra.mxu0 0.0
    %2746 = vmatprep.subr.mxu0 0.0
    %2747 = vmatpush1.msra.mxu0 0.0
    %2748 = vmatprep.subr.mxu0 0.0
    %2749 = vmatpush1.msra.mxu0 0.0
    %2750 = vmatprep.subr.mxu0 0.0
    %2751 = vmatpush1.msra.mxu0 0.0
    %2752 = vmatprep.subr.mxu0 0.0
    %2753 = vmatpush1.msra.mxu0 0.0
    %2754 = vmatprep.subr.mxu0 0.0
    %2755 = vmatpush1.msra.mxu0 0.0
    %2756 = vmatprep.subr.mxu0 0.0
    %2757 = vmatpush1.msra.mxu0 0.0
    %2758 = vmatprep.subr.mxu0 0.0
    %2759 = vmatpush1.msra.mxu0 0.0
    %2760 = vmatprep.subr.mxu0 0.0
    %2761 = vmatpush1.msra.mxu0 0.0
    %2762 = vmatprep.subr.mxu0 0.0
    %2763 = vmatpush1.msra.mxu0 0.0
    %2764 = vmatprep.mubr.f32.mxu0 0.0
    %2765 = vmatmul.mubr.f32.gmra.mrb[0].mxu0 %v2618
    %v2766 = vpop.f32.mrb[0].mxu0
    %v2767 = vadd.f32 0.0, %v2766
    %v2768 = vpop.f32.mrb[0].mxu0
    %2769 = vdwg.mxu0
    %2770 = vmatprep.subr.mxu0 %v118
    %2771 = vmatpush1.msra.mxu0 %v117
    %2772 = vmatprep.subr.mxu0 %v121
    %2773 = vmatpush1.msra.mxu0 %v120
    %2774 = vmatprep.subr.mxu0 %v124
    %2775 = vmatpush1.msra.mxu0 %v123
    %2776 = vmatprep.subr.mxu0 %v127
    %2777 = vmatpush1.msra.mxu0 %v126
    %2778 = vmatprep.subr.mxu0 %v130
    %2779 = vmatpush1.msra.mxu0 %v129
    %2780 = vmatprep.subr.mxu0 %v133
    %2781 = vmatpush1.msra.mxu0 %v132
    %2782 = vmatprep.subr.mxu0 %v136
    %2783 = vmatpush1.msra.mxu0 %v135
    %2784 = vmatprep.subr.mxu0 %v139
    %2785 = vmatpush1.msra.mxu0 %v138
    %2786 = vmatprep.subr.mxu0 %v142
    %2787 = vmatpush1.msra.mxu0 %v141
    %2788 = vmatprep.subr.mxu0 %v145
    %2789 = vmatpush1.msra.mxu0 %v144
    %2790 = vmatprep.subr.mxu0 %v148
    %2791 = vmatpush1.msra.mxu0 %v147
    %2792 = vmatprep.subr.mxu0 %v151
    %2793 = vmatpush1.msra.mxu0 %v150
    %2794 = vmatprep.subr.mxu0 %v154
    %2795 = vmatpush1.msra.mxu0 %v153
    %2796 = vmatprep.subr.mxu0 %v157
    %2797 = vmatpush1.msra.mxu0 %v156
    %2798 = vmatprep.subr.mxu0 %v160
    %2799 = vmatpush1.msra.mxu0 %v159
    %2800 = vmatprep.subr.mxu0 %v163
    %2801 = vmatpush1.msra.mxu0 %v162
    %2802 = vmatprep.subr.mxu0 0.0
    %2803 = vmatpush1.msra.mxu0 0.0
    %2804 = vmatprep.subr.mxu0 0.0
    %2805 = vmatpush1.msra.mxu0 0.0
    %2806 = vmatprep.subr.mxu0 0.0
    %2807 = vmatpush1.msra.mxu0 0.0
    %2808 = vmatprep.subr.mxu0 0.0
    %2809 = vmatpush1.msra.mxu0 0.0
    %2810 = vmatprep.subr.mxu0 0.0
    %2811 = vmatpush1.msra.mxu0 0.0
    %2812 = vmatprep.subr.mxu0 0.0
    %2813 = vmatpush1.msra.mxu0 0.0
    %2814 = vmatprep.subr.mxu0 0.0
    %2815 = vmatpush1.msra.mxu0 0.0
    %2816 = vmatprep.subr.mxu0 0.0
    %2817 = vmatpush1.msra.mxu0 0.0
    %2818 = vmatprep.subr.mxu0 0.0
    %2819 = vmatpush1.msra.mxu0 0.0
    %2820 = vmatprep.subr.mxu0 0.0
    %2821 = vmatpush1.msra.mxu0 0.0
    %2822 = vmatprep.subr.mxu0 0.0
    %2823 = vmatpush1.msra.mxu0 0.0
    %2824 = vmatprep.subr.mxu0 0.0
    %2825 = vmatpush1.msra.mxu0 0.0
    %2826 = vmatprep.subr.mxu0 0.0
    %2827 = vmatpush1.msra.mxu0 0.0
    %2828 = vmatprep.subr.mxu0 0.0
    %2829 = vmatpush1.msra.mxu0 0.0
    %2830 = vmatprep.subr.mxu0 0.0
    %2831 = vmatpush1.msra.mxu0 0.0
    %2832 = vmatprep.subr.mxu0 0.0
    %2833 = vmatpush1.msra.mxu0 0.0
    %2834 = vmatprep.mubr.f32.mxu0 0.0
    %2835 = vmatmul.mubr.f32.gmra.mrb[0].mxu0 %v2527
    %v2836 = vpop.f32.mrb[0].mxu0
    %v2837 = vadd.f32 0.0, %v2836
    %v2838 = vpop.f32.mrb[0].mxu0
    %v2839 = vadd.f32 0.0, %v2838
    %2840 = vdwg.mxu0
    %2841 = vmatprep.subr.mxu0 0.0
    %2842 = vmatpush1.msra.mxu0 %v119
    %2843 = vmatprep.subr.mxu0 0.0
    %2844 = vmatpush1.msra.mxu0 %v122
    %2845 = vmatprep.subr.mxu0 0.0
    %2846 = vmatpush1.msra.mxu0 %v125
    %2847 = vmatprep.subr.mxu0 0.0
    %2848 = vmatpush1.msra.mxu0 %v128
    %2849 = vmatprep.subr.mxu0 0.0
    %2850 = vmatpush1.msra.mxu0 %v131
    %2851 = vmatprep.subr.mxu0 0.0
    %2852 = vmatpush1.msra.mxu0 %v134
    %2853 = vmatprep.subr.mxu0 0.0
    %2854 = vmatpush1.msra.mxu0 %v137
    %2855 = vmatprep.subr.mxu0 0.0
    %2856 = vmatpush1.msra.mxu0 %v140
    %2857 = vmatprep.subr.mxu0 0.0
    %2858 = vmatpush1.msra.mxu0 %v143
    %2859 = vmatprep.subr.mxu0 0.0
    %2860 = vmatpush1.msra.mxu0 %v146
    %2861 = vmatprep.subr.mxu0 0.0
    %2862 = vmatpush1.msra.mxu0 %v149
    %2863 = vmatprep.subr.mxu0 0.0
    %2864 = vmatpush1.msra.mxu0 %v152
    %2865 = vmatprep.subr.mxu0 0.0
    %2866 = vmatpush1.msra.mxu0 %v155
    %2867 = vmatprep.subr.mxu0 0.0
    %2868 = vmatpush1.msra.mxu0 %v158
    %2869 = vmatprep.subr.mxu0 0.0
    %2870 = vmatpush1.msra.mxu0 %v161
    %2871 = vmatprep.subr.mxu0 0.0
    %2872 = vmatpush1.msra.mxu0 %v164
    %2873 = vmatprep.subr.mxu0 0.0
    %2874 = vmatpush1.msra.mxu0 0.0
    %2875 = vmatprep.subr.mxu0 0.0
    %2876 = vmatpush1.msra.mxu0 0.0
    %2877 = vmatprep.subr.mxu0 0.0
    %2878 = vmatpush1.msra.mxu0 0.0
    %2879 = vmatprep.subr.mxu0 0.0
    %2880 = vmatpush1.msra.mxu0 0.0
    %2881 = vmatprep.subr.mxu0 0.0
    %2882 = vmatpush1.msra.mxu0 0.0
    %2883 = vmatprep.subr.mxu0 0.0
    %2884 = vmatpush1.msra.mxu0 0.0
    %2885 = vmatprep.subr.mxu0 0.0
    %2886 = vmatpush1.msra.mxu0 0.0
    %2887 = vmatprep.subr.mxu0 0.0
    %2888 = vmatpush1.msra.mxu0 0.0
    %2889 = vmatprep.subr.mxu0 0.0
    %2890 = vmatpush1.msra.mxu0 0.0
    %2891 = vmatprep.subr.mxu0 0.0
    %2892 = vmatpush1.msra.mxu0 0.0
    %2893 = vmatprep.subr.mxu0 0.0
    %2894 = vmatpush1.msra.mxu0 0.0
    %2895 = vmatprep.subr.mxu0 0.0
    %2896 = vmatpush1.msra.mxu0 0.0
    %2897 = vmatprep.subr.mxu0 0.0
    %2898 = vmatpush1.msra.mxu0 0.0
    %2899 = vmatprep.subr.mxu0 0.0
    %2900 = vmatpush1.msra.mxu0 0.0
    %2901 = vmatprep.subr.mxu0 0.0
    %2902 = vmatpush1.msra.mxu0 0.0
    %2903 = vmatprep.subr.mxu0 0.0
    %2904 = vmatpush1.msra.mxu0 0.0
    %2905 = vmatprep.mubr.f32.mxu0 0.0
    %2906 = vmatmul.mubr.f32.gmra.mrb[0].mxu0 %v2527
    %v2907 = vpop.f32.mrb[0].mxu0
    %v2908 = vadd.f32 0.0, %v2907
    %v2909 = vpop.f32.mrb[0].mxu0
    %2910 = vdwg.mxu0
    %v2911 = vadd.f32 %v2696, %v2837
    %v2912 = vxor.u32 %v2911, 2147483648
    %v2913 = vmul.f32 %v2912, 1.442695
    %v2914 = vpow.pop %v2913
    %v2915 = vadd.f32 %v2914, 1.0
    %v2916 = vrcp.pop %v2915
    %v2917 = vmul.f32 1.0, %v2916
    %v2918 = vadd.f32 %v2698, %v2839
    %v2919 = vxor.u32 %v2918, 2147483648
    %v2920 = vmul.f32 %v2919, 1.442695
    %v2921 = vpow.pop %v2920
    %v2922 = vadd.f32 %v2921, 1.0
    %v2923 = vrcp.pop %v2922
    %v2924 = vmul.f32 1.0, %v2923
    %v2925 = vadd.f32 %v2908, %v488
    %v2926 = vmul.f32 %v2917, %v2925
    %v2927 = vadd.f32 %v2767, %v2926
    %v2928 = vtanh.pop %v2927
    %v2929 = vsub.f32 1.0, %v2924
    %v2930 = vmul.f32 %v2929, %v2928
    %v2931 = vmul.f32 %v2924, %v2527
    %v2932 = vadd.f32 %v2930, %v2931
    %2933 = vmatprep.subr.mxu0 0.0
    %2934 = vmatpush1.msra.mxu0 %v166
    %2935 = vmatprep.subr.mxu0 0.0
    %2936 = vmatpush1.msra.mxu0 %v167
    %2937 = vmatprep.subr.mxu0 0.0
    %2938 = vmatpush1.msra.mxu0 %v168
    %2939 = vmatprep.subr.mxu0 0.0
    %2940 = vmatpush1.msra.mxu0 %v169
    %2941 = vmatprep.subr.mxu0 0.0
    %2942 = vmatpush1.msra.mxu0 %v170
    %2943 = vmatprep.subr.mxu0 0.0
    %2944 = vmatpush1.msra.mxu0 %v171
    %2945 = vmatprep.subr.mxu0 0.0
    %2946 = vmatpush1.msra.mxu0 %v172
    %2947 = vmatprep.subr.mxu0 0.0
    %2948 = vmatpush1.msra.mxu0 %v173
    %2949 = vmatprep.subr.mxu0 0.0
    %2950 = vmatpush1.msra.mxu0 %v174
    %2951 = vmatprep.subr.mxu0 0.0
    %2952 = vmatpush1.msra.mxu0 %v175
    %2953 = vmatprep.subr.mxu0 0.0
    %2954 = vmatpush1.msra.mxu0 %v176
    %2955 = vmatprep.subr.mxu0 0.0
    %2956 = vmatpush1.msra.mxu0 %v177
    %2957 = vmatprep.subr.mxu0 0.0
    %2958 = vmatpush1.msra.mxu0 %v178
    %2959 = vmatprep.subr.mxu0 0.0
    %2960 = vmatpush1.msra.mxu0 %v179
    %2961 = vmatprep.subr.mxu0 0.0
    %2962 = vmatpush1.msra.mxu0 %v180
    %2963 = vmatprep.subr.mxu0 0.0
    %2964 = vmatpush1.msra.mxu0 %v181
    %2965 = vmatprep.subr.mxu0 0.0
    %2966 = vmatpush1.msra.mxu0 0.0
    %2967 = vmatprep.subr.mxu0 0.0
    %2968 = vmatpush1.msra.mxu0 0.0
    %2969 = vmatprep.subr.mxu0 0.0
    %2970 = vmatpush1.msra.mxu0 0.0
    %2971 = vmatprep.subr.mxu0 0.0
    %2972 = vmatpush1.msra.mxu0 0.0
    %2973 = vmatprep.subr.mxu0 0.0
    %2974 = vmatpush1.msra.mxu0 0.0
    %2975 = vmatprep.subr.mxu0 0.0
    %2976 = vmatpush1.msra.mxu0 0.0
    %2977 = vmatprep.subr.mxu0 0.0
    %2978 = vmatpush1.msra.mxu0 0.0
    %2979 = vmatprep.subr.mxu0 0.0
    %2980 = vmatpush1.msra.mxu0 0.0
    %2981 = vmatprep.subr.mxu0 0.0
    %2982 = vmatpush1.msra.mxu0 0.0
    %2983 = vmatprep.subr.mxu0 0.0
    %2984 = vmatpush1.msra.mxu0 0.0
    %2985 = vmatprep.subr.mxu0 0.0
    %2986 = vmatpush1.msra.mxu0 0.0
    %2987 = vmatprep.subr.mxu0 0.0
    %2988 = vmatpush1.msra.mxu0 0.0
    %2989 = vmatprep.subr.mxu0 0.0
    %2990 = vmatpush1.msra.mxu0 0.0
    %2991 = vmatprep.subr.mxu0 0.0
    %2992 = vmatpush1.msra.mxu0 0.0
    %2993 = vmatprep.subr.mxu0 0.0
    %2994 = vmatpush1.msra.mxu0 0.0
    %2995 = vmatprep.subr.mxu0 0.0
    %2996 = vmatpush1.msra.mxu0 0.0
    %2997 = vmatprep.mubr.f32.mxu0 0.0
    %2998 = vmatmul.mubr.f32.gmra.mrb[0].mxu0 %v2932
    %v2999 = vpop.f32.mrb[0].mxu0
    %v3000 = vadd.f32 %v502, %v2999
    %v3001 = vpop.f32.mrb[0].mxu0
    %3002 = vdwg.mxu0
    %3003 = vmax.xlane.f32.xlu0 %v3000
    %v3004 = vpop.xlane.xlu0 %3003
    %vm3005 = vcmp.eq.f32.partialorder %v3000, %v3004
    %v3006 = vsel %vm3005, %v184, 128
    %v3007 = vand.u32 %v3006, 65535
    %v3008 = vshra.s32 %v3006, 16
    %v3009 = vcvt.s32.f32 %v3007
    %v3010 = vcvt.s32.f32 %v3008
    %3011 = vmin.xlane.f32.xlu0 %v3010
    %v3012 = vpop.xlane.xlu0 %3011
    %vm3013 = vcmp.eq.f32.partialorder %v3010, %v3012
    %v3014 = vsel %vm3013, %v3009, inf
    %3015 = vmin.xlane.f32.xlu0 %v3014
    %v3016 = vpop.xlane.xlu0 %3015
    %v3017 = vcvt.f32.s32 %v3016
    %v3018 = vcvt.f32.s32 %v3012
    %v3019 = vshll.u32 %v3018, 16
    %v3020 = vadd.s32 %v3019, %v3017
    %vm3021 = vcmp.eq.s32.totalorder %v184, %v3020
    %v3022 = vsel %vm3021, 1, 0
    %v3023 = vcvt.s32.f32 %v3022
    %v3024 = vsub.f32 %v3000, %v3004
    %v3025 = vmul.f32 %v3024, 1.442695
    %v3026 = vpow.pop %v3025
    %3027 = vadd.xlane.f32.xlu0 %v3026
    %v3028 = vpop.xlane.xlu0 %3027
    %v3029 = vlog2.pop %v3028
    %v3030 = vmul.f32 %v3029, 0.6931472
    %v3031 = vsub.f32 %v3024, %v3030
    %s3032 = scalar_lea.vmem [#allocation8], 48
    %3033 = vst [vmem:[%s3032] sm:$0xff] %v3031
    %3034 = vmatprep.subr.mxu0 %v70
    %3035 = vmatpush1.msra.mxu0 %v69
    %3036 = vmatprep.subr.mxu0 %v73
    %3037 = vmatpush1.msra.mxu0 %v72
    %3038 = vmatprep.subr.mxu0 %v76
    %3039 = vmatpush1.msra.mxu0 %v75
    %3040 = vmatprep.subr.mxu0 %v79
    %3041 = vmatpush1.msra.mxu0 %v78
    %3042 = vmatprep.subr.mxu0 %v82
    %3043 = vmatpush1.msra.mxu0 %v81
    %3044 = vmatprep.subr.mxu0 %v85
    %3045 = vmatpush1.msra.mxu0 %v84
    %3046 = vmatprep.subr.mxu0 %v88
    %3047 = vmatpush1.msra.mxu0 %v87
    %3048 = vmatprep.subr.mxu0 %v91
    %3049 = vmatpush1.msra.mxu0 %v90
    %3050 = vmatprep.subr.mxu0 %v94
    %3051 = vmatpush1.msra.mxu0 %v93
    %3052 = vmatprep.subr.mxu0 %v97
    %3053 = vmatpush1.msra.mxu0 %v96
    %3054 = vmatprep.subr.mxu0 %v100
    %3055 = vmatpush1.msra.mxu0 %v99
    %3056 = vmatprep.subr.mxu0 %v103
    %3057 = vmatpush1.msra.mxu0 %v102
    %3058 = vmatprep.subr.mxu0 %v106
    %3059 = vmatpush1.msra.mxu0 %v105
    %3060 = vmatprep.subr.mxu0 %v109
    %3061 = vmatpush1.msra.mxu0 %v108
    %3062 = vmatprep.subr.mxu0 %v112
    %3063 = vmatpush1.msra.mxu0 %v111
    %3064 = vmatprep.subr.mxu0 %v115
    %3065 = vmatpush1.msra.mxu0 %v114
    %3066 = vmatprep.subr.mxu0 0.0
    %3067 = vmatpush1.msra.mxu0 0.0
    %3068 = vmatprep.subr.mxu0 0.0
    %3069 = vmatpush1.msra.mxu0 0.0
    %3070 = vmatprep.subr.mxu0 0.0
    %3071 = vmatpush1.msra.mxu0 0.0
    %3072 = vmatprep.subr.mxu0 0.0
    %3073 = vmatpush1.msra.mxu0 0.0
    %3074 = vmatprep.subr.mxu0 0.0
    %3075 = vmatpush1.msra.mxu0 0.0
    %3076 = vmatprep.subr.mxu0 0.0
    %3077 = vmatpush1.msra.mxu0 0.0
    %3078 = vmatprep.subr.mxu0 0.0
    %3079 = vmatpush1.msra.mxu0 0.0
    %3080 = vmatprep.subr.mxu0 0.0
    %3081 = vmatpush1.msra.mxu0 0.0
    %3082 = vmatprep.subr.mxu0 0.0
    %3083 = vmatpush1.msra.mxu0 0.0
    %3084 = vmatprep.subr.mxu0 0.0
    %3085 = vmatpush1.msra.mxu0 0.0
    %3086 = vmatprep.subr.mxu0 0.0
    %3087 = vmatpush1.msra.mxu0 0.0
    %3088 = vmatprep.subr.mxu0 0.0
    %3089 = vmatpush1.msra.mxu0 0.0
    %3090 = vmatprep.subr.mxu0 0.0
    %3091 = vmatpush1.msra.mxu0 0.0
    %3092 = vmatprep.subr.mxu0 0.0
    %3093 = vmatpush1.msra.mxu0 0.0
    %3094 = vmatprep.subr.mxu0 0.0
    %3095 = vmatpush1.msra.mxu0 0.0
    %3096 = vmatprep.subr.mxu0 0.0
    %3097 = vmatpush1.msra.mxu0 0.0
    %3098 = vmatprep.mubr.f32.mxu0 0.0
    %3099 = vmatmul.mubr.f32.gmra.mrb[0].mxu0 %v3023
    %v3100 = vpop.f32.mrb[0].mxu0
    %v3101 = vadd.f32 0.0, %v3100
    %v3102 = vpop.f32.mrb[0].mxu0
    %v3103 = vadd.f32 0.0, %v3102
    %3104 = vdwg.mxu0
    %3105 = vmatprep.subr.mxu0 0.0
    %3106 = vmatpush1.msra.mxu0 %v71
    %3107 = vmatprep.subr.mxu0 0.0
    %3108 = vmatpush1.msra.mxu0 %v74
    %3109 = vmatprep.subr.mxu0 0.0
    %3110 = vmatpush1.msra.mxu0 %v77
    %3111 = vmatprep.subr.mxu0 0.0
    %3112 = vmatpush1.msra.mxu0 %v80
    %3113 = vmatprep.subr.mxu0 0.0
    %3114 = vmatpush1.msra.mxu0 %v83
    %3115 = vmatprep.subr.mxu0 0.0
    %3116 = vmatpush1.msra.mxu0 %v86
    %3117 = vmatprep.subr.mxu0 0.0
    %3118 = vmatpush1.msra.mxu0 %v89
    %3119 = vmatprep.subr.mxu0 0.0
    %3120 = vmatpush1.msra.mxu0 %v92
    %3121 = vmatprep.subr.mxu0 0.0
    %3122 = vmatpush1.msra.mxu0 %v95
    %3123 = vmatprep.subr.mxu0 0.0
    %3124 = vmatpush1.msra.mxu0 %v98
    %3125 = vmatprep.subr.mxu0 0.0
    %3126 = vmatpush1.msra.mxu0 %v101
    %3127 = vmatprep.subr.mxu0 0.0
    %3128 = vmatpush1.msra.mxu0 %v104
    %3129 = vmatprep.subr.mxu0 0.0
    %3130 = vmatpush1.msra.mxu0 %v107
    %3131 = vmatprep.subr.mxu0 0.0
    %3132 = vmatpush1.msra.mxu0 %v110
    %3133 = vmatprep.subr.mxu0 0.0
    %3134 = vmatpush1.msra.mxu0 %v113
    %3135 = vmatprep.subr.mxu0 0.0
    %3136 = vmatpush1.msra.mxu0 %v116
    %3137 = vmatprep.subr.mxu0 0.0
    %3138 = vmatpush1.msra.mxu0 0.0
    %3139 = vmatprep.subr.mxu0 0.0
    %3140 = vmatpush1.msra.mxu0 0.0
    %3141 = vmatprep.subr.mxu0 0.0
    %3142 = vmatpush1.msra.mxu0 0.0
    %3143 = vmatprep.subr.mxu0 0.0
    %3144 = vmatpush1.msra.mxu0 0.0
    %3145 = vmatprep.subr.mxu0 0.0
    %3146 = vmatpush1.msra.mxu0 0.0
    %3147 = vmatprep.subr.mxu0 0.0
    %3148 = vmatpush1.msra.mxu0 0.0
    %3149 = vmatprep.subr.mxu0 0.0
    %3150 = vmatpush1.msra.mxu0 0.0
    %3151 = vmatprep.subr.mxu0 0.0
    %3152 = vmatpush1.msra.mxu0 0.0
    %3153 = vmatprep.subr.mxu0 0.0
    %3154 = vmatpush1.msra.mxu0 0.0
    %3155 = vmatprep.subr.mxu0 0.0
    %3156 = vmatpush1.msra.mxu0 0.0
    %3157 = vmatprep.subr.mxu0 0.0
    %3158 = vmatpush1.msra.mxu0 0.0
    %3159 = vmatprep.subr.mxu0 0.0
    %3160 = vmatpush1.msra.mxu0 0.0
    %3161 = vmatprep.subr.mxu0 0.0
    %3162 = vmatpush1.msra.mxu0 0.0
    %3163 = vmatprep.subr.mxu0 0.0
    %3164 = vmatpush1.msra.mxu0 0.0
    %3165 = vmatprep.subr.mxu0 0.0
    %3166 = vmatpush1.msra.mxu0 0.0
    %3167 = vmatprep.subr.mxu0 0.0
    %3168 = vmatpush1.msra.mxu0 0.0
    %3169 = vmatprep.mubr.f32.mxu0 0.0
    %3170 = vmatmul.mubr.f32.gmra.mrb[0].mxu0 %v3023
    %v3171 = vpop.f32.mrb[0].mxu0
    %v3172 = vadd.f32 0.0, %v3171
    %v3173 = vpop.f32.mrb[0].mxu0
    %3174 = vdwg.mxu0
    %3175 = vmatprep.subr.mxu0 %v118
    %3176 = vmatpush1.msra.mxu0 %v117
    %3177 = vmatprep.subr.mxu0 %v121
    %3178 = vmatpush1.msra.mxu0 %v120
    %3179 = vmatprep.subr.mxu0 %v124
    %3180 = vmatpush1.msra.mxu0 %v123
    %3181 = vmatprep.subr.mxu0 %v127
    %3182 = vmatpush1.msra.mxu0 %v126
    %3183 = vmatprep.subr.mxu0 %v130
    %3184 = vmatpush1.msra.mxu0 %v129
    %3185 = vmatprep.subr.mxu0 %v133
    %3186 = vmatpush1.msra.mxu0 %v132
    %3187 = vmatprep.subr.mxu0 %v136
    %3188 = vmatpush1.msra.mxu0 %v135
    %3189 = vmatprep.subr.mxu0 %v139
    %3190 = vmatpush1.msra.mxu0 %v138
    %3191 = vmatprep.subr.mxu0 %v142
    %3192 = vmatpush1.msra.mxu0 %v141
    %3193 = vmatprep.subr.mxu0 %v145
    %3194 = vmatpush1.msra.mxu0 %v144
    %3195 = vmatprep.subr.mxu0 %v148
    %3196 = vmatpush1.msra.mxu0 %v147
    %3197 = vmatprep.subr.mxu0 %v151
    %3198 = vmatpush1.msra.mxu0 %v150
    %3199 = vmatprep.subr.mxu0 %v154
    %3200 = vmatpush1.msra.mxu0 %v153
    %3201 = vmatprep.subr.mxu0 %v157
    %3202 = vmatpush1.msra.mxu0 %v156
    %3203 = vmatprep.subr.mxu0 %v160
    %3204 = vmatpush1.msra.mxu0 %v159
    %3205 = vmatprep.subr.mxu0 %v163
    %3206 = vmatpush1.msra.mxu0 %v162
    %3207 = vmatprep.subr.mxu0 0.0
    %3208 = vmatpush1.msra.mxu0 0.0
    %3209 = vmatprep.subr.mxu0 0.0
    %3210 = vmatpush1.msra.mxu0 0.0
    %3211 = vmatprep.subr.mxu0 0.0
    %3212 = vmatpush1.msra.mxu0 0.0
    %3213 = vmatprep.subr.mxu0 0.0
    %3214 = vmatpush1.msra.mxu0 0.0
    %3215 = vmatprep.subr.mxu0 0.0
    %3216 = vmatpush1.msra.mxu0 0.0
    %3217 = vmatprep.subr.mxu0 0.0
    %3218 = vmatpush1.msra.mxu0 0.0
    %3219 = vmatprep.subr.mxu0 0.0
    %3220 = vmatpush1.msra.mxu0 0.0
    %3221 = vmatprep.subr.mxu0 0.0
    %3222 = vmatpush1.msra.mxu0 0.0
    %3223 = vmatprep.subr.mxu0 0.0
    %3224 = vmatpush1.msra.mxu0 0.0
    %3225 = vmatprep.subr.mxu0 0.0
    %3226 = vmatpush1.msra.mxu0 0.0
    %3227 = vmatprep.subr.mxu0 0.0
    %3228 = vmatpush1.msra.mxu0 0.0
    %3229 = vmatprep.subr.mxu0 0.0
    %3230 = vmatpush1.msra.mxu0 0.0
    %3231 = vmatprep.subr.mxu0 0.0
    %3232 = vmatpush1.msra.mxu0 0.0
    %3233 = vmatprep.subr.mxu0 0.0
    %3234 = vmatpush1.msra.mxu0 0.0
    %3235 = vmatprep.subr.mxu0 0.0
    %3236 = vmatpush1.msra.mxu0 0.0
    %3237 = vmatprep.subr.mxu0 0.0
    %3238 = vmatpush1.msra.mxu0 0.0
    %3239 = vmatprep.mubr.f32.mxu0 0.0
    %3240 = vmatmul.mubr.f32.gmra.mrb[0].mxu0 %v2932
    %v3241 = vpop.f32.mrb[0].mxu0
    %v3242 = vadd.f32 0.0, %v3241
    %v3243 = vpop.f32.mrb[0].mxu0
    %v3244 = vadd.f32 0.0, %v3243
    %3245 = vdwg.mxu0
    %3246 = vmatprep.subr.mxu0 0.0
    %3247 = vmatpush1.msra.mxu0 %v119
    %3248 = vmatprep.subr.mxu0 0.0
    %3249 = vmatpush1.msra.mxu0 %v122
    %3250 = vmatprep.subr.mxu0 0.0
    %3251 = vmatpush1.msra.mxu0 %v125
    %3252 = vmatprep.subr.mxu0 0.0
    %3253 = vmatpush1.msra.mxu0 %v128
    %3254 = vmatprep.subr.mxu0 0.0
    %3255 = vmatpush1.msra.mxu0 %v131
    %3256 = vmatprep.subr.mxu0 0.0
    %3257 = vmatpush1.msra.mxu0 %v134
    %3258 = vmatprep.subr.mxu0 0.0
    %3259 = vmatpush1.msra.mxu0 %v137
    %3260 = vmatprep.subr.mxu0 0.0
    %3261 = vmatpush1.msra.mxu0 %v140
    %3262 = vmatprep.subr.mxu0 0.0
    %3263 = vmatpush1.msra.mxu0 %v143
    %3264 = vmatprep.subr.mxu0 0.0
    %3265 = vmatpush1.msra.mxu0 %v146
    %3266 = vmatprep.subr.mxu0 0.0
    %3267 = vmatpush1.msra.mxu0 %v149
    %3268 = vmatprep.subr.mxu0 0.0
    %3269 = vmatpush1.msra.mxu0 %v152
    %3270 = vmatprep.subr.mxu0 0.0
    %3271 = vmatpush1.msra.mxu0 %v155
    %3272 = vmatprep.subr.mxu0 0.0
    %3273 = vmatpush1.msra.mxu0 %v158
    %3274 = vmatprep.subr.mxu0 0.0
    %3275 = vmatpush1.msra.mxu0 %v161
    %3276 = vmatprep.subr.mxu0 0.0
    %3277 = vmatpush1.msra.mxu0 %v164
    %3278 = vmatprep.subr.mxu0 0.0
    %3279 = vmatpush1.msra.mxu0 0.0
    %3280 = vmatprep.subr.mxu0 0.0
    %3281 = vmatpush1.msra.mxu0 0.0
    %3282 = vmatprep.subr.mxu0 0.0
    %3283 = vmatpush1.msra.mxu0 0.0
    %3284 = vmatprep.subr.mxu0 0.0
    %3285 = vmatpush1.msra.mxu0 0.0
    %3286 = vmatprep.subr.mxu0 0.0
    %3287 = vmatpush1.msra.mxu0 0.0
    %3288 = vmatprep.subr.mxu0 0.0
    %3289 = vmatpush1.msra.mxu0 0.0
    %3290 = vmatprep.subr.mxu0 0.0
    %3291 = vmatpush1.msra.mxu0 0.0
    %3292 = vmatprep.subr.mxu0 0.0
    %3293 = vmatpush1.msra.mxu0 0.0
    %3294 = vmatprep.subr.mxu0 0.0
    %3295 = vmatpush1.msra.mxu0 0.0
    %3296 = vmatprep.subr.mxu0 0.0
    %3297 = vmatpush1.msra.mxu0 0.0
    %3298 = vmatprep.subr.mxu0 0.0
    %3299 = vmatpush1.msra.mxu0 0.0
    %3300 = vmatprep.subr.mxu0 0.0
    %3301 = vmatpush1.msra.mxu0 0.0
    %3302 = vmatprep.subr.mxu0 0.0
    %3303 = vmatpush1.msra.mxu0 0.0
    %3304 = vmatprep.subr.mxu0 0.0
    %3305 = vmatpush1.msra.mxu0 0.0
    %3306 = vmatprep.subr.mxu0 0.0
    %3307 = vmatpush1.msra.mxu0 0.0
    %3308 = vmatprep.subr.mxu0 0.0
    %3309 = vmatpush1.msra.mxu0 0.0
    %3310 = vmatprep.mubr.f32.mxu0 0.0
    %3311 = vmatmul.mubr.f32.gmra.mrb[0].mxu0 %v2932
    %v3312 = vpop.f32.mrb[0].mxu0
    %v3313 = vadd.f32 0.0, %v3312
    %v3314 = vpop.f32.mrb[0].mxu0
    %3315 = vdwg.mxu0
    %v3316 = vadd.f32 %v3101, %v3242
    %v3317 = vxor.u32 %v3316, 2147483648
    %v3318 = vmul.f32 %v3317, 1.442695
    %v3319 = vpow.pop %v3318
    %v3320 = vadd.f32 %v3319, 1.0
    %v3321 = vrcp.pop %v3320
    %v3322 = vmul.f32 1.0, %v3321
    %v3323 = vadd.f32 %v3103, %v3244
    %v3324 = vxor.u32 %v3323, 2147483648
    %v3325 = vmul.f32 %v3324, 1.442695
    %v3326 = vpow.pop %v3325
    %v3327 = vadd.f32 %v3326, 1.0
    %v3328 = vrcp.pop %v3327
    %v3329 = vmul.f32 1.0, %v3328
    %v3330 = vadd.f32 %v3313, %v488
    %v3331 = vmul.f32 %v3322, %v3330
    %v3332 = vadd.f32 %v3172, %v3331
    %v3333 = vtanh.pop %v3332
    %v3334 = vsub.f32 1.0, %v3329
    %v3335 = vmul.f32 %v3334, %v3333
    %v3336 = vmul.f32 %v3329, %v2932
    %v3337 = vadd.f32 %v3335, %v3336
    %3338 = vmatprep.subr.mxu0 0.0
    %3339 = vmatpush1.msra.mxu0 %v166
    %3340 = vmatprep.subr.mxu0 0.0
    %3341 = vmatpush1.msra.mxu0 %v167
    %3342 = vmatprep.subr.mxu0 0.0
    %3343 = vmatpush1.msra.mxu0 %v168
    %3344 = vmatprep.subr.mxu0 0.0
    %3345 = vmatpush1.msra.mxu0 %v169
    %3346 = vmatprep.subr.mxu0 0.0
    %3347 = vmatpush1.msra.mxu0 %v170
    %3348 = vmatprep.subr.mxu0 0.0
    %3349 = vmatpush1.msra.mxu0 %v171
    %3350 = vmatprep.subr.mxu0 0.0
    %3351 = vmatpush1.msra.mxu0 %v172
    %3352 = vmatprep.subr.mxu0 0.0
    %3353 = vmatpush1.msra.mxu0 %v173
    %3354 = vmatprep.subr.mxu0 0.0
    %3355 = vmatpush1.msra.mxu0 %v174
    %3356 = vmatprep.subr.mxu0 0.0
    %3357 = vmatpush1.msra.mxu0 %v175
    %3358 = vmatprep.subr.mxu0 0.0
    %3359 = vmatpush1.msra.mxu0 %v176
    %3360 = vmatprep.subr.mxu0 0.0
    %3361 = vmatpush1.msra.mxu0 %v177
    %3362 = vmatprep.subr.mxu0 0.0
    %3363 = vmatpush1.msra.mxu0 %v178
    %3364 = vmatprep.subr.mxu0 0.0
    %3365 = vmatpush1.msra.mxu0 %v179
    %3366 = vmatprep.subr.mxu0 0.0
    %3367 = vmatpush1.msra.mxu0 %v180
    %3368 = vmatprep.subr.mxu0 0.0
    %3369 = vmatpush1.msra.mxu0 %v181
    %3370 = vmatprep.subr.mxu0 0.0
    %3371 = vmatpush1.msra.mxu0 0.0
    %3372 = vmatprep.subr.mxu0 0.0
    %3373 = vmatpush1.msra.mxu0 0.0
    %3374 = vmatprep.subr.mxu0 0.0
    %3375 = vmatpush1.msra.mxu0 0.0
    %3376 = vmatprep.subr.mxu0 0.0
    %3377 = vmatpush1.msra.mxu0 0.0
    %3378 = vmatprep.subr.mxu0 0.0
    %3379 = vmatpush1.msra.mxu0 0.0
    %3380 = vmatprep.subr.mxu0 0.0
    %3381 = vmatpush1.msra.mxu0 0.0
    %3382 = vmatprep.subr.mxu0 0.0
    %3383 = vmatpush1.msra.mxu0 0.0
    %3384 = vmatprep.subr.mxu0 0.0
    %3385 = vmatpush1.msra.mxu0 0.0
    %3386 = vmatprep.subr.mxu0 0.0
    %3387 = vmatpush1.msra.mxu0 0.0
    %3388 = vmatprep.subr.mxu0 0.0
    %3389 = vmatpush1.msra.mxu0 0.0
    %3390 = vmatprep.subr.mxu0 0.0
    %3391 = vmatpush1.msra.mxu0 0.0
    %3392 = vmatprep.subr.mxu0 0.0
    %3393 = vmatpush1.msra.mxu0 0.0
    %3394 = vmatprep.subr.mxu0 0.0
    %3395 = vmatpush1.msra.mxu0 0.0
    %3396 = vmatprep.subr.mxu0 0.0
    %3397 = vmatpush1.msra.mxu0 0.0
    %3398 = vmatprep.subr.mxu0 0.0
    %3399 = vmatpush1.msra.mxu0 0.0
    %3400 = vmatprep.subr.mxu0 0.0
    %3401 = vmatpush1.msra.mxu0 0.0
    %3402 = vmatprep.mubr.f32.mxu0 0.0
    %3403 = vmatmul.mubr.f32.gmra.mrb[0].mxu0 %v3337
    %v3404 = vpop.f32.mrb[0].mxu0
    %v3405 = vadd.f32 %v502, %v3404
    %v3406 = vpop.f32.mrb[0].mxu0
    %3407 = vdwg.mxu0
    %3408 = vmax.xlane.f32.xlu0 %v3405
    %v3409 = vpop.xlane.xlu0 %3408
    %v3410 = vsub.f32 %v3405, %v3409
    %v3411 = vmul.f32 %v3410, 1.442695
    %v3412 = vpow.pop %v3411
    %3413 = vadd.xlane.f32.xlu0 %v3412
    %v3414 = vpop.xlane.xlu0 %3413
    %v3415 = vlog2.pop %v3414
    %v3416 = vmul.f32 %v3415, 0.6931472
    %v3417 = vsub.f32 %v3410, %v3416
    %s3418 = scalar_lea.vmem [#allocation8], 56
    %3419 = vst [vmem:[%s3418] sm:$0xff] %v3417
    %3420 = vst [vmem:[#allocation9] sm:$0xff] %v3337
    // Predicated region
    $region38: #{tpu_custom_call.1} parent=1 // pred_check
      _
    $region39: #{tpu_custom_call.1} parent=1 // pred_check_branch
      %3422 = sbr.rel (0) target = $region41
    $region40: #{tpu_custom_call.1} parent=1 // pred_region
      %s3424 = ssub.s32 1024, 1024
      %3425 = vsyncadd [#allocation4], %s3424
      %s3426 = sshll.u32 [#allocation8], 4
      %s3427 = int_to_ptr.vmem [resolvable:$true] %s3426
      %3432 = dma.vmem_to_hbm [thread:$0]  %s3427, 1024, %s6, [#allocation4], 128, 128, 8
    $region41: #{tpu_custom_call.1} parent=1 // pred_fallthru
      _
    // Predicated region
    $region42: #{tpu_custom_call.1} parent=1 // pred_check
      _
    $region43: #{tpu_custom_call.1} parent=1 // pred_check_branch
      %3434 = sbr.rel (0) target = $region45
    $region44: #{tpu_custom_call.1} parent=1 // pred_region
      %s3436 = ssub.s32 128, 128
      %3437 = vsyncadd [#allocation10], %s3436
      %s3439 = sshll.u32 [#allocation9], 4
      %s3440 = int_to_ptr.vmem [resolvable:$true] %s3439
      %3442 = dma.vmem_to_hbm [thread:$0]  %s3440, 128, %s7, [#allocation10]
    $region45: #{tpu_custom_call.1} parent=1 // pred_fallthru
      _
    // Predicated region
    $region46: #{tpu_custom_call.1} parent=1 // pred_check
      _
    $region47: #{tpu_custom_call.1} parent=1 // pred_check_branch
      %3444 = sbr.rel (0) target = $region49
    $region48: #{tpu_custom_call.1} parent=1 // pred_region
      %3445 = dma.done [#allocation4], 1024
    $region49: #{tpu_custom_call.1} parent=1 // pred_fallthru
      _
    // Predicated region
    $region50: #{tpu_custom_call.1} parent=1 // pred_check
      _
    $region51: #{tpu_custom_call.1} parent=1 // pred_check_branch
      %3447 = sbr.rel (0) target = $region53
    $region52: #{tpu_custom_call.1} parent=1 // pred_region
      %3448 = dma.done [#allocation10], 128
    $region53: #{tpu_custom_call.1} parent=1 // pred_fallthru
      _
    %3449 = vsyncpa [#allocation3], 1
    %3450 = vsyncpa [#allocation6], 1
    %3451 = vsyncpa [#allocation4], 1
    %3452 = vsyncpa [#allocation10], 1

</llo_original>
